<compile_context>
chip_gen: v6e
topology: v6e:2x2x1
jax: 0.10.0
libtpu: 0.0.40
codegen_flags: <defaults>
</compile_context>

<pallas_src>
import functools

import jax
import jax.numpy as jnp
from jax import lax
from jax.experimental import pallas as pl
from jax.experimental.pallas import tpu as pltpu


# ----------------------------------------------------------------------------
# Kernel 1: embedding row-gather (manual DMA from HBM) + fused input projection
#           gx = emb @ W_ih + b   with W_ih laid out [E, 4H]  (one MXU matmul).
# ----------------------------------------------------------------------------
def embed_proj_kernel(ids_ref, table_hbm, wih_ref, b_ref, gx_ref, buf, sems, *,
                      rows):
    # ids_ref  : SMEM [N] int32, time-major flat token ids (scalar prefetch)
    # table_hbm: HBM  [V, E] f32 (memory_space=pl.ANY; never pulled in whole)
    # wih_ref  : VMEM [E, 4H] bf16
    # b_ref    : VMEM [1, 4H] f32  (b_ih + b_hh)
    # gx_ref   : VMEM out block [rows, 4H] bf16
    # buf      : VMEM scratch [rows, E] f32; sems: DMA semaphores (rows,)
    base = pl.program_id(0) * rows

    copies = []
    for r in range(rows):                      # static, unrolled row gather
        tok = ids_ref[base + r]
        cp = pltpu.make_async_copy(table_hbm.at[pl.ds(tok, 1)],
                                   buf.at[pl.ds(r, 1)],
                                   sems.at[r])
        cp.start()
        copies.append(cp)
    for cp in copies:
        cp.wait()

    x = buf[...].astype(jnp.bfloat16)          # bf16 operands, f32 accumulate
    gates = jnp.dot(x, wih_ref[...], preferred_element_type=jnp.float32)
    gates = gates + b_ref[...]
    gx_ref[...] = gates.astype(gx_ref.dtype)


# ----------------------------------------------------------------------------
# Kernel 2: LSTM recurrence.  One fused bf16 [B,H]@[H,4H] per timestep on the
# serial path; h/c state persists in f32 VMEM scratch across grid iterations.
# Chunk output written time-major (sublane/lane dense stores).
# ----------------------------------------------------------------------------
def lstm_kernel(gx_ref, whh_ref, h_ref, h_scr, c_scr, *, t_chunk, batch,
                hidden):
    # gx_ref : [t_chunk*batch, 4H] bf16  precomputed x@W_ih + b (time-major)
    # whh_ref: [H, 4H] bf16
    # h_ref  : out block [t_chunk, batch, H] f32 (time-major slab)
    # h_scr/c_scr: [batch, H] f32 persistent recurrent state
    @pl.when(pl.program_id(0) == 0)
    def _():
        h_scr[...] = jnp.zeros_like(h_scr)
        c_scr[...] = jnp.zeros_like(c_scr)

    H = hidden
    w = whh_ref[...]                           # load once, reuse across chunk
    h = h_scr[...]
    c = c_scr[...]
    for s in range(t_chunk):                   # statically unrolled recurrence
        gx = gx_ref[s * batch:(s + 1) * batch, :].astype(jnp.float32)
        gates = gx + jnp.dot(h.astype(jnp.bfloat16), w,
                             preferred_element_type=jnp.float32)
        i = jax.nn.sigmoid(gates[:, 0 * H:1 * H])
        f = jax.nn.sigmoid(gates[:, 1 * H:2 * H])
        g = jnp.tanh(gates[:, 2 * H:3 * H])
        o = jax.nn.sigmoid(gates[:, 3 * H:4 * H])
        c = f * c + i * g
        h = o * jnp.tanh(c)
        h_ref[s] = h                           # dense [B, H] slab store
    h_scr[...] = h
    c_scr[...] = c


# ----------------------------------------------------------------------------
# Kernel 3: final linear projection (tiled over rows, lane-dense output).
# ----------------------------------------------------------------------------
def linear_kernel(x_ref, w_ref, b_ref, out_ref):
    out_ref[...] = (jnp.dot(x_ref[...].astype(jnp.bfloat16), w_ref[...],
                            preferred_element_type=jnp.float32) + b_ref[...])


# ----------------------------------------------------------------------------
# Wrapper
# ----------------------------------------------------------------------------
def lstm_model_forward(x_ids, params, *, t_chunk=8, gather_rows=512,
                       lin_rows=512):
    """x_ids: [B, T] int32 token ids -> preds [B, T, C] float32 (batch-first)."""
    B, T = x_ids.shape
    emb_table = params["embedding"]                     # [V, E]  f32
    w_ih = params["w_ih_t"].astype(jnp.bfloat16)        # [E, 4H] bf16 once
    w_hh = params["w_hh_t"].astype(jnp.bfloat16)        # [H, 4H] bf16 once
    b_lstm = params["b_lstm"]                           # [1, 4H] f32
    w_lin = params["w_lin_t"].astype(jnp.bfloat16)      # [H, C]  bf16 once
    b_lin = params["b_lin"]                             # [1, C]  f32
    V, E = emb_table.shape
    H = params["w_hh_t"].shape[0]
    C = params["w_lin_t"].shape[1]
    G = 4 * H

    t_chunk = min(t_chunk, T)
    assert T % t_chunk == 0, "T must be divisible by the timestep chunk"
    n_chunks = T // t_chunk
    rows2 = t_chunk * B                  # recurrence-chunk rows
    N = T * B

    # Kernel-1 row tile decoupled from the recurrence chunk.
    g1 = min(gather_rows, N)
    while N % g1:
        g1 //= 2

    # Time-major flat token ids (tiny int32 transpose; defines gather order).
    ids_tm = x_ids.T.reshape(N).astype(jnp.int32)

    vmem_cap = 64 * 1024 * 1024

    # --- kernel 1: DMA gather + fused input projection (parallel over chunks)
    gx = pl.pallas_call(
        functools.partial(embed_proj_kernel, rows=g1),
        out_shape=jax.ShapeDtypeStruct((N, G), jnp.bfloat16),
        grid_spec=pltpu.PrefetchScalarGridSpec(
            num_scalar_prefetch=1,
            grid=(N // g1,),
            in_specs=[
                pl.BlockSpec(memory_space=pl.ANY),              # table in HBM
                pl.BlockSpec((E, G), lambda i, ids: (0, 0),
                             pipeline_mode=pl.Buffered(1)),     # W_ih constant
                pl.BlockSpec((1, G), lambda i, ids: (0, 0),
                             pipeline_mode=pl.Buffered(1)),     # bias constant
            ],
            out_specs=pl.BlockSpec((g1, G), lambda i, ids: (i, 0)),
            scratch_shapes=[
                pltpu.VMEM((g1, E), jnp.float32),
                pltpu.SemaphoreType.DMA((g1,)),
            ],
        ),
        compiler_params=pltpu.CompilerParams(
            dimension_semantics=("parallel",),
            vmem_limit_bytes=vmem_cap),
    )(ids_tm, emb_table, w_ih, b_lstm)                  # [T*B, 4H] bf16

    # --- kernel 2: recurrence only (h @ W_hh), chunked over time (sequential)
    h_tm = pl.pallas_call(
        functools.partial(lstm_kernel, t_chunk=t_chunk, batch=B, hidden=H),
        out_shape=jax.ShapeDtypeStruct((T, B, H), jnp.float32),
        grid_spec=pltpu.PrefetchScalarGridSpec(
            num_scalar_prefetch=0,
            grid=(n_chunks,),
            in_specs=[
                pl.BlockSpec((rows2, G), lambda i: (i, 0)),
                pl.BlockSpec((H, G), lambda i: (0, 0),
                             pipeline_mode=pl.Buffered(1)),     # W_hh constant
            ],
            out_specs=pl.BlockSpec((t_chunk, B, H), lambda i: (i, 0, 0)),
            scratch_shapes=[
                pltpu.VMEM((B, H), jnp.float32),   # h state
                pltpu.VMEM((B, H), jnp.float32),   # c state
            ],
        ),
        compiler_params=pltpu.CompilerParams(
            dimension_semantics=("arbitrary",),    # true recurrence
            vmem_limit_bytes=vmem_cap),
    )(gx, w_hh)                                         # [T, B, H] time-major

    # --- kernel 3: linear head, tiled & row-parallel, lane-dense C -----------
    h_flat = h_tm.reshape(N, H)            # time-major flatten: free
    row_blk = min(lin_rows, N)
    while N % row_blk:
        row_blk //= 2
    preds_tm = pl.pallas_call(
        linear_kernel,
        out_shape=jax.ShapeDtypeStruct((N, C), jnp.float32),
        grid_spec=pltpu.PrefetchScalarGridSpec(
            num_scalar_prefetch=0,
            grid=(N // row_blk,),
            in_specs=[
                pl.BlockSpec((row_blk, H), lambda i: (i, 0)),
                pl.BlockSpec((H, C), lambda i: (0, 0),
                             pipeline_mode=pl.Buffered(1)),
                pl.BlockSpec((1, C), lambda i: (0, 0),
                             pipeline_mode=pl.Buffered(1)),
            ],
            out_specs=pl.BlockSpec((row_blk, C), lambda i: (i, 0)),
        ),
        compiler_params=pltpu.CompilerParams(
            dimension_semantics=("parallel",),
            vmem_limit_bytes=vmem_cap),
    )(h_flat, w_lin, b_lin)                             # [T*B, C]

    # Single cheap transpose of the small head output: [T,B,C] -> [B,T,C].
    return preds_tm.reshape(T, B, C).transpose(1, 0, 2)


# ----------------------------------------------------------------------------
# Pure JAX f32 reference (for correctness sanity check).
# ----------------------------------------------------------------------------
def reference_forward(x_ids, params):
    emb = jnp.take(params["embedding"], x_ids, axis=0)     # [B, T, E]
    H = params["w_hh_t"].shape[0]
    B = x_ids.shape[0]

    def step(carry, x_t):
        h, c = carry
        gates = x_t @ params["w_ih_t"] + h @ params["w_hh_t"] + params["b_lstm"]
        i = jax.nn.sigmoid(gates[:, 0 * H:1 * H])
        f = jax.nn.sigmoid(gates[:, 1 * H:2 * H])
        g = jnp.tanh(gates[:, 2 * H:3 * H])
        o = jax.nn.sigmoid(gates[:, 3 * H:4 * H])
        c = f * c + i * g
        h = o * jnp.tanh(c)
        return (h, c), h

    h0 = jnp.zeros((B, H), jnp.float32)
    _, hs = lax.scan(step, (h0, h0), emb.transpose(1, 0, 2))   # [T, B, H]
    out = hs.transpose(1, 0, 2)                                # [B, T, H]
    return out @ params["w_lin_t"] + params["b_lin"]


if __name__ == "__main__":
    B, T = 2, 16
    V, E, H, C = 128, 32, 32, 128

    key = jax.random.PRNGKey(0)
    ks = jax.random.split(key, 8)
    params = {
        "embedding": 0.1 * jax.random.normal(ks[0], (V, E), jnp.float32),
        "w_ih_t":    0.1 * jax.random.normal(ks[1], (E, 4 * H), jnp.float32),
        "w_hh_t":    0.1 * jax.random.normal(ks[2], (H, 4 * H), jnp.float32),
        "b_lstm":    0.1 * jax.random.normal(ks[3], (1, 4 * H), jnp.float32),
        "w_lin_t":   0.1 * jax.random.normal(ks[4], (H, C), jnp.float32),
        "b_lin":     0.1 * jax.random.normal(ks[5], (1, C), jnp.float32),
    }
    x_ids = jax.random.randint(ks[6], (B, T), 0, V, dtype=jnp.int32)

    preds = jax.block_until_ready(lstm_model_forward(x_ids, params))
    ref = jax.block_until_ready(reference_forward(x_ids, params))

    assert preds.shape == (B, T, C), preds.shape
    # Tolerance loosened vs f32 reference because matmul operands run in bf16.
    assert jnp.allclose(preds, ref, atol=1e-2, rtol=1e-2), \
        f"mismatch vs reference, max abs diff {jnp.max(jnp.abs(preds - ref))}"
    print("KERNEL_OK")
</pallas_src>

<mosaic_0001>
module attributes {stable_mosaic.version = 11 : i64} {
  func.func @embed_proj_kernel(%arg0: i32, %arg1: memref<32xi32, #tpu.memory_space<smem>>, %arg2: memref<128x32xf32, #tpu.memory_space<any>>, %arg3: memref<32x128xbf16, #tpu.memory_space<vmem>>, %arg4: memref<1x128xf32, #tpu.memory_space<vmem>>, %arg5: memref<32x128xbf16, #tpu.memory_space<vmem>>, %arg6: memref<32x32xf32, #tpu.memory_space<vmem>>, %arg7: memref<32x!tpu.dma_semaphore, #tpu.memory_space<semaphore_mem>>) attributes {dimension_semantics = [#tpu.dimension_semantics<parallel>], iteration_bounds = array<i64: 1>, scalar_prefetch = 1 : i64, scratch_operands = 2 : i64, tpu.core_type = #tpu.core_type<tc>, window_params = [{}, {pipeline_mode = #tpu.pipeline_mode<synchronous>, transform_indices = @transform_1, window_bounds = array<i64: 32, 128>}, {pipeline_mode = #tpu.pipeline_mode<synchronous>, transform_indices = @transform_2, window_bounds = array<i64: 1, 128>}, {transform_indices = @transform_3, window_bounds = array<i64: 32, 128>}]} {
    %c32_i32 = arith.constant 32 : i32
    %0 = arith.muli %arg0, %c32_i32 : i32
    %c0_i32 = arith.constant 0 : i32
    %1 = arith.addi %0, %c0_i32 : i32
    %2 = arith.index_cast %1 : i32 to index
    %3 = memref.load %arg1[%2] : memref<32xi32, #tpu.memory_space<smem>>
    %c0_i32_0 = arith.constant 0 : i32
    %c0_i32_1 = arith.constant 0 : i32
    %4 = tpu.memref_slice %arg2[%3, %c0_i32_1] : memref<128x32xf32, #tpu.memory_space<any>> -> memref<1x32xf32, #tpu.memory_space<any>>
    %c0_i32_2 = arith.constant 0 : i32
    %c0_i32_3 = arith.constant 0 : i32
    %5 = tpu.memref_slice %arg6[%c0_i32_2, %c0_i32_3] : memref<32x32xf32, #tpu.memory_space<vmem>> -> memref<1x32xf32, #tpu.memory_space<vmem>>
    %6 = tpu.memref_slice %arg7[%c0_i32_0] : memref<32x!tpu.dma_semaphore, #tpu.memory_space<semaphore_mem>> -> memref<1x!tpu.dma_semaphore, #tpu.memory_space<semaphore_mem>>
    %7 = tpu.memref_squeeze %6 : memref<1x!tpu.dma_semaphore, #tpu.memory_space<semaphore_mem>> -> memref<!tpu.dma_semaphore, #tpu.memory_space<semaphore_mem>>
    tpu.enqueue_dma source(%4 : memref<1x32xf32, #tpu.memory_space<any>>) target(%5 : memref<1x32xf32, #tpu.memory_space<vmem>>) target_semaphore(%7 : memref<!tpu.dma_semaphore, #tpu.memory_space<semaphore_mem>>)
    %c1_i32 = arith.constant 1 : i32
    %8 = arith.addi %0, %c1_i32 : i32
    %9 = arith.index_cast %8 : i32 to index
    %10 = memref.load %arg1[%9] : memref<32xi32, #tpu.memory_space<smem>>
    %c1_i32_4 = arith.constant 1 : i32
    %c0_i32_5 = arith.constant 0 : i32
    %11 = tpu.memref_slice %arg2[%10, %c0_i32_5] : memref<128x32xf32, #tpu.memory_space<any>> -> memref<1x32xf32, #tpu.memory_space<any>>
    %c1_i32_6 = arith.constant 1 : i32
    %c0_i32_7 = arith.constant 0 : i32
    %12 = tpu.memref_slice %arg6[%c1_i32_6, %c0_i32_7] : memref<32x32xf32, #tpu.memory_space<vmem>> -> memref<1x32xf32, #tpu.memory_space<vmem>>
    %13 = tpu.memref_slice %arg7[%c1_i32_4] : memref<32x!tpu.dma_semaphore, #tpu.memory_space<semaphore_mem>> -> memref<1x!tpu.dma_semaphore, #tpu.memory_space<semaphore_mem>>
    %14 = tpu.memref_squeeze %13 : memref<1x!tpu.dma_semaphore, #tpu.memory_space<semaphore_mem>> -> memref<!tpu.dma_semaphore, #tpu.memory_space<semaphore_mem>>
    tpu.enqueue_dma source(%11 : memref<1x32xf32, #tpu.memory_space<any>>) target(%12 : memref<1x32xf32, #tpu.memory_space<vmem>>) target_semaphore(%14 : memref<!tpu.dma_semaphore, #tpu.memory_space<semaphore_mem>>)
    %c2_i32 = arith.constant 2 : i32
    %15 = arith.addi %0, %c2_i32 : i32
    %16 = arith.index_cast %15 : i32 to index
    %17 = memref.load %arg1[%16] : memref<32xi32, #tpu.memory_space<smem>>
    %c2_i32_8 = arith.constant 2 : i32
    %c0_i32_9 = arith.constant 0 : i32
    %18 = tpu.memref_slice %arg2[%17, %c0_i32_9] : memref<128x32xf32, #tpu.memory_space<any>> -> memref<1x32xf32, #tpu.memory_space<any>>
    %c2_i32_10 = arith.constant 2 : i32
    %c0_i32_11 = arith.constant 0 : i32
    %19 = tpu.memref_slice %arg6[%c2_i32_10, %c0_i32_11] : memref<32x32xf32, #tpu.memory_space<vmem>> -> memref<1x32xf32, #tpu.memory_space<vmem>>
    %20 = tpu.memref_slice %arg7[%c2_i32_8] : memref<32x!tpu.dma_semaphore, #tpu.memory_space<semaphore_mem>> -> memref<1x!tpu.dma_semaphore, #tpu.memory_space<semaphore_mem>>
    %21 = tpu.memref_squeeze %20 : memref<1x!tpu.dma_semaphore, #tpu.memory_space<semaphore_mem>> -> memref<!tpu.dma_semaphore, #tpu.memory_space<semaphore_mem>>
    tpu.enqueue_dma source(%18 : memref<1x32xf32, #tpu.memory_space<any>>) target(%19 : memref<1x32xf32, #tpu.memory_space<vmem>>) target_semaphore(%21 : memref<!tpu.dma_semaphore, #tpu.memory_space<semaphore_mem>>)
    %c3_i32 = arith.constant 3 : i32
    %22 = arith.addi %0, %c3_i32 : i32
    %23 = arith.index_cast %22 : i32 to index
    %24 = memref.load %arg1[%23] : memref<32xi32, #tpu.memory_space<smem>>
    %c3_i32_12 = arith.constant 3 : i32
    %c0_i32_13 = arith.constant 0 : i32
    %25 = tpu.memref_slice %arg2[%24, %c0_i32_13] : memref<128x32xf32, #tpu.memory_space<any>> -> memref<1x32xf32, #tpu.memory_space<any>>
    %c3_i32_14 = arith.constant 3 : i32
    %c0_i32_15 = arith.constant 0 : i32
    %26 = tpu.memref_slice %arg6[%c3_i32_14, %c0_i32_15] : memref<32x32xf32, #tpu.memory_space<vmem>> -> memref<1x32xf32, #tpu.memory_space<vmem>>
    %27 = tpu.memref_slice %arg7[%c3_i32_12] : memref<32x!tpu.dma_semaphore, #tpu.memory_space<semaphore_mem>> -> memref<1x!tpu.dma_semaphore, #tpu.memory_space<semaphore_mem>>
    %28 = tpu.memref_squeeze %27 : memref<1x!tpu.dma_semaphore, #tpu.memory_space<semaphore_mem>> -> memref<!tpu.dma_semaphore, #tpu.memory_space<semaphore_mem>>
    tpu.enqueue_dma source(%25 : memref<1x32xf32, #tpu.memory_space<any>>) target(%26 : memref<1x32xf32, #tpu.memory_space<vmem>>) target_semaphore(%28 : memref<!tpu.dma_semaphore, #tpu.memory_space<semaphore_mem>>)
    %c4_i32 = arith.constant 4 : i32
    %29 = arith.addi %0, %c4_i32 : i32
    %30 = arith.index_cast %29 : i32 to index
    %31 = memref.load %arg1[%30] : memref<32xi32, #tpu.memory_space<smem>>
    %c4_i32_16 = arith.constant 4 : i32
    %c0_i32_17 = arith.constant 0 : i32
    %32 = tpu.memref_slice %arg2[%31, %c0_i32_17] : memref<128x32xf32, #tpu.memory_space<any>> -> memref<1x32xf32, #tpu.memory_space<any>>
    %c4_i32_18 = arith.constant 4 : i32
    %c0_i32_19 = arith.constant 0 : i32
    %33 = tpu.memref_slice %arg6[%c4_i32_18, %c0_i32_19] : memref<32x32xf32, #tpu.memory_space<vmem>> -> memref<1x32xf32, #tpu.memory_space<vmem>>
    %34 = tpu.memref_slice %arg7[%c4_i32_16] : memref<32x!tpu.dma_semaphore, #tpu.memory_space<semaphore_mem>> -> memref<1x!tpu.dma_semaphore, #tpu.memory_space<semaphore_mem>>
    %35 = tpu.memref_squeeze %34 : memref<1x!tpu.dma_semaphore, #tpu.memory_space<semaphore_mem>> -> memref<!tpu.dma_semaphore, #tpu.memory_space<semaphore_mem>>
    tpu.enqueue_dma source(%32 : memref<1x32xf32, #tpu.memory_space<any>>) target(%33 : memref<1x32xf32, #tpu.memory_space<vmem>>) target_semaphore(%35 : memref<!tpu.dma_semaphore, #tpu.memory_space<semaphore_mem>>)
    %c5_i32 = arith.constant 5 : i32
    %36 = arith.addi %0, %c5_i32 : i32
    %37 = arith.index_cast %36 : i32 to index
    %38 = memref.load %arg1[%37] : memref<32xi32, #tpu.memory_space<smem>>
    %c5_i32_20 = arith.constant 5 : i32
    %c0_i32_21 = arith.constant 0 : i32
    %39 = tpu.memref_slice %arg2[%38, %c0_i32_21] : memref<128x32xf32, #tpu.memory_space<any>> -> memref<1x32xf32, #tpu.memory_space<any>>
    %c5_i32_22 = arith.constant 5 : i32
    %c0_i32_23 = arith.constant 0 : i32
    %40 = tpu.memref_slice %arg6[%c5_i32_22, %c0_i32_23] : memref<32x32xf32, #tpu.memory_space<vmem>> -> memref<1x32xf32, #tpu.memory_space<vmem>>
    %41 = tpu.memref_slice %arg7[%c5_i32_20] : memref<32x!tpu.dma_semaphore, #tpu.memory_space<semaphore_mem>> -> memref<1x!tpu.dma_semaphore, #tpu.memory_space<semaphore_mem>>
    %42 = tpu.memref_squeeze %41 : memref<1x!tpu.dma_semaphore, #tpu.memory_space<semaphore_mem>> -> memref<!tpu.dma_semaphore, #tpu.memory_space<semaphore_mem>>
    tpu.enqueue_dma source(%39 : memref<1x32xf32, #tpu.memory_space<any>>) target(%40 : memref<1x32xf32, #tpu.memory_space<vmem>>) target_semaphore(%42 : memref<!tpu.dma_semaphore, #tpu.memory_space<semaphore_mem>>)
    %c6_i32 = arith.constant 6 : i32
    %43 = arith.addi %0, %c6_i32 : i32
    %44 = arith.index_cast %43 : i32 to index
    %45 = memref.load %arg1[%44] : memref<32xi32, #tpu.memory_space<smem>>
    %c6_i32_24 = arith.constant 6 : i32
    %c0_i32_25 = arith.constant 0 : i32
    %46 = tpu.memref_slice %arg2[%45, %c0_i32_25] : memref<128x32xf32, #tpu.memory_space<any>> -> memref<1x32xf32, #tpu.memory_space<any>>
    %c6_i32_26 = arith.constant 6 : i32
    %c0_i32_27 = arith.constant 0 : i32
    %47 = tpu.memref_slice %arg6[%c6_i32_26, %c0_i32_27] : memref<32x32xf32, #tpu.memory_space<vmem>> -> memref<1x32xf32, #tpu.memory_space<vmem>>
    %48 = tpu.memref_slice %arg7[%c6_i32_24] : memref<32x!tpu.dma_semaphore, #tpu.memory_space<semaphore_mem>> -> memref<1x!tpu.dma_semaphore, #tpu.memory_space<semaphore_mem>>
    %49 = tpu.memref_squeeze %48 : memref<1x!tpu.dma_semaphore, #tpu.memory_space<semaphore_mem>> -> memref<!tpu.dma_semaphore, #tpu.memory_space<semaphore_mem>>
    tpu.enqueue_dma source(%46 : memref<1x32xf32, #tpu.memory_space<any>>) target(%47 : memref<1x32xf32, #tpu.memory_space<vmem>>) target_semaphore(%49 : memref<!tpu.dma_semaphore, #tpu.memory_space<semaphore_mem>>)
    %c7_i32 = arith.constant 7 : i32
    %50 = arith.addi %0, %c7_i32 : i32
    %51 = arith.index_cast %50 : i32 to index
    %52 = memref.load %arg1[%51] : memref<32xi32, #tpu.memory_space<smem>>
    %c7_i32_28 = arith.constant 7 : i32
    %c0_i32_29 = arith.constant 0 : i32
    %53 = tpu.memref_slice %arg2[%52, %c0_i32_29] : memref<128x32xf32, #tpu.memory_space<any>> -> memref<1x32xf32, #tpu.memory_space<any>>
    %c7_i32_30 = arith.constant 7 : i32
    %c0_i32_31 = arith.constant 0 : i32
    %54 = tpu.memref_slice %arg6[%c7_i32_30, %c0_i32_31] : memref<32x32xf32, #tpu.memory_space<vmem>> -> memref<1x32xf32, #tpu.memory_space<vmem>>
    %55 = tpu.memref_slice %arg7[%c7_i32_28] : memref<32x!tpu.dma_semaphore, #tpu.memory_space<semaphore_mem>> -> memref<1x!tpu.dma_semaphore, #tpu.memory_space<semaphore_mem>>
    %56 = tpu.memref_squeeze %55 : memref<1x!tpu.dma_semaphore, #tpu.memory_space<semaphore_mem>> -> memref<!tpu.dma_semaphore, #tpu.memory_space<semaphore_mem>>
    tpu.enqueue_dma source(%53 : memref<1x32xf32, #tpu.memory_space<any>>) target(%54 : memref<1x32xf32, #tpu.memory_space<vmem>>) target_semaphore(%56 : memref<!tpu.dma_semaphore, #tpu.memory_space<semaphore_mem>>)
    %c8_i32 = arith.constant 8 : i32
    %57 = arith.addi %0, %c8_i32 : i32
    %58 = arith.index_cast %57 : i32 to index
    %59 = memref.load %arg1[%58] : memref<32xi32, #tpu.memory_space<smem>>
    %c8_i32_32 = arith.constant 8 : i32
    %c0_i32_33 = arith.constant 0 : i32
    %60 = tpu.memref_slice %arg2[%59, %c0_i32_33] : memref<128x32xf32, #tpu.memory_space<any>> -> memref<1x32xf32, #tpu.memory_space<any>>
    %c8_i32_34 = arith.constant 8 : i32
    %c0_i32_35 = arith.constant 0 : i32
    %61 = tpu.memref_slice %arg6[%c8_i32_34, %c0_i32_35] : memref<32x32xf32, #tpu.memory_space<vmem>> -> memref<1x32xf32, #tpu.memory_space<vmem>>
    %62 = tpu.memref_slice %arg7[%c8_i32_32] : memref<32x!tpu.dma_semaphore, #tpu.memory_space<semaphore_mem>> -> memref<1x!tpu.dma_semaphore, #tpu.memory_space<semaphore_mem>>
    %63 = tpu.memref_squeeze %62 : memref<1x!tpu.dma_semaphore, #tpu.memory_space<semaphore_mem>> -> memref<!tpu.dma_semaphore, #tpu.memory_space<semaphore_mem>>
    tpu.enqueue_dma source(%60 : memref<1x32xf32, #tpu.memory_space<any>>) target(%61 : memref<1x32xf32, #tpu.memory_space<vmem>>) target_semaphore(%63 : memref<!tpu.dma_semaphore, #tpu.memory_space<semaphore_mem>>)
    %c9_i32 = arith.constant 9 : i32
    %64 = arith.addi %0, %c9_i32 : i32
    %65 = arith.index_cast %64 : i32 to index
    %66 = memref.load %arg1[%65] : memref<32xi32, #tpu.memory_space<smem>>
    %c9_i32_36 = arith.constant 9 : i32
    %c0_i32_37 = arith.constant 0 : i32
    %67 = tpu.memref_slice %arg2[%66, %c0_i32_37] : memref<128x32xf32, #tpu.memory_space<any>> -> memref<1x32xf32, #tpu.memory_space<any>>
    %c9_i32_38 = arith.constant 9 : i32
    %c0_i32_39 = arith.constant 0 : i32
    %68 = tpu.memref_slice %arg6[%c9_i32_38, %c0_i32_39] : memref<32x32xf32, #tpu.memory_space<vmem>> -> memref<1x32xf32, #tpu.memory_space<vmem>>
    %69 = tpu.memref_slice %arg7[%c9_i32_36] : memref<32x!tpu.dma_semaphore, #tpu.memory_space<semaphore_mem>> -> memref<1x!tpu.dma_semaphore, #tpu.memory_space<semaphore_mem>>
    %70 = tpu.memref_squeeze %69 : memref<1x!tpu.dma_semaphore, #tpu.memory_space<semaphore_mem>> -> memref<!tpu.dma_semaphore, #tpu.memory_space<semaphore_mem>>
    tpu.enqueue_dma source(%67 : memref<1x32xf32, #tpu.memory_space<any>>) target(%68 : memref<1x32xf32, #tpu.memory_space<vmem>>) target_semaphore(%70 : memref<!tpu.dma_semaphore, #tpu.memory_space<semaphore_mem>>)
    %c10_i32 = arith.constant 10 : i32
    %71 = arith.addi %0, %c10_i32 : i32
    %72 = arith.index_cast %71 : i32 to index
    %73 = memref.load %arg1[%72] : memref<32xi32, #tpu.memory_space<smem>>
    %c10_i32_40 = arith.constant 10 : i32
    %c0_i32_41 = arith.constant 0 : i32
    %74 = tpu.memref_slice %arg2[%73, %c0_i32_41] : memref<128x32xf32, #tpu.memory_space<any>> -> memref<1x32xf32, #tpu.memory_space<any>>
    %c10_i32_42 = arith.constant 10 : i32
    %c0_i32_43 = arith.constant 0 : i32
    %75 = tpu.memref_slice %arg6[%c10_i32_42, %c0_i32_43] : memref<32x32xf32, #tpu.memory_space<vmem>> -> memref<1x32xf32, #tpu.memory_space<vmem>>
    %76 = tpu.memref_slice %arg7[%c10_i32_40] : memref<32x!tpu.dma_semaphore, #tpu.memory_space<semaphore_mem>> -> memref<1x!tpu.dma_semaphore, #tpu.memory_space<semaphore_mem>>
    %77 = tpu.memref_squeeze %76 : memref<1x!tpu.dma_semaphore, #tpu.memory_space<semaphore_mem>> -> memref<!tpu.dma_semaphore, #tpu.memory_space<semaphore_mem>>
    tpu.enqueue_dma source(%74 : memref<1x32xf32, #tpu.memory_space<any>>) target(%75 : memref<1x32xf32, #tpu.memory_space<vmem>>) target_semaphore(%77 : memref<!tpu.dma_semaphore, #tpu.memory_space<semaphore_mem>>)
    %c11_i32 = arith.constant 11 : i32
    %78 = arith.addi %0, %c11_i32 : i32
    %79 = arith.index_cast %78 : i32 to index
    %80 = memref.load %arg1[%79] : memref<32xi32, #tpu.memory_space<smem>>
    %c11_i32_44 = arith.constant 11 : i32
    %c0_i32_45 = arith.constant 0 : i32
    %81 = tpu.memref_slice %arg2[%80, %c0_i32_45] : memref<128x32xf32, #tpu.memory_space<any>> -> memref<1x32xf32, #tpu.memory_space<any>>
    %c11_i32_46 = arith.constant 11 : i32
    %c0_i32_47 = arith.constant 0 : i32
    %82 = tpu.memref_slice %arg6[%c11_i32_46, %c0_i32_47] : memref<32x32xf32, #tpu.memory_space<vmem>> -> memref<1x32xf32, #tpu.memory_space<vmem>>
    %83 = tpu.memref_slice %arg7[%c11_i32_44] : memref<32x!tpu.dma_semaphore, #tpu.memory_space<semaphore_mem>> -> memref<1x!tpu.dma_semaphore, #tpu.memory_space<semaphore_mem>>
    %84 = tpu.memref_squeeze %83 : memref<1x!tpu.dma_semaphore, #tpu.memory_space<semaphore_mem>> -> memref<!tpu.dma_semaphore, #tpu.memory_space<semaphore_mem>>
    tpu.enqueue_dma source(%81 : memref<1x32xf32, #tpu.memory_space<any>>) target(%82 : memref<1x32xf32, #tpu.memory_space<vmem>>) target_semaphore(%84 : memref<!tpu.dma_semaphore, #tpu.memory_space<semaphore_mem>>)
    %c12_i32 = arith.constant 12 : i32
    %85 = arith.addi %0, %c12_i32 : i32
    %86 = arith.index_cast %85 : i32 to index
    %87 = memref.load %arg1[%86] : memref<32xi32, #tpu.memory_space<smem>>
    %c12_i32_48 = arith.constant 12 : i32
    %c0_i32_49 = arith.constant 0 : i32
    %88 = tpu.memref_slice %arg2[%87, %c0_i32_49] : memref<128x32xf32, #tpu.memory_space<any>> -> memref<1x32xf32, #tpu.memory_space<any>>
    %c12_i32_50 = arith.constant 12 : i32
    %c0_i32_51 = arith.constant 0 : i32
    %89 = tpu.memref_slice %arg6[%c12_i32_50, %c0_i32_51] : memref<32x32xf32, #tpu.memory_space<vmem>> -> memref<1x32xf32, #tpu.memory_space<vmem>>
    %90 = tpu.memref_slice %arg7[%c12_i32_48] : memref<32x!tpu.dma_semaphore, #tpu.memory_space<semaphore_mem>> -> memref<1x!tpu.dma_semaphore, #tpu.memory_space<semaphore_mem>>
    %91 = tpu.memref_squeeze %90 : memref<1x!tpu.dma_semaphore, #tpu.memory_space<semaphore_mem>> -> memref<!tpu.dma_semaphore, #tpu.memory_space<semaphore_mem>>
    tpu.enqueue_dma source(%88 : memref<1x32xf32, #tpu.memory_space<any>>) target(%89 : memref<1x32xf32, #tpu.memory_space<vmem>>) target_semaphore(%91 : memref<!tpu.dma_semaphore, #tpu.memory_space<semaphore_mem>>)
    %c13_i32 = arith.constant 13 : i32
    %92 = arith.addi %0, %c13_i32 : i32
    %93 = arith.index_cast %92 : i32 to index
    %94 = memref.load %arg1[%93] : memref<32xi32, #tpu.memory_space<smem>>
    %c13_i32_52 = arith.constant 13 : i32
    %c0_i32_53 = arith.constant 0 : i32
    %95 = tpu.memref_slice %arg2[%94, %c0_i32_53] : memref<128x32xf32, #tpu.memory_space<any>> -> memref<1x32xf32, #tpu.memory_space<any>>
    %c13_i32_54 = arith.constant 13 : i32
    %c0_i32_55 = arith.constant 0 : i32
    %96 = tpu.memref_slice %arg6[%c13_i32_54, %c0_i32_55] : memref<32x32xf32, #tpu.memory_space<vmem>> -> memref<1x32xf32, #tpu.memory_space<vmem>>
    %97 = tpu.memref_slice %arg7[%c13_i32_52] : memref<32x!tpu.dma_semaphore, #tpu.memory_space<semaphore_mem>> -> memref<1x!tpu.dma_semaphore, #tpu.memory_space<semaphore_mem>>
    %98 = tpu.memref_squeeze %97 : memref<1x!tpu.dma_semaphore, #tpu.memory_space<semaphore_mem>> -> memref<!tpu.dma_semaphore, #tpu.memory_space<semaphore_mem>>
    tpu.enqueue_dma source(%95 : memref<1x32xf32, #tpu.memory_space<any>>) target(%96 : memref<1x32xf32, #tpu.memory_space<vmem>>) target_semaphore(%98 : memref<!tpu.dma_semaphore, #tpu.memory_space<semaphore_mem>>)
    %c14_i32 = arith.constant 14 : i32
    %99 = arith.addi %0, %c14_i32 : i32
    %100 = arith.index_cast %99 : i32 to index
    %101 = memref.load %arg1[%100] : memref<32xi32, #tpu.memory_space<smem>>
    %c14_i32_56 = arith.constant 14 : i32
    %c0_i32_57 = arith.constant 0 : i32
    %102 = tpu.memref_slice %arg2[%101, %c0_i32_57] : memref<128x32xf32, #tpu.memory_space<any>> -> memref<1x32xf32, #tpu.memory_space<any>>
    %c14_i32_58 = arith.constant 14 : i32
    %c0_i32_59 = arith.constant 0 : i32
    %103 = tpu.memref_slice %arg6[%c14_i32_58, %c0_i32_59] : memref<32x32xf32, #tpu.memory_space<vmem>> -> memref<1x32xf32, #tpu.memory_space<vmem>>
    %104 = tpu.memref_slice %arg7[%c14_i32_56] : memref<32x!tpu.dma_semaphore, #tpu.memory_space<semaphore_mem>> -> memref<1x!tpu.dma_semaphore, #tpu.memory_space<semaphore_mem>>
    %105 = tpu.memref_squeeze %104 : memref<1x!tpu.dma_semaphore, #tpu.memory_space<semaphore_mem>> -> memref<!tpu.dma_semaphore, #tpu.memory_space<semaphore_mem>>
    tpu.enqueue_dma source(%102 : memref<1x32xf32, #tpu.memory_space<any>>) target(%103 : memref<1x32xf32, #tpu.memory_space<vmem>>) target_semaphore(%105 : memref<!tpu.dma_semaphore, #tpu.memory_space<semaphore_mem>>)
    %c15_i32 = arith.constant 15 : i32
    %106 = arith.addi %0, %c15_i32 : i32
    %107 = arith.index_cast %106 : i32 to index
    %108 = memref.load %arg1[%107] : memref<32xi32, #tpu.memory_space<smem>>
    %c15_i32_60 = arith.constant 15 : i32
    %c0_i32_61 = arith.constant 0 : i32
    %109 = tpu.memref_slice %arg2[%108, %c0_i32_61] : memref<128x32xf32, #tpu.memory_space<any>> -> memref<1x32xf32, #tpu.memory_space<any>>
    %c15_i32_62 = arith.constant 15 : i32
    %c0_i32_63 = arith.constant 0 : i32
    %110 = tpu.memref_slice %arg6[%c15_i32_62, %c0_i32_63] : memref<32x32xf32, #tpu.memory_space<vmem>> -> memref<1x32xf32, #tpu.memory_space<vmem>>
    %111 = tpu.memref_slice %arg7[%c15_i32_60] : memref<32x!tpu.dma_semaphore, #tpu.memory_space<semaphore_mem>> -> memref<1x!tpu.dma_semaphore, #tpu.memory_space<semaphore_mem>>
    %112 = tpu.memref_squeeze %111 : memref<1x!tpu.dma_semaphore, #tpu.memory_space<semaphore_mem>> -> memref<!tpu.dma_semaphore, #tpu.memory_space<semaphore_mem>>
    tpu.enqueue_dma source(%109 : memref<1x32xf32, #tpu.memory_space<any>>) target(%110 : memref<1x32xf32, #tpu.memory_space<vmem>>) target_semaphore(%112 : memref<!tpu.dma_semaphore, #tpu.memory_space<semaphore_mem>>)
    %c16_i32 = arith.constant 16 : i32
    %113 = arith.addi %0, %c16_i32 : i32
    %114 = arith.index_cast %113 : i32 to index
    %115 = memref.load %arg1[%114] : memref<32xi32, #tpu.memory_space<smem>>
    %c16_i32_64 = arith.constant 16 : i32
    %c0_i32_65 = arith.constant 0 : i32
    %116 = tpu.memref_slice %arg2[%115, %c0_i32_65] : memref<128x32xf32, #tpu.memory_space<any>> -> memref<1x32xf32, #tpu.memory_space<any>>
    %c16_i32_66 = arith.constant 16 : i32
    %c0_i32_67 = arith.constant 0 : i32
    %117 = tpu.memref_slice %arg6[%c16_i32_66, %c0_i32_67] : memref<32x32xf32, #tpu.memory_space<vmem>> -> memref<1x32xf32, #tpu.memory_space<vmem>>
    %118 = tpu.memref_slice %arg7[%c16_i32_64] : memref<32x!tpu.dma_semaphore, #tpu.memory_space<semaphore_mem>> -> memref<1x!tpu.dma_semaphore, #tpu.memory_space<semaphore_mem>>
    %119 = tpu.memref_squeeze %118 : memref<1x!tpu.dma_semaphore, #tpu.memory_space<semaphore_mem>> -> memref<!tpu.dma_semaphore, #tpu.memory_space<semaphore_mem>>
    tpu.enqueue_dma source(%116 : memref<1x32xf32, #tpu.memory_space<any>>) target(%117 : memref<1x32xf32, #tpu.memory_space<vmem>>) target_semaphore(%119 : memref<!tpu.dma_semaphore, #tpu.memory_space<semaphore_mem>>)
    %c17_i32 = arith.constant 17 : i32
    %120 = arith.addi %0, %c17_i32 : i32
    %121 = arith.index_cast %120 : i32 to index
    %122 = memref.load %arg1[%121] : memref<32xi32, #tpu.memory_space<smem>>
    %c17_i32_68 = arith.constant 17 : i32
    %c0_i32_69 = arith.constant 0 : i32
    %123 = tpu.memref_slice %arg2[%122, %c0_i32_69] : memref<128x32xf32, #tpu.memory_space<any>> -> memref<1x32xf32, #tpu.memory_space<any>>
    %c17_i32_70 = arith.constant 17 : i32
    %c0_i32_71 = arith.constant 0 : i32
    %124 = tpu.memref_slice %arg6[%c17_i32_70, %c0_i32_71] : memref<32x32xf32, #tpu.memory_space<vmem>> -> memref<1x32xf32, #tpu.memory_space<vmem>>
    %125 = tpu.memref_slice %arg7[%c17_i32_68] : memref<32x!tpu.dma_semaphore, #tpu.memory_space<semaphore_mem>> -> memref<1x!tpu.dma_semaphore, #tpu.memory_space<semaphore_mem>>
    %126 = tpu.memref_squeeze %125 : memref<1x!tpu.dma_semaphore, #tpu.memory_space<semaphore_mem>> -> memref<!tpu.dma_semaphore, #tpu.memory_space<semaphore_mem>>
    tpu.enqueue_dma source(%123 : memref<1x32xf32, #tpu.memory_space<any>>) target(%124 : memref<1x32xf32, #tpu.memory_space<vmem>>) target_semaphore(%126 : memref<!tpu.dma_semaphore, #tpu.memory_space<semaphore_mem>>)
    %c18_i32 = arith.constant 18 : i32
    %127 = arith.addi %0, %c18_i32 : i32
    %128 = arith.index_cast %127 : i32 to index
    %129 = memref.load %arg1[%128] : memref<32xi32, #tpu.memory_space<smem>>
    %c18_i32_72 = arith.constant 18 : i32
    %c0_i32_73 = arith.constant 0 : i32
    %130 = tpu.memref_slice %arg2[%129, %c0_i32_73] : memref<128x32xf32, #tpu.memory_space<any>> -> memref<1x32xf32, #tpu.memory_space<any>>
    %c18_i32_74 = arith.constant 18 : i32
    %c0_i32_75 = arith.constant 0 : i32
    %131 = tpu.memref_slice %arg6[%c18_i32_74, %c0_i32_75] : memref<32x32xf32, #tpu.memory_space<vmem>> -> memref<1x32xf32, #tpu.memory_space<vmem>>
    %132 = tpu.memref_slice %arg7[%c18_i32_72] : memref<32x!tpu.dma_semaphore, #tpu.memory_space<semaphore_mem>> -> memref<1x!tpu.dma_semaphore, #tpu.memory_space<semaphore_mem>>
    %133 = tpu.memref_squeeze %132 : memref<1x!tpu.dma_semaphore, #tpu.memory_space<semaphore_mem>> -> memref<!tpu.dma_semaphore, #tpu.memory_space<semaphore_mem>>
    tpu.enqueue_dma source(%130 : memref<1x32xf32, #tpu.memory_space<any>>) target(%131 : memref<1x32xf32, #tpu.memory_space<vmem>>) target_semaphore(%133 : memref<!tpu.dma_semaphore, #tpu.memory_space<semaphore_mem>>)
    %c19_i32 = arith.constant 19 : i32
    %134 = arith.addi %0, %c19_i32 : i32
    %135 = arith.index_cast %134 : i32 to index
    %136 = memref.load %arg1[%135] : memref<32xi32, #tpu.memory_space<smem>>
    %c19_i32_76 = arith.constant 19 : i32
    %c0_i32_77 = arith.constant 0 : i32
    %137 = tpu.memref_slice %arg2[%136, %c0_i32_77] : memref<128x32xf32, #tpu.memory_space<any>> -> memref<1x32xf32, #tpu.memory_space<any>>
    %c19_i32_78 = arith.constant 19 : i32
    %c0_i32_79 = arith.constant 0 : i32
    %138 = tpu.memref_slice %arg6[%c19_i32_78, %c0_i32_79] : memref<32x32xf32, #tpu.memory_space<vmem>> -> memref<1x32xf32, #tpu.memory_space<vmem>>
    %139 = tpu.memref_slice %arg7[%c19_i32_76] : memref<32x!tpu.dma_semaphore, #tpu.memory_space<semaphore_mem>> -> memref<1x!tpu.dma_semaphore, #tpu.memory_space<semaphore_mem>>
    %140 = tpu.memref_squeeze %139 : memref<1x!tpu.dma_semaphore, #tpu.memory_space<semaphore_mem>> -> memref<!tpu.dma_semaphore, #tpu.memory_space<semaphore_mem>>
    tpu.enqueue_dma source(%137 : memref<1x32xf32, #tpu.memory_space<any>>) target(%138 : memref<1x32xf32, #tpu.memory_space<vmem>>) target_semaphore(%140 : memref<!tpu.dma_semaphore, #tpu.memory_space<semaphore_mem>>)
    %c20_i32 = arith.constant 20 : i32
    %141 = arith.addi %0, %c20_i32 : i32
    %142 = arith.index_cast %141 : i32 to index
    %143 = memref.load %arg1[%142] : memref<32xi32, #tpu.memory_space<smem>>
    %c20_i32_80 = arith.constant 20 : i32
    %c0_i32_81 = arith.constant 0 : i32
    %144 = tpu.memref_slice %arg2[%143, %c0_i32_81] : memref<128x32xf32, #tpu.memory_space<any>> -> memref<1x32xf32, #tpu.memory_space<any>>
    %c20_i32_82 = arith.constant 20 : i32
    %c0_i32_83 = arith.constant 0 : i32
    %145 = tpu.memref_slice %arg6[%c20_i32_82, %c0_i32_83] : memref<32x32xf32, #tpu.memory_space<vmem>> -> memref<1x32xf32, #tpu.memory_space<vmem>>
    %146 = tpu.memref_slice %arg7[%c20_i32_80] : memref<32x!tpu.dma_semaphore, #tpu.memory_space<semaphore_mem>> -> memref<1x!tpu.dma_semaphore, #tpu.memory_space<semaphore_mem>>
    %147 = tpu.memref_squeeze %146 : memref<1x!tpu.dma_semaphore, #tpu.memory_space<semaphore_mem>> -> memref<!tpu.dma_semaphore, #tpu.memory_space<semaphore_mem>>
    tpu.enqueue_dma source(%144 : memref<1x32xf32, #tpu.memory_space<any>>) target(%145 : memref<1x32xf32, #tpu.memory_space<vmem>>) target_semaphore(%147 : memref<!tpu.dma_semaphore, #tpu.memory_space<semaphore_mem>>)
    %c21_i32 = arith.constant 21 : i32
    %148 = arith.addi %0, %c21_i32 : i32
    %149 = arith.index_cast %148 : i32 to index
    %150 = memref.load %arg1[%149] : memref<32xi32, #tpu.memory_space<smem>>
    %c21_i32_84 = arith.constant 21 : i32
    %c0_i32_85 = arith.constant 0 : i32
    %151 = tpu.memref_slice %arg2[%150, %c0_i32_85] : memref<128x32xf32, #tpu.memory_space<any>> -> memref<1x32xf32, #tpu.memory_space<any>>
    %c21_i32_86 = arith.constant 21 : i32
    %c0_i32_87 = arith.constant 0 : i32
    %152 = tpu.memref_slice %arg6[%c21_i32_86, %c0_i32_87] : memref<32x32xf32, #tpu.memory_space<vmem>> -> memref<1x32xf32, #tpu.memory_space<vmem>>
    %153 = tpu.memref_slice %arg7[%c21_i32_84] : memref<32x!tpu.dma_semaphore, #tpu.memory_space<semaphore_mem>> -> memref<1x!tpu.dma_semaphore, #tpu.memory_space<semaphore_mem>>
    %154 = tpu.memref_squeeze %153 : memref<1x!tpu.dma_semaphore, #tpu.memory_space<semaphore_mem>> -> memref<!tpu.dma_semaphore, #tpu.memory_space<semaphore_mem>>
    tpu.enqueue_dma source(%151 : memref<1x32xf32, #tpu.memory_space<any>>) target(%152 : memref<1x32xf32, #tpu.memory_space<vmem>>) target_semaphore(%154 : memref<!tpu.dma_semaphore, #tpu.memory_space<semaphore_mem>>)
    %c22_i32 = arith.constant 22 : i32
    %155 = arith.addi %0, %c22_i32 : i32
    %156 = arith.index_cast %155 : i32 to index
    %157 = memref.load %arg1[%156] : memref<32xi32, #tpu.memory_space<smem>>
    %c22_i32_88 = arith.constant 22 : i32
    %c0_i32_89 = arith.constant 0 : i32
    %158 = tpu.memref_slice %arg2[%157, %c0_i32_89] : memref<128x32xf32, #tpu.memory_space<any>> -> memref<1x32xf32, #tpu.memory_space<any>>
    %c22_i32_90 = arith.constant 22 : i32
    %c0_i32_91 = arith.constant 0 : i32
    %159 = tpu.memref_slice %arg6[%c22_i32_90, %c0_i32_91] : memref<32x32xf32, #tpu.memory_space<vmem>> -> memref<1x32xf32, #tpu.memory_space<vmem>>
    %160 = tpu.memref_slice %arg7[%c22_i32_88] : memref<32x!tpu.dma_semaphore, #tpu.memory_space<semaphore_mem>> -> memref<1x!tpu.dma_semaphore, #tpu.memory_space<semaphore_mem>>
    %161 = tpu.memref_squeeze %160 : memref<1x!tpu.dma_semaphore, #tpu.memory_space<semaphore_mem>> -> memref<!tpu.dma_semaphore, #tpu.memory_space<semaphore_mem>>
    tpu.enqueue_dma source(%158 : memref<1x32xf32, #tpu.memory_space<any>>) target(%159 : memref<1x32xf32, #tpu.memory_space<vmem>>) target_semaphore(%161 : memref<!tpu.dma_semaphore, #tpu.memory_space<semaphore_mem>>)
    %c23_i32 = arith.constant 23 : i32
    %162 = arith.addi %0, %c23_i32 : i32
    %163 = arith.index_cast %162 : i32 to index
    %164 = memref.load %arg1[%163] : memref<32xi32, #tpu.memory_space<smem>>
    %c23_i32_92 = arith.constant 23 : i32
    %c0_i32_93 = arith.constant 0 : i32
    %165 = tpu.memref_slice %arg2[%164, %c0_i32_93] : memref<128x32xf32, #tpu.memory_space<any>> -> memref<1x32xf32, #tpu.memory_space<any>>
    %c23_i32_94 = arith.constant 23 : i32
    %c0_i32_95 = arith.constant 0 : i32
    %166 = tpu.memref_slice %arg6[%c23_i32_94, %c0_i32_95] : memref<32x32xf32, #tpu.memory_space<vmem>> -> memref<1x32xf32, #tpu.memory_space<vmem>>
    %167 = tpu.memref_slice %arg7[%c23_i32_92] : memref<32x!tpu.dma_semaphore, #tpu.memory_space<semaphore_mem>> -> memref<1x!tpu.dma_semaphore, #tpu.memory_space<semaphore_mem>>
    %168 = tpu.memref_squeeze %167 : memref<1x!tpu.dma_semaphore, #tpu.memory_space<semaphore_mem>> -> memref<!tpu.dma_semaphore, #tpu.memory_space<semaphore_mem>>
    tpu.enqueue_dma source(%165 : memref<1x32xf32, #tpu.memory_space<any>>) target(%166 : memref<1x32xf32, #tpu.memory_space<vmem>>) target_semaphore(%168 : memref<!tpu.dma_semaphore, #tpu.memory_space<semaphore_mem>>)
    %c24_i32 = arith.constant 24 : i32
    %169 = arith.addi %0, %c24_i32 : i32
    %170 = arith.index_cast %169 : i32 to index
    %171 = memref.load %arg1[%170] : memref<32xi32, #tpu.memory_space<smem>>
    %c24_i32_96 = arith.constant 24 : i32
    %c0_i32_97 = arith.constant 0 : i32
    %172 = tpu.memref_slice %arg2[%171, %c0_i32_97] : memref<128x32xf32, #tpu.memory_space<any>> -> memref<1x32xf32, #tpu.memory_space<any>>
    %c24_i32_98 = arith.constant 24 : i32
    %c0_i32_99 = arith.constant 0 : i32
    %173 = tpu.memref_slice %arg6[%c24_i32_98, %c0_i32_99] : memref<32x32xf32, #tpu.memory_space<vmem>> -> memref<1x32xf32, #tpu.memory_space<vmem>>
    %174 = tpu.memref_slice %arg7[%c24_i32_96] : memref<32x!tpu.dma_semaphore, #tpu.memory_space<semaphore_mem>> -> memref<1x!tpu.dma_semaphore, #tpu.memory_space<semaphore_mem>>
    %175 = tpu.memref_squeeze %174 : memref<1x!tpu.dma_semaphore, #tpu.memory_space<semaphore_mem>> -> memref<!tpu.dma_semaphore, #tpu.memory_space<semaphore_mem>>
    tpu.enqueue_dma source(%172 : memref<1x32xf32, #tpu.memory_space<any>>) target(%173 : memref<1x32xf32, #tpu.memory_space<vmem>>) target_semaphore(%175 : memref<!tpu.dma_semaphore, #tpu.memory_space<semaphore_mem>>)
    %c25_i32 = arith.constant 25 : i32
    %176 = arith.addi %0, %c25_i32 : i32
    %177 = arith.index_cast %176 : i32 to index
    %178 = memref.load %arg1[%177] : memref<32xi32, #tpu.memory_space<smem>>
    %c25_i32_100 = arith.constant 25 : i32
    %c0_i32_101 = arith.constant 0 : i32
    %179 = tpu.memref_slice %arg2[%178, %c0_i32_101] : memref<128x32xf32, #tpu.memory_space<any>> -> memref<1x32xf32, #tpu.memory_space<any>>
    %c25_i32_102 = arith.constant 25 : i32
    %c0_i32_103 = arith.constant 0 : i32
    %180 = tpu.memref_slice %arg6[%c25_i32_102, %c0_i32_103] : memref<32x32xf32, #tpu.memory_space<vmem>> -> memref<1x32xf32, #tpu.memory_space<vmem>>
    %181 = tpu.memref_slice %arg7[%c25_i32_100] : memref<32x!tpu.dma_semaphore, #tpu.memory_space<semaphore_mem>> -> memref<1x!tpu.dma_semaphore, #tpu.memory_space<semaphore_mem>>
    %182 = tpu.memref_squeeze %181 : memref<1x!tpu.dma_semaphore, #tpu.memory_space<semaphore_mem>> -> memref<!tpu.dma_semaphore, #tpu.memory_space<semaphore_mem>>
    tpu.enqueue_dma source(%179 : memref<1x32xf32, #tpu.memory_space<any>>) target(%180 : memref<1x32xf32, #tpu.memory_space<vmem>>) target_semaphore(%182 : memref<!tpu.dma_semaphore, #tpu.memory_space<semaphore_mem>>)
    %c26_i32 = arith.constant 26 : i32
    %183 = arith.addi %0, %c26_i32 : i32
    %184 = arith.index_cast %183 : i32 to index
    %185 = memref.load %arg1[%184] : memref<32xi32, #tpu.memory_space<smem>>
    %c26_i32_104 = arith.constant 26 : i32
    %c0_i32_105 = arith.constant 0 : i32
    %186 = tpu.memref_slice %arg2[%185, %c0_i32_105] : memref<128x32xf32, #tpu.memory_space<any>> -> memref<1x32xf32, #tpu.memory_space<any>>
    %c26_i32_106 = arith.constant 26 : i32
    %c0_i32_107 = arith.constant 0 : i32
    %187 = tpu.memref_slice %arg6[%c26_i32_106, %c0_i32_107] : memref<32x32xf32, #tpu.memory_space<vmem>> -> memref<1x32xf32, #tpu.memory_space<vmem>>
    %188 = tpu.memref_slice %arg7[%c26_i32_104] : memref<32x!tpu.dma_semaphore, #tpu.memory_space<semaphore_mem>> -> memref<1x!tpu.dma_semaphore, #tpu.memory_space<semaphore_mem>>
    %189 = tpu.memref_squeeze %188 : memref<1x!tpu.dma_semaphore, #tpu.memory_space<semaphore_mem>> -> memref<!tpu.dma_semaphore, #tpu.memory_space<semaphore_mem>>
    tpu.enqueue_dma source(%186 : memref<1x32xf32, #tpu.memory_space<any>>) target(%187 : memref<1x32xf32, #tpu.memory_space<vmem>>) target_semaphore(%189 : memref<!tpu.dma_semaphore, #tpu.memory_space<semaphore_mem>>)
    %c27_i32 = arith.constant 27 : i32
    %190 = arith.addi %0, %c27_i32 : i32
    %191 = arith.index_cast %190 : i32 to index
    %192 = memref.load %arg1[%191] : memref<32xi32, #tpu.memory_space<smem>>
    %c27_i32_108 = arith.constant 27 : i32
    %c0_i32_109 = arith.constant 0 : i32
    %193 = tpu.memref_slice %arg2[%192, %c0_i32_109] : memref<128x32xf32, #tpu.memory_space<any>> -> memref<1x32xf32, #tpu.memory_space<any>>
    %c27_i32_110 = arith.constant 27 : i32
    %c0_i32_111 = arith.constant 0 : i32
    %194 = tpu.memref_slice %arg6[%c27_i32_110, %c0_i32_111] : memref<32x32xf32, #tpu.memory_space<vmem>> -> memref<1x32xf32, #tpu.memory_space<vmem>>
    %195 = tpu.memref_slice %arg7[%c27_i32_108] : memref<32x!tpu.dma_semaphore, #tpu.memory_space<semaphore_mem>> -> memref<1x!tpu.dma_semaphore, #tpu.memory_space<semaphore_mem>>
    %196 = tpu.memref_squeeze %195 : memref<1x!tpu.dma_semaphore, #tpu.memory_space<semaphore_mem>> -> memref<!tpu.dma_semaphore, #tpu.memory_space<semaphore_mem>>
    tpu.enqueue_dma source(%193 : memref<1x32xf32, #tpu.memory_space<any>>) target(%194 : memref<1x32xf32, #tpu.memory_space<vmem>>) target_semaphore(%196 : memref<!tpu.dma_semaphore, #tpu.memory_space<semaphore_mem>>)
    %c28_i32 = arith.constant 28 : i32
    %197 = arith.addi %0, %c28_i32 : i32
    %198 = arith.index_cast %197 : i32 to index
    %199 = memref.load %arg1[%198] : memref<32xi32, #tpu.memory_space<smem>>
    %c28_i32_112 = arith.constant 28 : i32
    %c0_i32_113 = arith.constant 0 : i32
    %200 = tpu.memref_slice %arg2[%199, %c0_i32_113] : memref<128x32xf32, #tpu.memory_space<any>> -> memref<1x32xf32, #tpu.memory_space<any>>
    %c28_i32_114 = arith.constant 28 : i32
    %c0_i32_115 = arith.constant 0 : i32
    %201 = tpu.memref_slice %arg6[%c28_i32_114, %c0_i32_115] : memref<32x32xf32, #tpu.memory_space<vmem>> -> memref<1x32xf32, #tpu.memory_space<vmem>>
    %202 = tpu.memref_slice %arg7[%c28_i32_112] : memref<32x!tpu.dma_semaphore, #tpu.memory_space<semaphore_mem>> -> memref<1x!tpu.dma_semaphore, #tpu.memory_space<semaphore_mem>>
    %203 = tpu.memref_squeeze %202 : memref<1x!tpu.dma_semaphore, #tpu.memory_space<semaphore_mem>> -> memref<!tpu.dma_semaphore, #tpu.memory_space<semaphore_mem>>
    tpu.enqueue_dma source(%200 : memref<1x32xf32, #tpu.memory_space<any>>) target(%201 : memref<1x32xf32, #tpu.memory_space<vmem>>) target_semaphore(%203 : memref<!tpu.dma_semaphore, #tpu.memory_space<semaphore_mem>>)
    %c29_i32 = arith.constant 29 : i32
    %204 = arith.addi %0, %c29_i32 : i32
    %205 = arith.index_cast %204 : i32 to index
    %206 = memref.load %arg1[%205] : memref<32xi32, #tpu.memory_space<smem>>
    %c29_i32_116 = arith.constant 29 : i32
    %c0_i32_117 = arith.constant 0 : i32
    %207 = tpu.memref_slice %arg2[%206, %c0_i32_117] : memref<128x32xf32, #tpu.memory_space<any>> -> memref<1x32xf32, #tpu.memory_space<any>>
    %c29_i32_118 = arith.constant 29 : i32
    %c0_i32_119 = arith.constant 0 : i32
    %208 = tpu.memref_slice %arg6[%c29_i32_118, %c0_i32_119] : memref<32x32xf32, #tpu.memory_space<vmem>> -> memref<1x32xf32, #tpu.memory_space<vmem>>
    %209 = tpu.memref_slice %arg7[%c29_i32_116] : memref<32x!tpu.dma_semaphore, #tpu.memory_space<semaphore_mem>> -> memref<1x!tpu.dma_semaphore, #tpu.memory_space<semaphore_mem>>
    %210 = tpu.memref_squeeze %209 : memref<1x!tpu.dma_semaphore, #tpu.memory_space<semaphore_mem>> -> memref<!tpu.dma_semaphore, #tpu.memory_space<semaphore_mem>>
    tpu.enqueue_dma source(%207 : memref<1x32xf32, #tpu.memory_space<any>>) target(%208 : memref<1x32xf32, #tpu.memory_space<vmem>>) target_semaphore(%210 : memref<!tpu.dma_semaphore, #tpu.memory_space<semaphore_mem>>)
    %c30_i32 = arith.constant 30 : i32
    %211 = arith.addi %0, %c30_i32 : i32
    %212 = arith.index_cast %211 : i32 to index
    %213 = memref.load %arg1[%212] : memref<32xi32, #tpu.memory_space<smem>>
    %c30_i32_120 = arith.constant 30 : i32
    %c0_i32_121 = arith.constant 0 : i32
    %214 = tpu.memref_slice %arg2[%213, %c0_i32_121] : memref<128x32xf32, #tpu.memory_space<any>> -> memref<1x32xf32, #tpu.memory_space<any>>
    %c30_i32_122 = arith.constant 30 : i32
    %c0_i32_123 = arith.constant 0 : i32
    %215 = tpu.memref_slice %arg6[%c30_i32_122, %c0_i32_123] : memref<32x32xf32, #tpu.memory_space<vmem>> -> memref<1x32xf32, #tpu.memory_space<vmem>>
    %216 = tpu.memref_slice %arg7[%c30_i32_120] : memref<32x!tpu.dma_semaphore, #tpu.memory_space<semaphore_mem>> -> memref<1x!tpu.dma_semaphore, #tpu.memory_space<semaphore_mem>>
    %217 = tpu.memref_squeeze %216 : memref<1x!tpu.dma_semaphore, #tpu.memory_space<semaphore_mem>> -> memref<!tpu.dma_semaphore, #tpu.memory_space<semaphore_mem>>
    tpu.enqueue_dma source(%214 : memref<1x32xf32, #tpu.memory_space<any>>) target(%215 : memref<1x32xf32, #tpu.memory_space<vmem>>) target_semaphore(%217 : memref<!tpu.dma_semaphore, #tpu.memory_space<semaphore_mem>>)
    %c31_i32 = arith.constant 31 : i32
    %218 = arith.addi %0, %c31_i32 : i32
    %219 = arith.index_cast %218 : i32 to index
    %220 = memref.load %arg1[%219] : memref<32xi32, #tpu.memory_space<smem>>
    %c31_i32_124 = arith.constant 31 : i32
    %c0_i32_125 = arith.constant 0 : i32
    %221 = tpu.memref_slice %arg2[%220, %c0_i32_125] : memref<128x32xf32, #tpu.memory_space<any>> -> memref<1x32xf32, #tpu.memory_space<any>>
    %c31_i32_126 = arith.constant 31 : i32
    %c0_i32_127 = arith.constant 0 : i32
    %222 = tpu.memref_slice %arg6[%c31_i32_126, %c0_i32_127] : memref<32x32xf32, #tpu.memory_space<vmem>> -> memref<1x32xf32, #tpu.memory_space<vmem>>
    %223 = tpu.memref_slice %arg7[%c31_i32_124] : memref<32x!tpu.dma_semaphore, #tpu.memory_space<semaphore_mem>> -> memref<1x!tpu.dma_semaphore, #tpu.memory_space<semaphore_mem>>
    %224 = tpu.memref_squeeze %223 : memref<1x!tpu.dma_semaphore, #tpu.memory_space<semaphore_mem>> -> memref<!tpu.dma_semaphore, #tpu.memory_space<semaphore_mem>>
    tpu.enqueue_dma source(%221 : memref<1x32xf32, #tpu.memory_space<any>>) target(%222 : memref<1x32xf32, #tpu.memory_space<vmem>>) target_semaphore(%224 : memref<!tpu.dma_semaphore, #tpu.memory_space<semaphore_mem>>)
    %c0_i32_128 = arith.constant 0 : i32
    %c0_i32_129 = arith.constant 0 : i32
    %225 = tpu.memref_slice %arg2[%3, %c0_i32_129] : memref<128x32xf32, #tpu.memory_space<any>> -> memref<1x32xf32, #tpu.memory_space<any>>
    %c0_i32_130 = arith.constant 0 : i32
    %c0_i32_131 = arith.constant 0 : i32
    %226 = tpu.memref_slice %arg6[%c0_i32_130, %c0_i32_131] : memref<32x32xf32, #tpu.memory_space<vmem>> -> memref<1x32xf32, #tpu.memory_space<vmem>>
    %227 = tpu.memref_slice %arg7[%c0_i32_128] : memref<32x!tpu.dma_semaphore, #tpu.memory_space<semaphore_mem>> -> memref<1x!tpu.dma_semaphore, #tpu.memory_space<semaphore_mem>>
    %228 = tpu.memref_squeeze %227 : memref<1x!tpu.dma_semaphore, #tpu.memory_space<semaphore_mem>> -> memref<!tpu.dma_semaphore, #tpu.memory_space<semaphore_mem>>
    tpu.wait_dma2 semaphore(%228 : memref<!tpu.dma_semaphore, #tpu.memory_space<semaphore_mem>>) src(%225 : memref<1x32xf32, #tpu.memory_space<any>>) dst(%226 : memref<1x32xf32, #tpu.memory_space<vmem>>)
    %c1_i32_132 = arith.constant 1 : i32
    %c0_i32_133 = arith.constant 0 : i32
    %229 = tpu.memref_slice %arg2[%10, %c0_i32_133] : memref<128x32xf32, #tpu.memory_space<any>> -> memref<1x32xf32, #tpu.memory_space<any>>
    %c1_i32_134 = arith.constant 1 : i32
    %c0_i32_135 = arith.constant 0 : i32
    %230 = tpu.memref_slice %arg6[%c1_i32_134, %c0_i32_135] : memref<32x32xf32, #tpu.memory_space<vmem>> -> memref<1x32xf32, #tpu.memory_space<vmem>>
    %231 = tpu.memref_slice %arg7[%c1_i32_132] : memref<32x!tpu.dma_semaphore, #tpu.memory_space<semaphore_mem>> -> memref<1x!tpu.dma_semaphore, #tpu.memory_space<semaphore_mem>>
    %232 = tpu.memref_squeeze %231 : memref<1x!tpu.dma_semaphore, #tpu.memory_space<semaphore_mem>> -> memref<!tpu.dma_semaphore, #tpu.memory_space<semaphore_mem>>
    tpu.wait_dma2 semaphore(%232 : memref<!tpu.dma_semaphore, #tpu.memory_space<semaphore_mem>>) src(%229 : memref<1x32xf32, #tpu.memory_space<any>>) dst(%230 : memref<1x32xf32, #tpu.memory_space<vmem>>)
    %c2_i32_136 = arith.constant 2 : i32
    %c0_i32_137 = arith.constant 0 : i32
    %233 = tpu.memref_slice %arg2[%17, %c0_i32_137] : memref<128x32xf32, #tpu.memory_space<any>> -> memref<1x32xf32, #tpu.memory_space<any>>
    %c2_i32_138 = arith.constant 2 : i32
    %c0_i32_139 = arith.constant 0 : i32
    %234 = tpu.memref_slice %arg6[%c2_i32_138, %c0_i32_139] : memref<32x32xf32, #tpu.memory_space<vmem>> -> memref<1x32xf32, #tpu.memory_space<vmem>>
    %235 = tpu.memref_slice %arg7[%c2_i32_136] : memref<32x!tpu.dma_semaphore, #tpu.memory_space<semaphore_mem>> -> memref<1x!tpu.dma_semaphore, #tpu.memory_space<semaphore_mem>>
    %236 = tpu.memref_squeeze %235 : memref<1x!tpu.dma_semaphore, #tpu.memory_space<semaphore_mem>> -> memref<!tpu.dma_semaphore, #tpu.memory_space<semaphore_mem>>
    tpu.wait_dma2 semaphore(%236 : memref<!tpu.dma_semaphore, #tpu.memory_space<semaphore_mem>>) src(%233 : memref<1x32xf32, #tpu.memory_space<any>>) dst(%234 : memref<1x32xf32, #tpu.memory_space<vmem>>)
    %c3_i32_140 = arith.constant 3 : i32
    %c0_i32_141 = arith.constant 0 : i32
    %237 = tpu.memref_slice %arg2[%24, %c0_i32_141] : memref<128x32xf32, #tpu.memory_space<any>> -> memref<1x32xf32, #tpu.memory_space<any>>
    %c3_i32_142 = arith.constant 3 : i32
    %c0_i32_143 = arith.constant 0 : i32
    %238 = tpu.memref_slice %arg6[%c3_i32_142, %c0_i32_143] : memref<32x32xf32, #tpu.memory_space<vmem>> -> memref<1x32xf32, #tpu.memory_space<vmem>>
    %239 = tpu.memref_slice %arg7[%c3_i32_140] : memref<32x!tpu.dma_semaphore, #tpu.memory_space<semaphore_mem>> -> memref<1x!tpu.dma_semaphore, #tpu.memory_space<semaphore_mem>>
    %240 = tpu.memref_squeeze %239 : memref<1x!tpu.dma_semaphore, #tpu.memory_space<semaphore_mem>> -> memref<!tpu.dma_semaphore, #tpu.memory_space<semaphore_mem>>
    tpu.wait_dma2 semaphore(%240 : memref<!tpu.dma_semaphore, #tpu.memory_space<semaphore_mem>>) src(%237 : memref<1x32xf32, #tpu.memory_space<any>>) dst(%238 : memref<1x32xf32, #tpu.memory_space<vmem>>)
    %c4_i32_144 = arith.constant 4 : i32
    %c0_i32_145 = arith.constant 0 : i32
    %241 = tpu.memref_slice %arg2[%31, %c0_i32_145] : memref<128x32xf32, #tpu.memory_space<any>> -> memref<1x32xf32, #tpu.memory_space<any>>
    %c4_i32_146 = arith.constant 4 : i32
    %c0_i32_147 = arith.constant 0 : i32
    %242 = tpu.memref_slice %arg6[%c4_i32_146, %c0_i32_147] : memref<32x32xf32, #tpu.memory_space<vmem>> -> memref<1x32xf32, #tpu.memory_space<vmem>>
    %243 = tpu.memref_slice %arg7[%c4_i32_144] : memref<32x!tpu.dma_semaphore, #tpu.memory_space<semaphore_mem>> -> memref<1x!tpu.dma_semaphore, #tpu.memory_space<semaphore_mem>>
    %244 = tpu.memref_squeeze %243 : memref<1x!tpu.dma_semaphore, #tpu.memory_space<semaphore_mem>> -> memref<!tpu.dma_semaphore, #tpu.memory_space<semaphore_mem>>
    tpu.wait_dma2 semaphore(%244 : memref<!tpu.dma_semaphore, #tpu.memory_space<semaphore_mem>>) src(%241 : memref<1x32xf32, #tpu.memory_space<any>>) dst(%242 : memref<1x32xf32, #tpu.memory_space<vmem>>)
    %c5_i32_148 = arith.constant 5 : i32
    %c0_i32_149 = arith.constant 0 : i32
    %245 = tpu.memref_slice %arg2[%38, %c0_i32_149] : memref<128x32xf32, #tpu.memory_space<any>> -> memref<1x32xf32, #tpu.memory_space<any>>
    %c5_i32_150 = arith.constant 5 : i32
    %c0_i32_151 = arith.constant 0 : i32
    %246 = tpu.memref_slice %arg6[%c5_i32_150, %c0_i32_151] : memref<32x32xf32, #tpu.memory_space<vmem>> -> memref<1x32xf32, #tpu.memory_space<vmem>>
    %247 = tpu.memref_slice %arg7[%c5_i32_148] : memref<32x!tpu.dma_semaphore, #tpu.memory_space<semaphore_mem>> -> memref<1x!tpu.dma_semaphore, #tpu.memory_space<semaphore_mem>>
    %248 = tpu.memref_squeeze %247 : memref<1x!tpu.dma_semaphore, #tpu.memory_space<semaphore_mem>> -> memref<!tpu.dma_semaphore, #tpu.memory_space<semaphore_mem>>
    tpu.wait_dma2 semaphore(%248 : memref<!tpu.dma_semaphore, #tpu.memory_space<semaphore_mem>>) src(%245 : memref<1x32xf32, #tpu.memory_space<any>>) dst(%246 : memref<1x32xf32, #tpu.memory_space<vmem>>)
    %c6_i32_152 = arith.constant 6 : i32
    %c0_i32_153 = arith.constant 0 : i32
    %249 = tpu.memref_slice %arg2[%45, %c0_i32_153] : memref<128x32xf32, #tpu.memory_space<any>> -> memref<1x32xf32, #tpu.memory_space<any>>
    %c6_i32_154 = arith.constant 6 : i32
    %c0_i32_155 = arith.constant 0 : i32
    %250 = tpu.memref_slice %arg6[%c6_i32_154, %c0_i32_155] : memref<32x32xf32, #tpu.memory_space<vmem>> -> memref<1x32xf32, #tpu.memory_space<vmem>>
    %251 = tpu.memref_slice %arg7[%c6_i32_152] : memref<32x!tpu.dma_semaphore, #tpu.memory_space<semaphore_mem>> -> memref<1x!tpu.dma_semaphore, #tpu.memory_space<semaphore_mem>>
    %252 = tpu.memref_squeeze %251 : memref<1x!tpu.dma_semaphore, #tpu.memory_space<semaphore_mem>> -> memref<!tpu.dma_semaphore, #tpu.memory_space<semaphore_mem>>
    tpu.wait_dma2 semaphore(%252 : memref<!tpu.dma_semaphore, #tpu.memory_space<semaphore_mem>>) src(%249 : memref<1x32xf32, #tpu.memory_space<any>>) dst(%250 : memref<1x32xf32, #tpu.memory_space<vmem>>)
    %c7_i32_156 = arith.constant 7 : i32
    %c0_i32_157 = arith.constant 0 : i32
    %253 = tpu.memref_slice %arg2[%52, %c0_i32_157] : memref<128x32xf32, #tpu.memory_space<any>> -> memref<1x32xf32, #tpu.memory_space<any>>
    %c7_i32_158 = arith.constant 7 : i32
    %c0_i32_159 = arith.constant 0 : i32
    %254 = tpu.memref_slice %arg6[%c7_i32_158, %c0_i32_159] : memref<32x32xf32, #tpu.memory_space<vmem>> -> memref<1x32xf32, #tpu.memory_space<vmem>>
    %255 = tpu.memref_slice %arg7[%c7_i32_156] : memref<32x!tpu.dma_semaphore, #tpu.memory_space<semaphore_mem>> -> memref<1x!tpu.dma_semaphore, #tpu.memory_space<semaphore_mem>>
    %256 = tpu.memref_squeeze %255 : memref<1x!tpu.dma_semaphore, #tpu.memory_space<semaphore_mem>> -> memref<!tpu.dma_semaphore, #tpu.memory_space<semaphore_mem>>
    tpu.wait_dma2 semaphore(%256 : memref<!tpu.dma_semaphore, #tpu.memory_space<semaphore_mem>>) src(%253 : memref<1x32xf32, #tpu.memory_space<any>>) dst(%254 : memref<1x32xf32, #tpu.memory_space<vmem>>)
    %c8_i32_160 = arith.constant 8 : i32
    %c0_i32_161 = arith.constant 0 : i32
    %257 = tpu.memref_slice %arg2[%59, %c0_i32_161] : memref<128x32xf32, #tpu.memory_space<any>> -> memref<1x32xf32, #tpu.memory_space<any>>
    %c8_i32_162 = arith.constant 8 : i32
    %c0_i32_163 = arith.constant 0 : i32
    %258 = tpu.memref_slice %arg6[%c8_i32_162, %c0_i32_163] : memref<32x32xf32, #tpu.memory_space<vmem>> -> memref<1x32xf32, #tpu.memory_space<vmem>>
    %259 = tpu.memref_slice %arg7[%c8_i32_160] : memref<32x!tpu.dma_semaphore, #tpu.memory_space<semaphore_mem>> -> memref<1x!tpu.dma_semaphore, #tpu.memory_space<semaphore_mem>>
    %260 = tpu.memref_squeeze %259 : memref<1x!tpu.dma_semaphore, #tpu.memory_space<semaphore_mem>> -> memref<!tpu.dma_semaphore, #tpu.memory_space<semaphore_mem>>
    tpu.wait_dma2 semaphore(%260 : memref<!tpu.dma_semaphore, #tpu.memory_space<semaphore_mem>>) src(%257 : memref<1x32xf32, #tpu.memory_space<any>>) dst(%258 : memref<1x32xf32, #tpu.memory_space<vmem>>)
    %c9_i32_164 = arith.constant 9 : i32
    %c0_i32_165 = arith.constant 0 : i32
    %261 = tpu.memref_slice %arg2[%66, %c0_i32_165] : memref<128x32xf32, #tpu.memory_space<any>> -> memref<1x32xf32, #tpu.memory_space<any>>
    %c9_i32_166 = arith.constant 9 : i32
    %c0_i32_167 = arith.constant 0 : i32
    %262 = tpu.memref_slice %arg6[%c9_i32_166, %c0_i32_167] : memref<32x32xf32, #tpu.memory_space<vmem>> -> memref<1x32xf32, #tpu.memory_space<vmem>>
    %263 = tpu.memref_slice %arg7[%c9_i32_164] : memref<32x!tpu.dma_semaphore, #tpu.memory_space<semaphore_mem>> -> memref<1x!tpu.dma_semaphore, #tpu.memory_space<semaphore_mem>>
    %264 = tpu.memref_squeeze %263 : memref<1x!tpu.dma_semaphore, #tpu.memory_space<semaphore_mem>> -> memref<!tpu.dma_semaphore, #tpu.memory_space<semaphore_mem>>
    tpu.wait_dma2 semaphore(%264 : memref<!tpu.dma_semaphore, #tpu.memory_space<semaphore_mem>>) src(%261 : memref<1x32xf32, #tpu.memory_space<any>>) dst(%262 : memref<1x32xf32, #tpu.memory_space<vmem>>)
    %c10_i32_168 = arith.constant 10 : i32
    %c0_i32_169 = arith.constant 0 : i32
    %265 = tpu.memref_slice %arg2[%73, %c0_i32_169] : memref<128x32xf32, #tpu.memory_space<any>> -> memref<1x32xf32, #tpu.memory_space<any>>
    %c10_i32_170 = arith.constant 10 : i32
    %c0_i32_171 = arith.constant 0 : i32
    %266 = tpu.memref_slice %arg6[%c10_i32_170, %c0_i32_171] : memref<32x32xf32, #tpu.memory_space<vmem>> -> memref<1x32xf32, #tpu.memory_space<vmem>>
    %267 = tpu.memref_slice %arg7[%c10_i32_168] : memref<32x!tpu.dma_semaphore, #tpu.memory_space<semaphore_mem>> -> memref<1x!tpu.dma_semaphore, #tpu.memory_space<semaphore_mem>>
    %268 = tpu.memref_squeeze %267 : memref<1x!tpu.dma_semaphore, #tpu.memory_space<semaphore_mem>> -> memref<!tpu.dma_semaphore, #tpu.memory_space<semaphore_mem>>
    tpu.wait_dma2 semaphore(%268 : memref<!tpu.dma_semaphore, #tpu.memory_space<semaphore_mem>>) src(%265 : memref<1x32xf32, #tpu.memory_space<any>>) dst(%266 : memref<1x32xf32, #tpu.memory_space<vmem>>)
    %c11_i32_172 = arith.constant 11 : i32
    %c0_i32_173 = arith.constant 0 : i32
    %269 = tpu.memref_slice %arg2[%80, %c0_i32_173] : memref<128x32xf32, #tpu.memory_space<any>> -> memref<1x32xf32, #tpu.memory_space<any>>
    %c11_i32_174 = arith.constant 11 : i32
    %c0_i32_175 = arith.constant 0 : i32
    %270 = tpu.memref_slice %arg6[%c11_i32_174, %c0_i32_175] : memref<32x32xf32, #tpu.memory_space<vmem>> -> memref<1x32xf32, #tpu.memory_space<vmem>>
    %271 = tpu.memref_slice %arg7[%c11_i32_172] : memref<32x!tpu.dma_semaphore, #tpu.memory_space<semaphore_mem>> -> memref<1x!tpu.dma_semaphore, #tpu.memory_space<semaphore_mem>>
    %272 = tpu.memref_squeeze %271 : memref<1x!tpu.dma_semaphore, #tpu.memory_space<semaphore_mem>> -> memref<!tpu.dma_semaphore, #tpu.memory_space<semaphore_mem>>
    tpu.wait_dma2 semaphore(%272 : memref<!tpu.dma_semaphore, #tpu.memory_space<semaphore_mem>>) src(%269 : memref<1x32xf32, #tpu.memory_space<any>>) dst(%270 : memref<1x32xf32, #tpu.memory_space<vmem>>)
    %c12_i32_176 = arith.constant 12 : i32
    %c0_i32_177 = arith.constant 0 : i32
    %273 = tpu.memref_slice %arg2[%87, %c0_i32_177] : memref<128x32xf32, #tpu.memory_space<any>> -> memref<1x32xf32, #tpu.memory_space<any>>
    %c12_i32_178 = arith.constant 12 : i32
    %c0_i32_179 = arith.constant 0 : i32
    %274 = tpu.memref_slice %arg6[%c12_i32_178, %c0_i32_179] : memref<32x32xf32, #tpu.memory_space<vmem>> -> memref<1x32xf32, #tpu.memory_space<vmem>>
    %275 = tpu.memref_slice %arg7[%c12_i32_176] : memref<32x!tpu.dma_semaphore, #tpu.memory_space<semaphore_mem>> -> memref<1x!tpu.dma_semaphore, #tpu.memory_space<semaphore_mem>>
    %276 = tpu.memref_squeeze %275 : memref<1x!tpu.dma_semaphore, #tpu.memory_space<semaphore_mem>> -> memref<!tpu.dma_semaphore, #tpu.memory_space<semaphore_mem>>
    tpu.wait_dma2 semaphore(%276 : memref<!tpu.dma_semaphore, #tpu.memory_space<semaphore_mem>>) src(%273 : memref<1x32xf32, #tpu.memory_space<any>>) dst(%274 : memref<1x32xf32, #tpu.memory_space<vmem>>)
    %c13_i32_180 = arith.constant 13 : i32
    %c0_i32_181 = arith.constant 0 : i32
    %277 = tpu.memref_slice %arg2[%94, %c0_i32_181] : memref<128x32xf32, #tpu.memory_space<any>> -> memref<1x32xf32, #tpu.memory_space<any>>
    %c13_i32_182 = arith.constant 13 : i32
    %c0_i32_183 = arith.constant 0 : i32
    %278 = tpu.memref_slice %arg6[%c13_i32_182, %c0_i32_183] : memref<32x32xf32, #tpu.memory_space<vmem>> -> memref<1x32xf32, #tpu.memory_space<vmem>>
    %279 = tpu.memref_slice %arg7[%c13_i32_180] : memref<32x!tpu.dma_semaphore, #tpu.memory_space<semaphore_mem>> -> memref<1x!tpu.dma_semaphore, #tpu.memory_space<semaphore_mem>>
    %280 = tpu.memref_squeeze %279 : memref<1x!tpu.dma_semaphore, #tpu.memory_space<semaphore_mem>> -> memref<!tpu.dma_semaphore, #tpu.memory_space<semaphore_mem>>
    tpu.wait_dma2 semaphore(%280 : memref<!tpu.dma_semaphore, #tpu.memory_space<semaphore_mem>>) src(%277 : memref<1x32xf32, #tpu.memory_space<any>>) dst(%278 : memref<1x32xf32, #tpu.memory_space<vmem>>)
    %c14_i32_184 = arith.constant 14 : i32
    %c0_i32_185 = arith.constant 0 : i32
    %281 = tpu.memref_slice %arg2[%101, %c0_i32_185] : memref<128x32xf32, #tpu.memory_space<any>> -> memref<1x32xf32, #tpu.memory_space<any>>
    %c14_i32_186 = arith.constant 14 : i32
    %c0_i32_187 = arith.constant 0 : i32
    %282 = tpu.memref_slice %arg6[%c14_i32_186, %c0_i32_187] : memref<32x32xf32, #tpu.memory_space<vmem>> -> memref<1x32xf32, #tpu.memory_space<vmem>>
    %283 = tpu.memref_slice %arg7[%c14_i32_184] : memref<32x!tpu.dma_semaphore, #tpu.memory_space<semaphore_mem>> -> memref<1x!tpu.dma_semaphore, #tpu.memory_space<semaphore_mem>>
    %284 = tpu.memref_squeeze %283 : memref<1x!tpu.dma_semaphore, #tpu.memory_space<semaphore_mem>> -> memref<!tpu.dma_semaphore, #tpu.memory_space<semaphore_mem>>
    tpu.wait_dma2 semaphore(%284 : memref<!tpu.dma_semaphore, #tpu.memory_space<semaphore_mem>>) src(%281 : memref<1x32xf32, #tpu.memory_space<any>>) dst(%282 : memref<1x32xf32, #tpu.memory_space<vmem>>)
    %c15_i32_188 = arith.constant 15 : i32
    %c0_i32_189 = arith.constant 0 : i32
    %285 = tpu.memref_slice %arg2[%108, %c0_i32_189] : memref<128x32xf32, #tpu.memory_space<any>> -> memref<1x32xf32, #tpu.memory_space<any>>
    %c15_i32_190 = arith.constant 15 : i32
    %c0_i32_191 = arith.constant 0 : i32
    %286 = tpu.memref_slice %arg6[%c15_i32_190, %c0_i32_191] : memref<32x32xf32, #tpu.memory_space<vmem>> -> memref<1x32xf32, #tpu.memory_space<vmem>>
    %287 = tpu.memref_slice %arg7[%c15_i32_188] : memref<32x!tpu.dma_semaphore, #tpu.memory_space<semaphore_mem>> -> memref<1x!tpu.dma_semaphore, #tpu.memory_space<semaphore_mem>>
    %288 = tpu.memref_squeeze %287 : memref<1x!tpu.dma_semaphore, #tpu.memory_space<semaphore_mem>> -> memref<!tpu.dma_semaphore, #tpu.memory_space<semaphore_mem>>
    tpu.wait_dma2 semaphore(%288 : memref<!tpu.dma_semaphore, #tpu.memory_space<semaphore_mem>>) src(%285 : memref<1x32xf32, #tpu.memory_space<any>>) dst(%286 : memref<1x32xf32, #tpu.memory_space<vmem>>)
    %c16_i32_192 = arith.constant 16 : i32
    %c0_i32_193 = arith.constant 0 : i32
    %289 = tpu.memref_slice %arg2[%115, %c0_i32_193] : memref<128x32xf32, #tpu.memory_space<any>> -> memref<1x32xf32, #tpu.memory_space<any>>
    %c16_i32_194 = arith.constant 16 : i32
    %c0_i32_195 = arith.constant 0 : i32
    %290 = tpu.memref_slice %arg6[%c16_i32_194, %c0_i32_195] : memref<32x32xf32, #tpu.memory_space<vmem>> -> memref<1x32xf32, #tpu.memory_space<vmem>>
    %291 = tpu.memref_slice %arg7[%c16_i32_192] : memref<32x!tpu.dma_semaphore, #tpu.memory_space<semaphore_mem>> -> memref<1x!tpu.dma_semaphore, #tpu.memory_space<semaphore_mem>>
    %292 = tpu.memref_squeeze %291 : memref<1x!tpu.dma_semaphore, #tpu.memory_space<semaphore_mem>> -> memref<!tpu.dma_semaphore, #tpu.memory_space<semaphore_mem>>
    tpu.wait_dma2 semaphore(%292 : memref<!tpu.dma_semaphore, #tpu.memory_space<semaphore_mem>>) src(%289 : memref<1x32xf32, #tpu.memory_space<any>>) dst(%290 : memref<1x32xf32, #tpu.memory_space<vmem>>)
    %c17_i32_196 = arith.constant 17 : i32
    %c0_i32_197 = arith.constant 0 : i32
    %293 = tpu.memref_slice %arg2[%122, %c0_i32_197] : memref<128x32xf32, #tpu.memory_space<any>> -> memref<1x32xf32, #tpu.memory_space<any>>
    %c17_i32_198 = arith.constant 17 : i32
    %c0_i32_199 = arith.constant 0 : i32
    %294 = tpu.memref_slice %arg6[%c17_i32_198, %c0_i32_199] : memref<32x32xf32, #tpu.memory_space<vmem>> -> memref<1x32xf32, #tpu.memory_space<vmem>>
    %295 = tpu.memref_slice %arg7[%c17_i32_196] : memref<32x!tpu.dma_semaphore, #tpu.memory_space<semaphore_mem>> -> memref<1x!tpu.dma_semaphore, #tpu.memory_space<semaphore_mem>>
    %296 = tpu.memref_squeeze %295 : memref<1x!tpu.dma_semaphore, #tpu.memory_space<semaphore_mem>> -> memref<!tpu.dma_semaphore, #tpu.memory_space<semaphore_mem>>
    tpu.wait_dma2 semaphore(%296 : memref<!tpu.dma_semaphore, #tpu.memory_space<semaphore_mem>>) src(%293 : memref<1x32xf32, #tpu.memory_space<any>>) dst(%294 : memref<1x32xf32, #tpu.memory_space<vmem>>)
    %c18_i32_200 = arith.constant 18 : i32
    %c0_i32_201 = arith.constant 0 : i32
    %297 = tpu.memref_slice %arg2[%129, %c0_i32_201] : memref<128x32xf32, #tpu.memory_space<any>> -> memref<1x32xf32, #tpu.memory_space<any>>
    %c18_i32_202 = arith.constant 18 : i32
    %c0_i32_203 = arith.constant 0 : i32
    %298 = tpu.memref_slice %arg6[%c18_i32_202, %c0_i32_203] : memref<32x32xf32, #tpu.memory_space<vmem>> -> memref<1x32xf32, #tpu.memory_space<vmem>>
    %299 = tpu.memref_slice %arg7[%c18_i32_200] : memref<32x!tpu.dma_semaphore, #tpu.memory_space<semaphore_mem>> -> memref<1x!tpu.dma_semaphore, #tpu.memory_space<semaphore_mem>>
    %300 = tpu.memref_squeeze %299 : memref<1x!tpu.dma_semaphore, #tpu.memory_space<semaphore_mem>> -> memref<!tpu.dma_semaphore, #tpu.memory_space<semaphore_mem>>
    tpu.wait_dma2 semaphore(%300 : memref<!tpu.dma_semaphore, #tpu.memory_space<semaphore_mem>>) src(%297 : memref<1x32xf32, #tpu.memory_space<any>>) dst(%298 : memref<1x32xf32, #tpu.memory_space<vmem>>)
    %c19_i32_204 = arith.constant 19 : i32
    %c0_i32_205 = arith.constant 0 : i32
    %301 = tpu.memref_slice %arg2[%136, %c0_i32_205] : memref<128x32xf32, #tpu.memory_space<any>> -> memref<1x32xf32, #tpu.memory_space<any>>
    %c19_i32_206 = arith.constant 19 : i32
    %c0_i32_207 = arith.constant 0 : i32
    %302 = tpu.memref_slice %arg6[%c19_i32_206, %c0_i32_207] : memref<32x32xf32, #tpu.memory_space<vmem>> -> memref<1x32xf32, #tpu.memory_space<vmem>>
    %303 = tpu.memref_slice %arg7[%c19_i32_204] : memref<32x!tpu.dma_semaphore, #tpu.memory_space<semaphore_mem>> -> memref<1x!tpu.dma_semaphore, #tpu.memory_space<semaphore_mem>>
    %304 = tpu.memref_squeeze %303 : memref<1x!tpu.dma_semaphore, #tpu.memory_space<semaphore_mem>> -> memref<!tpu.dma_semaphore, #tpu.memory_space<semaphore_mem>>
    tpu.wait_dma2 semaphore(%304 : memref<!tpu.dma_semaphore, #tpu.memory_space<semaphore_mem>>) src(%301 : memref<1x32xf32, #tpu.memory_space<any>>) dst(%302 : memref<1x32xf32, #tpu.memory_space<vmem>>)
    %c20_i32_208 = arith.constant 20 : i32
    %c0_i32_209 = arith.constant 0 : i32
    %305 = tpu.memref_slice %arg2[%143, %c0_i32_209] : memref<128x32xf32, #tpu.memory_space<any>> -> memref<1x32xf32, #tpu.memory_space<any>>
    %c20_i32_210 = arith.constant 20 : i32
    %c0_i32_211 = arith.constant 0 : i32
    %306 = tpu.memref_slice %arg6[%c20_i32_210, %c0_i32_211] : memref<32x32xf32, #tpu.memory_space<vmem>> -> memref<1x32xf32, #tpu.memory_space<vmem>>
    %307 = tpu.memref_slice %arg7[%c20_i32_208] : memref<32x!tpu.dma_semaphore, #tpu.memory_space<semaphore_mem>> -> memref<1x!tpu.dma_semaphore, #tpu.memory_space<semaphore_mem>>
    %308 = tpu.memref_squeeze %307 : memref<1x!tpu.dma_semaphore, #tpu.memory_space<semaphore_mem>> -> memref<!tpu.dma_semaphore, #tpu.memory_space<semaphore_mem>>
    tpu.wait_dma2 semaphore(%308 : memref<!tpu.dma_semaphore, #tpu.memory_space<semaphore_mem>>) src(%305 : memref<1x32xf32, #tpu.memory_space<any>>) dst(%306 : memref<1x32xf32, #tpu.memory_space<vmem>>)
    %c21_i32_212 = arith.constant 21 : i32
    %c0_i32_213 = arith.constant 0 : i32
    %309 = tpu.memref_slice %arg2[%150, %c0_i32_213] : memref<128x32xf32, #tpu.memory_space<any>> -> memref<1x32xf32, #tpu.memory_space<any>>
    %c21_i32_214 = arith.constant 21 : i32
    %c0_i32_215 = arith.constant 0 : i32
    %310 = tpu.memref_slice %arg6[%c21_i32_214, %c0_i32_215] : memref<32x32xf32, #tpu.memory_space<vmem>> -> memref<1x32xf32, #tpu.memory_space<vmem>>
    %311 = tpu.memref_slice %arg7[%c21_i32_212] : memref<32x!tpu.dma_semaphore, #tpu.memory_space<semaphore_mem>> -> memref<1x!tpu.dma_semaphore, #tpu.memory_space<semaphore_mem>>
    %312 = tpu.memref_squeeze %311 : memref<1x!tpu.dma_semaphore, #tpu.memory_space<semaphore_mem>> -> memref<!tpu.dma_semaphore, #tpu.memory_space<semaphore_mem>>
    tpu.wait_dma2 semaphore(%312 : memref<!tpu.dma_semaphore, #tpu.memory_space<semaphore_mem>>) src(%309 : memref<1x32xf32, #tpu.memory_space<any>>) dst(%310 : memref<1x32xf32, #tpu.memory_space<vmem>>)
    %c22_i32_216 = arith.constant 22 : i32
    %c0_i32_217 = arith.constant 0 : i32
    %313 = tpu.memref_slice %arg2[%157, %c0_i32_217] : memref<128x32xf32, #tpu.memory_space<any>> -> memref<1x32xf32, #tpu.memory_space<any>>
    %c22_i32_218 = arith.constant 22 : i32
    %c0_i32_219 = arith.constant 0 : i32
    %314 = tpu.memref_slice %arg6[%c22_i32_218, %c0_i32_219] : memref<32x32xf32, #tpu.memory_space<vmem>> -> memref<1x32xf32, #tpu.memory_space<vmem>>
    %315 = tpu.memref_slice %arg7[%c22_i32_216] : memref<32x!tpu.dma_semaphore, #tpu.memory_space<semaphore_mem>> -> memref<1x!tpu.dma_semaphore, #tpu.memory_space<semaphore_mem>>
    %316 = tpu.memref_squeeze %315 : memref<1x!tpu.dma_semaphore, #tpu.memory_space<semaphore_mem>> -> memref<!tpu.dma_semaphore, #tpu.memory_space<semaphore_mem>>
    tpu.wait_dma2 semaphore(%316 : memref<!tpu.dma_semaphore, #tpu.memory_space<semaphore_mem>>) src(%313 : memref<1x32xf32, #tpu.memory_space<any>>) dst(%314 : memref<1x32xf32, #tpu.memory_space<vmem>>)
    %c23_i32_220 = arith.constant 23 : i32
    %c0_i32_221 = arith.constant 0 : i32
    %317 = tpu.memref_slice %arg2[%164, %c0_i32_221] : memref<128x32xf32, #tpu.memory_space<any>> -> memref<1x32xf32, #tpu.memory_space<any>>
    %c23_i32_222 = arith.constant 23 : i32
    %c0_i32_223 = arith.constant 0 : i32
    %318 = tpu.memref_slice %arg6[%c23_i32_222, %c0_i32_223] : memref<32x32xf32, #tpu.memory_space<vmem>> -> memref<1x32xf32, #tpu.memory_space<vmem>>
    %319 = tpu.memref_slice %arg7[%c23_i32_220] : memref<32x!tpu.dma_semaphore, #tpu.memory_space<semaphore_mem>> -> memref<1x!tpu.dma_semaphore, #tpu.memory_space<semaphore_mem>>
    %320 = tpu.memref_squeeze %319 : memref<1x!tpu.dma_semaphore, #tpu.memory_space<semaphore_mem>> -> memref<!tpu.dma_semaphore, #tpu.memory_space<semaphore_mem>>
    tpu.wait_dma2 semaphore(%320 : memref<!tpu.dma_semaphore, #tpu.memory_space<semaphore_mem>>) src(%317 : memref<1x32xf32, #tpu.memory_space<any>>) dst(%318 : memref<1x32xf32, #tpu.memory_space<vmem>>)
    %c24_i32_224 = arith.constant 24 : i32
    %c0_i32_225 = arith.constant 0 : i32
    %321 = tpu.memref_slice %arg2[%171, %c0_i32_225] : memref<128x32xf32, #tpu.memory_space<any>> -> memref<1x32xf32, #tpu.memory_space<any>>
    %c24_i32_226 = arith.constant 24 : i32
    %c0_i32_227 = arith.constant 0 : i32
    %322 = tpu.memref_slice %arg6[%c24_i32_226, %c0_i32_227] : memref<32x32xf32, #tpu.memory_space<vmem>> -> memref<1x32xf32, #tpu.memory_space<vmem>>
    %323 = tpu.memref_slice %arg7[%c24_i32_224] : memref<32x!tpu.dma_semaphore, #tpu.memory_space<semaphore_mem>> -> memref<1x!tpu.dma_semaphore, #tpu.memory_space<semaphore_mem>>
    %324 = tpu.memref_squeeze %323 : memref<1x!tpu.dma_semaphore, #tpu.memory_space<semaphore_mem>> -> memref<!tpu.dma_semaphore, #tpu.memory_space<semaphore_mem>>
    tpu.wait_dma2 semaphore(%324 : memref<!tpu.dma_semaphore, #tpu.memory_space<semaphore_mem>>) src(%321 : memref<1x32xf32, #tpu.memory_space<any>>) dst(%322 : memref<1x32xf32, #tpu.memory_space<vmem>>)
    %c25_i32_228 = arith.constant 25 : i32
    %c0_i32_229 = arith.constant 0 : i32
    %325 = tpu.memref_slice %arg2[%178, %c0_i32_229] : memref<128x32xf32, #tpu.memory_space<any>> -> memref<1x32xf32, #tpu.memory_space<any>>
    %c25_i32_230 = arith.constant 25 : i32
    %c0_i32_231 = arith.constant 0 : i32
    %326 = tpu.memref_slice %arg6[%c25_i32_230, %c0_i32_231] : memref<32x32xf32, #tpu.memory_space<vmem>> -> memref<1x32xf32, #tpu.memory_space<vmem>>
    %327 = tpu.memref_slice %arg7[%c25_i32_228] : memref<32x!tpu.dma_semaphore, #tpu.memory_space<semaphore_mem>> -> memref<1x!tpu.dma_semaphore, #tpu.memory_space<semaphore_mem>>
    %328 = tpu.memref_squeeze %327 : memref<1x!tpu.dma_semaphore, #tpu.memory_space<semaphore_mem>> -> memref<!tpu.dma_semaphore, #tpu.memory_space<semaphore_mem>>
    tpu.wait_dma2 semaphore(%328 : memref<!tpu.dma_semaphore, #tpu.memory_space<semaphore_mem>>) src(%325 : memref<1x32xf32, #tpu.memory_space<any>>) dst(%326 : memref<1x32xf32, #tpu.memory_space<vmem>>)
    %c26_i32_232 = arith.constant 26 : i32
    %c0_i32_233 = arith.constant 0 : i32
    %329 = tpu.memref_slice %arg2[%185, %c0_i32_233] : memref<128x32xf32, #tpu.memory_space<any>> -> memref<1x32xf32, #tpu.memory_space<any>>
    %c26_i32_234 = arith.constant 26 : i32
    %c0_i32_235 = arith.constant 0 : i32
    %330 = tpu.memref_slice %arg6[%c26_i32_234, %c0_i32_235] : memref<32x32xf32, #tpu.memory_space<vmem>> -> memref<1x32xf32, #tpu.memory_space<vmem>>
    %331 = tpu.memref_slice %arg7[%c26_i32_232] : memref<32x!tpu.dma_semaphore, #tpu.memory_space<semaphore_mem>> -> memref<1x!tpu.dma_semaphore, #tpu.memory_space<semaphore_mem>>
    %332 = tpu.memref_squeeze %331 : memref<1x!tpu.dma_semaphore, #tpu.memory_space<semaphore_mem>> -> memref<!tpu.dma_semaphore, #tpu.memory_space<semaphore_mem>>
    tpu.wait_dma2 semaphore(%332 : memref<!tpu.dma_semaphore, #tpu.memory_space<semaphore_mem>>) src(%329 : memref<1x32xf32, #tpu.memory_space<any>>) dst(%330 : memref<1x32xf32, #tpu.memory_space<vmem>>)
    %c27_i32_236 = arith.constant 27 : i32
    %c0_i32_237 = arith.constant 0 : i32
    %333 = tpu.memref_slice %arg2[%192, %c0_i32_237] : memref<128x32xf32, #tpu.memory_space<any>> -> memref<1x32xf32, #tpu.memory_space<any>>
    %c27_i32_238 = arith.constant 27 : i32
    %c0_i32_239 = arith.constant 0 : i32
    %334 = tpu.memref_slice %arg6[%c27_i32_238, %c0_i32_239] : memref<32x32xf32, #tpu.memory_space<vmem>> -> memref<1x32xf32, #tpu.memory_space<vmem>>
    %335 = tpu.memref_slice %arg7[%c27_i32_236] : memref<32x!tpu.dma_semaphore, #tpu.memory_space<semaphore_mem>> -> memref<1x!tpu.dma_semaphore, #tpu.memory_space<semaphore_mem>>
    %336 = tpu.memref_squeeze %335 : memref<1x!tpu.dma_semaphore, #tpu.memory_space<semaphore_mem>> -> memref<!tpu.dma_semaphore, #tpu.memory_space<semaphore_mem>>
    tpu.wait_dma2 semaphore(%336 : memref<!tpu.dma_semaphore, #tpu.memory_space<semaphore_mem>>) src(%333 : memref<1x32xf32, #tpu.memory_space<any>>) dst(%334 : memref<1x32xf32, #tpu.memory_space<vmem>>)
    %c28_i32_240 = arith.constant 28 : i32
    %c0_i32_241 = arith.constant 0 : i32
    %337 = tpu.memref_slice %arg2[%199, %c0_i32_241] : memref<128x32xf32, #tpu.memory_space<any>> -> memref<1x32xf32, #tpu.memory_space<any>>
    %c28_i32_242 = arith.constant 28 : i32
    %c0_i32_243 = arith.constant 0 : i32
    %338 = tpu.memref_slice %arg6[%c28_i32_242, %c0_i32_243] : memref<32x32xf32, #tpu.memory_space<vmem>> -> memref<1x32xf32, #tpu.memory_space<vmem>>
    %339 = tpu.memref_slice %arg7[%c28_i32_240] : memref<32x!tpu.dma_semaphore, #tpu.memory_space<semaphore_mem>> -> memref<1x!tpu.dma_semaphore, #tpu.memory_space<semaphore_mem>>
    %340 = tpu.memref_squeeze %339 : memref<1x!tpu.dma_semaphore, #tpu.memory_space<semaphore_mem>> -> memref<!tpu.dma_semaphore, #tpu.memory_space<semaphore_mem>>
    tpu.wait_dma2 semaphore(%340 : memref<!tpu.dma_semaphore, #tpu.memory_space<semaphore_mem>>) src(%337 : memref<1x32xf32, #tpu.memory_space<any>>) dst(%338 : memref<1x32xf32, #tpu.memory_space<vmem>>)
    %c29_i32_244 = arith.constant 29 : i32
    %c0_i32_245 = arith.constant 0 : i32
    %341 = tpu.memref_slice %arg2[%206, %c0_i32_245] : memref<128x32xf32, #tpu.memory_space<any>> -> memref<1x32xf32, #tpu.memory_space<any>>
    %c29_i32_246 = arith.constant 29 : i32
    %c0_i32_247 = arith.constant 0 : i32
    %342 = tpu.memref_slice %arg6[%c29_i32_246, %c0_i32_247] : memref<32x32xf32, #tpu.memory_space<vmem>> -> memref<1x32xf32, #tpu.memory_space<vmem>>
    %343 = tpu.memref_slice %arg7[%c29_i32_244] : memref<32x!tpu.dma_semaphore, #tpu.memory_space<semaphore_mem>> -> memref<1x!tpu.dma_semaphore, #tpu.memory_space<semaphore_mem>>
    %344 = tpu.memref_squeeze %343 : memref<1x!tpu.dma_semaphore, #tpu.memory_space<semaphore_mem>> -> memref<!tpu.dma_semaphore, #tpu.memory_space<semaphore_mem>>
    tpu.wait_dma2 semaphore(%344 : memref<!tpu.dma_semaphore, #tpu.memory_space<semaphore_mem>>) src(%341 : memref<1x32xf32, #tpu.memory_space<any>>) dst(%342 : memref<1x32xf32, #tpu.memory_space<vmem>>)
    %c30_i32_248 = arith.constant 30 : i32
    %c0_i32_249 = arith.constant 0 : i32
    %345 = tpu.memref_slice %arg2[%213, %c0_i32_249] : memref<128x32xf32, #tpu.memory_space<any>> -> memref<1x32xf32, #tpu.memory_space<any>>
    %c30_i32_250 = arith.constant 30 : i32
    %c0_i32_251 = arith.constant 0 : i32
    %346 = tpu.memref_slice %arg6[%c30_i32_250, %c0_i32_251] : memref<32x32xf32, #tpu.memory_space<vmem>> -> memref<1x32xf32, #tpu.memory_space<vmem>>
    %347 = tpu.memref_slice %arg7[%c30_i32_248] : memref<32x!tpu.dma_semaphore, #tpu.memory_space<semaphore_mem>> -> memref<1x!tpu.dma_semaphore, #tpu.memory_space<semaphore_mem>>
    %348 = tpu.memref_squeeze %347 : memref<1x!tpu.dma_semaphore, #tpu.memory_space<semaphore_mem>> -> memref<!tpu.dma_semaphore, #tpu.memory_space<semaphore_mem>>
    tpu.wait_dma2 semaphore(%348 : memref<!tpu.dma_semaphore, #tpu.memory_space<semaphore_mem>>) src(%345 : memref<1x32xf32, #tpu.memory_space<any>>) dst(%346 : memref<1x32xf32, #tpu.memory_space<vmem>>)
    %c31_i32_252 = arith.constant 31 : i32
    %c0_i32_253 = arith.constant 0 : i32
    %349 = tpu.memref_slice %arg2[%220, %c0_i32_253] : memref<128x32xf32, #tpu.memory_space<any>> -> memref<1x32xf32, #tpu.memory_space<any>>
    %c31_i32_254 = arith.constant 31 : i32
    %c0_i32_255 = arith.constant 0 : i32
    %350 = tpu.memref_slice %arg6[%c31_i32_254, %c0_i32_255] : memref<32x32xf32, #tpu.memory_space<vmem>> -> memref<1x32xf32, #tpu.memory_space<vmem>>
    %351 = tpu.memref_slice %arg7[%c31_i32_252] : memref<32x!tpu.dma_semaphore, #tpu.memory_space<semaphore_mem>> -> memref<1x!tpu.dma_semaphore, #tpu.memory_space<semaphore_mem>>
    %352 = tpu.memref_squeeze %351 : memref<1x!tpu.dma_semaphore, #tpu.memory_space<semaphore_mem>> -> memref<!tpu.dma_semaphore, #tpu.memory_space<semaphore_mem>>
    tpu.wait_dma2 semaphore(%352 : memref<!tpu.dma_semaphore, #tpu.memory_space<semaphore_mem>>) src(%349 : memref<1x32xf32, #tpu.memory_space<any>>) dst(%350 : memref<1x32xf32, #tpu.memory_space<vmem>>)
    %c0 = arith.constant 0 : index
    %c0_256 = arith.constant 0 : index
    %353 = vector.load %arg6[%c0, %c0_256] : memref<32x32xf32, #tpu.memory_space<vmem>>, vector<32x32xf32>
    %354 = arith.truncf %353 : vector<32x32xf32> to vector<32x32xbf16>
    %c0_257 = arith.constant 0 : index
    %c0_258 = arith.constant 0 : index
    %355 = vector.load %arg3[%c0_257, %c0_258] : memref<32x128xbf16, #tpu.memory_space<vmem>>, vector<32x128xbf16>
    %cst = arith.constant dense<0.000000e+00> : vector<32x128xf32>
    %356 = tpu.matmul %354, %355, %cst {dimension_numbers = #tpu.dot_dimension_numbers<[1], [0], [0], [1], [0, 0, 1, 1], [], []>} : vector<32x32xbf16>, vector<32x128xbf16>, vector<32x128xf32> -> vector<32x128xf32>
    %c0_259 = arith.constant 0 : index
    %c0_260 = arith.constant 0 : index
    %357 = vector.load %arg4[%c0_259, %c0_260] : memref<1x128xf32, #tpu.memory_space<vmem>>, vector<1x128xf32>
    %358 = vector.broadcast %357 : vector<1x128xf32> to vector<32x128xf32>
    %359 = arith.addf %356, %358 : vector<32x128xf32>
    %360 = arith.truncf %359 : vector<32x128xf32> to vector<32x128xbf16>
    %c0_261 = arith.constant 0 : index
    %c0_262 = arith.constant 0 : index
    %361 = vector.load %arg5[%c0_261, %c0_262] : memref<32x128xbf16, #tpu.memory_space<vmem>>, vector<32x128xbf16>
    tpu.vector_store %arg5[%c0_261, %c0_262], %360 {strides = array<i32>} : memref<32x128xbf16, #tpu.memory_space<vmem>>, vector<32x128xbf16>,
    return
  }
  func.func @transform_1(%arg0: i32, %arg1: memref<32xi32, #tpu.memory_space<smem>>) -> (i32, i32) {
    %c0_i32 = arith.constant 0 : i32
    %c0_i32_0 = arith.constant 0 : i32
    %c0_i32_1 = arith.constant 0 : i32
    return %c0_i32, %c0_i32_0 : i32, i32
  }
  func.func @transform_2(%arg0: i32, %arg1: memref<32xi32, #tpu.memory_space<smem>>) -> (i32, i32) {
    %c0_i32 = arith.constant 0 : i32
    %c0_i32_0 = arith.constant 0 : i32
    %c0_i32_1 = arith.constant 0 : i32
    return %c0_i32, %c0_i32_0 : i32, i32
  }
  func.func @transform_3(%arg0: i32, %arg1: memref<32xi32, #tpu.memory_space<smem>>) -> (i32, i32) {
    %c0_i32 = arith.constant 0 : i32
    %c0_i32_0 = arith.constant 0 : i32
    return %arg0, %c0_i32 : i32, i32
  }
}

</mosaic_0001>

<llo_original>
// kernel: tpu_custom_call.1
$region0: #{tpu_custom_call.1}
  #allocation0 [shape = 'u32[]', space=smem, size = 0x4, offset = 0x4, fixed_abs, tag = 'smem constant byte address 0x4 - core index']
  #allocation1 [shape = 'u32[144,128]{1,0:T(1,128)}', space=vmem, size = 0x12000, scoped, tag = 'internal scratch']
  #allocation2 [shape = 'f32[32,32]{1,0:T(8,128)}', space=vmem, size = 0x4000, scoped, tag = 'scratch operand']
  #allocation3 [shape = 's32[32]{0}', space=sflag, size = 0x80, scoped, tag = 'scratch operand']
  #allocation4 [shape = 's32[1]{0}', space=sflag, size = 0x4, scoped, tag = 'scoped memory for tpu_custom_call.1']
  #allocation5 [shape = 'u8[512]{0}', space=smem, size = 0x200, scoped, tag = 'prefetched SMEM operand 0']
  #allocation8 [shape = 's32[]', space=sflag, size = 0x4, offset = 0, fixed_abs, tag = 'sflag constant byte address 0x0 - dummy sync flag']
  #allocation9 [shape = 's32[]', space=sflag, size = 0x4, offset = 0, fixed_abs, tag = 'sflag constant byte address 0x0 - dummy sync flag']
  #allocation10 [shape = 's32[]', space=sflag, size = 0x4, offset = 0, fixed_abs, tag = 'sflag constant byte address 0x0 - dummy sync flag']
  #allocation11 [shape = 's32[]', space=sflag, size = 0x4, offset = 0, fixed_abs, tag = 'sflag constant byte address 0x0 - dummy sync flag']
  #allocation12 [shape = 's32[]', space=sflag, size = 0x4, offset = 0, fixed_abs, tag = 'sflag constant byte address 0x0 - dummy sync flag']
  #allocation13 [shape = 's32[]', space=sflag, size = 0x4, offset = 0, fixed_abs, tag = 'sflag constant byte address 0x0 - dummy sync flag']
  #allocation14 [shape = 's32[]', space=sflag, size = 0x4, offset = 0, fixed_abs, tag = 'sflag constant byte address 0x0 - dummy sync flag']
  #allocation15 [shape = 's32[]', space=sflag, size = 0x4, offset = 0, fixed_abs, tag = 'sflag constant byte address 0x0 - dummy sync flag']
  #allocation16 [shape = 's32[]', space=sflag, size = 0x4, offset = 0, fixed_abs, tag = 'sflag constant byte address 0x0 - dummy sync flag']
  #allocation17 [shape = 's32[]', space=sflag, size = 0x4, offset = 0, fixed_abs, tag = 'sflag constant byte address 0x0 - dummy sync flag']
  #allocation18 [shape = 's32[]', space=sflag, size = 0x4, offset = 0, fixed_abs, tag = 'sflag constant byte address 0x0 - dummy sync flag']
  #allocation19 [shape = 's32[]', space=sflag, size = 0x4, offset = 0, fixed_abs, tag = 'sflag constant byte address 0x0 - dummy sync flag']
  #allocation20 [shape = 's32[]', space=sflag, size = 0x4, offset = 0, fixed_abs, tag = 'sflag constant byte address 0x0 - dummy sync flag']
  #allocation21 [shape = 's32[]', space=sflag, size = 0x4, offset = 0, fixed_abs, tag = 'sflag constant byte address 0x0 - dummy sync flag']
  #allocation22 [shape = 's32[]', space=sflag, size = 0x4, offset = 0, fixed_abs, tag = 'sflag constant byte address 0x0 - dummy sync flag']
  #allocation23 [shape = 's32[]', space=sflag, size = 0x4, offset = 0, fixed_abs, tag = 'sflag constant byte address 0x0 - dummy sync flag']
  #allocation24 [shape = 's32[]', space=sflag, size = 0x4, offset = 0, fixed_abs, tag = 'sflag constant byte address 0x0 - dummy sync flag']
  #allocation25 [shape = 's32[]', space=sflag, size = 0x4, offset = 0, fixed_abs, tag = 'sflag constant byte address 0x0 - dummy sync flag']
  #allocation26 [shape = 's32[]', space=sflag, size = 0x4, offset = 0, fixed_abs, tag = 'sflag constant byte address 0x0 - dummy sync flag']
  #allocation27 [shape = 's32[]', space=sflag, size = 0x4, offset = 0, fixed_abs, tag = 'sflag constant byte address 0x0 - dummy sync flag']
  #allocation28 [shape = 's32[]', space=sflag, size = 0x4, offset = 0, fixed_abs, tag = 'sflag constant byte address 0x0 - dummy sync flag']
  #allocation29 [shape = 's32[]', space=sflag, size = 0x4, offset = 0, fixed_abs, tag = 'sflag constant byte address 0x0 - dummy sync flag']
  #allocation30 [shape = 's32[]', space=sflag, size = 0x4, offset = 0, fixed_abs, tag = 'sflag constant byte address 0x0 - dummy sync flag']
  #allocation31 [shape = 's32[]', space=sflag, size = 0x4, offset = 0, fixed_abs, tag = 'sflag constant byte address 0x0 - dummy sync flag']
  #allocation32 [shape = 's32[]', space=sflag, size = 0x4, offset = 0, fixed_abs, tag = 'sflag constant byte address 0x0 - dummy sync flag']
  #allocation33 [shape = 's32[]', space=sflag, size = 0x4, offset = 0, fixed_abs, tag = 'sflag constant byte address 0x0 - dummy sync flag']
  #allocation34 [shape = 's32[]', space=sflag, size = 0x4, offset = 0, fixed_abs, tag = 'sflag constant byte address 0x0 - dummy sync flag']
  #allocation35 [shape = 's32[]', space=sflag, size = 0x4, offset = 0, fixed_abs, tag = 'sflag constant byte address 0x0 - dummy sync flag']
  #allocation36 [shape = 's32[]', space=sflag, size = 0x4, offset = 0, fixed_abs, tag = 'sflag constant byte address 0x0 - dummy sync flag']
  #allocation37 [shape = 's32[]', space=sflag, size = 0x4, offset = 0, fixed_abs, tag = 'sflag constant byte address 0x0 - dummy sync flag']
  #allocation38 [shape = 's32[]', space=sflag, size = 0x4, offset = 0, fixed_abs, tag = 'sflag constant byte address 0x0 - dummy sync flag']
  #allocation39 [shape = 's32[]', space=sflag, size = 0x4, offset = 0, fixed_abs, tag = 'sflag constant byte address 0x0 - dummy sync flag']
  %s0 = inlined_call_operand.vmem [shape: s32[32], index: 0, kind: input, shape index: {}]
  %s1 = inlined_call_operand.vmem [shape: f32[128,32], index: 1, kind: input, shape index: {}]
  %s2 = inlined_call_operand.vmem [shape: bf16[32,128], index: 2, kind: input, shape index: {}]
  %s3 = inlined_call_operand.vmem [shape: f32[1,128], index: 3, kind: input, shape index: {}]
  %s4 = inlined_call_operand.hbm [shape: bf16[32,128], index: 4, kind: output, shape index: {}]
  %s5 = sld [smem:[#allocation0]]
  $region978: #{tpu_custom_call.1} parent=0
    _
  %s7 = ssub.s32 1, %s5
  %s8 = scalar_select 0, %s7, %s5
  %s9 = sshll.u32 %s0, 4
  %s10 = int_to_ptr.vmem [resolvable:$true] %s9
  %12 = dma.vmem_to_smem %s10, 16, [#allocation5], [#allocation4]
  %13 = dma.done [#allocation4], 16
  %14 = sfence
  $region1: #{tpu_custom_call.1} parent=0
    #allocation6 [shape = 'u8[8192]{0}', space=vmem, size = 0x2000, scoped, tag = 'output window, operand 0, single buffered']
    #allocation7 [shape = 's32[1]{0}', space=sflag, size = 0x4, scoped, tag = 'scoped memory for tpu_custom_call.1']
    %15 = vsyncpa [#allocation7], 0
    // Predicated region
    $region2: #{tpu_custom_call.1} parent=1 // pred_check
      _
    $region3: #{tpu_custom_call.1} parent=1 // pred_check_branch
      %17 = sbr.rel (0) target = $region5
    $region4: #{tpu_custom_call.1} parent=1 // pred_region
      _
    $region5: #{tpu_custom_call.1} parent=1 // pred_fallthru
      _
    // Predicated region
    $region6: #{tpu_custom_call.1} parent=1 // pred_check
      _
    $region7: #{tpu_custom_call.1} parent=1 // pred_check_branch
      %19 = sbr.rel (0) target = $region9
    $region8: #{tpu_custom_call.1} parent=1 // pred_region
      _
    $region9: #{tpu_custom_call.1} parent=1 // pred_fallthru
      _
    %s21 = smul.u32 0, 32
    %s22 = sld [smem:[#allocation5 + %s21]]
    %s23 = scalar_lea.vmem %s1, %s22
    %p25 = scmp.lt.u32.totalorder 1, 8
    %p26 = pneg %p25
    // Predicated region
    $region10: #{tpu_custom_call.1} parent=1 // pred_check
      _
    $region11: #{tpu_custom_call.1} parent=1 // pred_check_branch
      %28 = sbr.rel (%p25) target = $region13
    $region12: #{tpu_custom_call.1} parent=1 // pred_region
      %s44 = sand.u32 1, 7
      %p45 = scmp.eq.s32.totalorder %s44, 0
      %p46 = pneg %p45
      // Predicated region
      $region25: #{tpu_custom_call.1} parent=12 // pred_check
        _
      $region26: #{tpu_custom_call.1} parent=12 // pred_check_branch
        %48 = sbr.rel (%p45) target = $region28
      $region27: #{tpu_custom_call.1} parent=12 // pred_region
        %s49 = sand.u32 1, 7
        %s50 = ssub.s32 1, %s49
        %s51 = scalar_lea.vmem %s23, %s50
        %s52 = ssub.s32 1, %s49
        %s53 = scalar_lea.vmem [#allocation2], %s52
        %s54 = sshll.u32 1, %s49
        %s55 = ssub.s32 %s54, 1
        loop: start=0, step=1, limit=1
        $region29: #{tpu_custom_call.1} parent=27 // loop_pre_header
          _
        $region30: #{tpu_custom_call.1} parent=27 // loop_header
          %s57 = sphi 0, %s61
          %p58 = scmp.ge.s32.totalorder %s57, 1
          %s62 = sphi %s51, %s51
          %s63 = sphi %s53, %s53
        $region31: #{tpu_custom_call.1} parent=27 // loop_header_branch
          %60 = sbr.rel (%p58) target = $region35
        $region32: #{tpu_custom_call.1} parent=27 // loop_body
          %v64 = vld [vmem:[%s62] sm:%s55]
          %65 = vst [vmem:[%s63] sm:%s55] %v64
        $region33: #{tpu_custom_call.1} parent=27 // loop_footer
          %s61 = sadd.s32 1, %s57
        $region34: #{tpu_custom_call.1} parent=27 // loop_footer_branch
          %56 = sbr.rel target = $region30
        $region35: #{tpu_custom_call.1} parent=27 // loop_exit
          _
      $region28: #{tpu_custom_call.1} parent=12 // pred_fallthru
        _
    $region13: #{tpu_custom_call.1} parent=1 // pred_fallthru
      _
    // Predicated region
    $region14: #{tpu_custom_call.1} parent=1 // pred_check
      %p29 = pneg %p25
    $region15: #{tpu_custom_call.1} parent=1 // pred_check_branch
      %31 = sbr.rel (%p29) target = $region17
    $region16: #{tpu_custom_call.1} parent=1 // pred_region
      %s32 = sshll.u32 1, 1
      %s33 = ssub.s32 %s32, 1
      loop: start=0, step=1, limit=1
      $region18: #{tpu_custom_call.1} parent=16 // loop_pre_header
        _
      $region19: #{tpu_custom_call.1} parent=16 // loop_header
        %s35 = sphi 0, %s39
        %p36 = scmp.ge.s32.totalorder %s35, 1
        %s40 = sphi %s23, %s23
        %s41 = sphi [#allocation2], [#allocation2]
      $region20: #{tpu_custom_call.1} parent=16 // loop_header_branch
        %38 = sbr.rel (%p36) target = $region24
      $region21: #{tpu_custom_call.1} parent=16 // loop_body
        %v42 = vld [vmem:[%s40] sm:%s33]
        %43 = vst [vmem:[%s41] sm:%s33] %v42
      $region22: #{tpu_custom_call.1} parent=16 // loop_footer
        %s39 = sadd.s32 1, %s35
      $region23: #{tpu_custom_call.1} parent=16 // loop_footer_branch
        %34 = sbr.rel target = $region19
      $region24: #{tpu_custom_call.1} parent=16 // loop_exit
        _
    $region17: #{tpu_custom_call.1} parent=1 // pred_fallthru
      _
    // Predicated region
    $region36: #{tpu_custom_call.1} parent=1 // pred_check
      _
    $region37: #{tpu_custom_call.1} parent=1 // pred_check_branch
      %68 = sbr.rel (0) target = $region39
    $region38: #{tpu_custom_call.1} parent=1 // pred_region
      %69 = vsyncadd [#allocation3], 16
    $region39: #{tpu_custom_call.1} parent=1 // pred_fallthru
      _
    %s70 = sadd.s32 %s21, 1
    %s71 = sld [smem:[#allocation5 + %s70]]
    %s72 = scalar_lea.vmem %s1, %s71
    %s73 = scalar_lea.vmem [#allocation2], 1
    %s74 = scalar_lea.sflag [#allocation3], 1
    %p76 = scmp.lt.u32.totalorder 1, 8
    %p77 = pneg %p76
    // Predicated region
    $region40: #{tpu_custom_call.1} parent=1 // pred_check
      _
    $region41: #{tpu_custom_call.1} parent=1 // pred_check_branch
      %79 = sbr.rel (%p76) target = $region43
    $region42: #{tpu_custom_call.1} parent=1 // pred_region
      %s95 = sand.u32 1, 7
      %p96 = scmp.eq.s32.totalorder %s95, 0
      %p97 = pneg %p96
      // Predicated region
      $region55: #{tpu_custom_call.1} parent=42 // pred_check
        _
      $region56: #{tpu_custom_call.1} parent=42 // pred_check_branch
        %99 = sbr.rel (%p96) target = $region58
      $region57: #{tpu_custom_call.1} parent=42 // pred_region
        %s100 = sand.u32 1, 7
        %s101 = ssub.s32 1, %s100
        %s102 = scalar_lea.vmem %s72, %s101
        %s103 = ssub.s32 1, %s100
        %s104 = scalar_lea.vmem %s73, %s103 [#allocation2]
        %s105 = sshll.u32 1, %s100
        %s106 = ssub.s32 %s105, 1
        loop: start=0, step=1, limit=1
        $region59: #{tpu_custom_call.1} parent=57 // loop_pre_header
          _
        $region60: #{tpu_custom_call.1} parent=57 // loop_header
          %s108 = sphi 0, %s112
          %p109 = scmp.ge.s32.totalorder %s108, 1
          %s113 = sphi %s102, %s102
          %s114 = sphi %s104, %s104
        $region61: #{tpu_custom_call.1} parent=57 // loop_header_branch
          %111 = sbr.rel (%p109) target = $region65
        $region62: #{tpu_custom_call.1} parent=57 // loop_body
          %v115 = vld [vmem:[%s113] sm:%s106]
          %116 = vst [vmem:[%s114] sm:%s106] %v115
        $region63: #{tpu_custom_call.1} parent=57 // loop_footer
          %s112 = sadd.s32 1, %s108
        $region64: #{tpu_custom_call.1} parent=57 // loop_footer_branch
          %107 = sbr.rel target = $region60
        $region65: #{tpu_custom_call.1} parent=57 // loop_exit
          _
      $region58: #{tpu_custom_call.1} parent=42 // pred_fallthru
        _
    $region43: #{tpu_custom_call.1} parent=1 // pred_fallthru
      _
    // Predicated region
    $region44: #{tpu_custom_call.1} parent=1 // pred_check
      %p80 = pneg %p76
    $region45: #{tpu_custom_call.1} parent=1 // pred_check_branch
      %82 = sbr.rel (%p80) target = $region47
    $region46: #{tpu_custom_call.1} parent=1 // pred_region
      %s83 = sshll.u32 1, 1
      %s84 = ssub.s32 %s83, 1
      loop: start=0, step=1, limit=1
      $region48: #{tpu_custom_call.1} parent=46 // loop_pre_header
        _
      $region49: #{tpu_custom_call.1} parent=46 // loop_header
        %s86 = sphi 0, %s90
        %p87 = scmp.ge.s32.totalorder %s86, 1
        %s91 = sphi %s72, %s72
        %s92 = sphi %s73, %s73
      $region50: #{tpu_custom_call.1} parent=46 // loop_header_branch
        %89 = sbr.rel (%p87) target = $region54
      $region51: #{tpu_custom_call.1} parent=46 // loop_body
        %v93 = vld [vmem:[%s91] sm:%s84]
        %94 = vst [vmem:[%s92] sm:%s84] %v93
      $region52: #{tpu_custom_call.1} parent=46 // loop_footer
        %s90 = sadd.s32 1, %s86
      $region53: #{tpu_custom_call.1} parent=46 // loop_footer_branch
        %85 = sbr.rel target = $region49
      $region54: #{tpu_custom_call.1} parent=46 // loop_exit
        _
    $region47: #{tpu_custom_call.1} parent=1 // pred_fallthru
      _
    // Predicated region
    $region66: #{tpu_custom_call.1} parent=1 // pred_check
      _
    $region67: #{tpu_custom_call.1} parent=1 // pred_check_branch
      %119 = sbr.rel (0) target = $region69
    $region68: #{tpu_custom_call.1} parent=1 // pred_region
      %120 = vsyncadd %s74, 16
    $region69: #{tpu_custom_call.1} parent=1 // pred_fallthru
      _
    %s121 = sadd.s32 %s21, 2
    %s122 = sld [smem:[#allocation5 + %s121]]
    %s123 = scalar_lea.vmem %s1, %s122
    %s124 = scalar_lea.vmem [#allocation2], 2
    %s125 = scalar_lea.sflag [#allocation3], 2
    %p127 = scmp.lt.u32.totalorder 1, 8
    %p128 = pneg %p127
    // Predicated region
    $region70: #{tpu_custom_call.1} parent=1 // pred_check
      _
    $region71: #{tpu_custom_call.1} parent=1 // pred_check_branch
      %130 = sbr.rel (%p127) target = $region73
    $region72: #{tpu_custom_call.1} parent=1 // pred_region
      %s146 = sand.u32 1, 7
      %p147 = scmp.eq.s32.totalorder %s146, 0
      %p148 = pneg %p147
      // Predicated region
      $region85: #{tpu_custom_call.1} parent=72 // pred_check
        _
      $region86: #{tpu_custom_call.1} parent=72 // pred_check_branch
        %150 = sbr.rel (%p147) target = $region88
      $region87: #{tpu_custom_call.1} parent=72 // pred_region
        %s151 = sand.u32 1, 7
        %s152 = ssub.s32 1, %s151
        %s153 = scalar_lea.vmem %s123, %s152
        %s154 = ssub.s32 1, %s151
        %s155 = scalar_lea.vmem %s124, %s154 [#allocation2]
        %s156 = sshll.u32 1, %s151
        %s157 = ssub.s32 %s156, 1
        loop: start=0, step=1, limit=1
        $region89: #{tpu_custom_call.1} parent=87 // loop_pre_header
          _
        $region90: #{tpu_custom_call.1} parent=87 // loop_header
          %s159 = sphi 0, %s163
          %p160 = scmp.ge.s32.totalorder %s159, 1
          %s164 = sphi %s153, %s153
          %s165 = sphi %s155, %s155
        $region91: #{tpu_custom_call.1} parent=87 // loop_header_branch
          %162 = sbr.rel (%p160) target = $region95
        $region92: #{tpu_custom_call.1} parent=87 // loop_body
          %v166 = vld [vmem:[%s164] sm:%s157]
          %167 = vst [vmem:[%s165] sm:%s157] %v166
        $region93: #{tpu_custom_call.1} parent=87 // loop_footer
          %s163 = sadd.s32 1, %s159
        $region94: #{tpu_custom_call.1} parent=87 // loop_footer_branch
          %158 = sbr.rel target = $region90
        $region95: #{tpu_custom_call.1} parent=87 // loop_exit
          _
      $region88: #{tpu_custom_call.1} parent=72 // pred_fallthru
        _
    $region73: #{tpu_custom_call.1} parent=1 // pred_fallthru
      _
    // Predicated region
    $region74: #{tpu_custom_call.1} parent=1 // pred_check
      %p131 = pneg %p127
    $region75: #{tpu_custom_call.1} parent=1 // pred_check_branch
      %133 = sbr.rel (%p131) target = $region77
    $region76: #{tpu_custom_call.1} parent=1 // pred_region
      %s134 = sshll.u32 1, 1
      %s135 = ssub.s32 %s134, 1
      loop: start=0, step=1, limit=1
      $region78: #{tpu_custom_call.1} parent=76 // loop_pre_header
        _
      $region79: #{tpu_custom_call.1} parent=76 // loop_header
        %s137 = sphi 0, %s141
        %p138 = scmp.ge.s32.totalorder %s137, 1
        %s142 = sphi %s123, %s123
        %s143 = sphi %s124, %s124
      $region80: #{tpu_custom_call.1} parent=76 // loop_header_branch
        %140 = sbr.rel (%p138) target = $region84
      $region81: #{tpu_custom_call.1} parent=76 // loop_body
        %v144 = vld [vmem:[%s142] sm:%s135]
        %145 = vst [vmem:[%s143] sm:%s135] %v144
      $region82: #{tpu_custom_call.1} parent=76 // loop_footer
        %s141 = sadd.s32 1, %s137
      $region83: #{tpu_custom_call.1} parent=76 // loop_footer_branch
        %136 = sbr.rel target = $region79
      $region84: #{tpu_custom_call.1} parent=76 // loop_exit
        _
    $region77: #{tpu_custom_call.1} parent=1 // pred_fallthru
      _
    // Predicated region
    $region96: #{tpu_custom_call.1} parent=1 // pred_check
      _
    $region97: #{tpu_custom_call.1} parent=1 // pred_check_branch
      %170 = sbr.rel (0) target = $region99
    $region98: #{tpu_custom_call.1} parent=1 // pred_region
      %171 = vsyncadd %s125, 16
    $region99: #{tpu_custom_call.1} parent=1 // pred_fallthru
      _
    %s172 = sadd.s32 %s21, 3
    %s173 = sld [smem:[#allocation5 + %s172]]
    %s174 = scalar_lea.vmem %s1, %s173
    %s175 = scalar_lea.vmem [#allocation2], 3
    %s176 = scalar_lea.sflag [#allocation3], 3
    %p178 = scmp.lt.u32.totalorder 1, 8
    %p179 = pneg %p178
    // Predicated region
    $region100: #{tpu_custom_call.1} parent=1 // pred_check
      _
    $region101: #{tpu_custom_call.1} parent=1 // pred_check_branch
      %181 = sbr.rel (%p178) target = $region103
    $region102: #{tpu_custom_call.1} parent=1 // pred_region
      %s197 = sand.u32 1, 7
      %p198 = scmp.eq.s32.totalorder %s197, 0
      %p199 = pneg %p198
      // Predicated region
      $region115: #{tpu_custom_call.1} parent=102 // pred_check
        _
      $region116: #{tpu_custom_call.1} parent=102 // pred_check_branch
        %201 = sbr.rel (%p198) target = $region118
      $region117: #{tpu_custom_call.1} parent=102 // pred_region
        %s202 = sand.u32 1, 7
        %s203 = ssub.s32 1, %s202
        %s204 = scalar_lea.vmem %s174, %s203
        %s205 = ssub.s32 1, %s202
        %s206 = scalar_lea.vmem %s175, %s205 [#allocation2]
        %s207 = sshll.u32 1, %s202
        %s208 = ssub.s32 %s207, 1
        loop: start=0, step=1, limit=1
        $region119: #{tpu_custom_call.1} parent=117 // loop_pre_header
          _
        $region120: #{tpu_custom_call.1} parent=117 // loop_header
          %s210 = sphi 0, %s214
          %p211 = scmp.ge.s32.totalorder %s210, 1
          %s215 = sphi %s204, %s204
          %s216 = sphi %s206, %s206
        $region121: #{tpu_custom_call.1} parent=117 // loop_header_branch
          %213 = sbr.rel (%p211) target = $region125
        $region122: #{tpu_custom_call.1} parent=117 // loop_body
          %v217 = vld [vmem:[%s215] sm:%s208]
          %218 = vst [vmem:[%s216] sm:%s208] %v217
        $region123: #{tpu_custom_call.1} parent=117 // loop_footer
          %s214 = sadd.s32 1, %s210
        $region124: #{tpu_custom_call.1} parent=117 // loop_footer_branch
          %209 = sbr.rel target = $region120
        $region125: #{tpu_custom_call.1} parent=117 // loop_exit
          _
      $region118: #{tpu_custom_call.1} parent=102 // pred_fallthru
        _
    $region103: #{tpu_custom_call.1} parent=1 // pred_fallthru
      _
    // Predicated region
    $region104: #{tpu_custom_call.1} parent=1 // pred_check
      %p182 = pneg %p178
    $region105: #{tpu_custom_call.1} parent=1 // pred_check_branch
      %184 = sbr.rel (%p182) target = $region107
    $region106: #{tpu_custom_call.1} parent=1 // pred_region
      %s185 = sshll.u32 1, 1
      %s186 = ssub.s32 %s185, 1
      loop: start=0, step=1, limit=1
      $region108: #{tpu_custom_call.1} parent=106 // loop_pre_header
        _
      $region109: #{tpu_custom_call.1} parent=106 // loop_header
        %s188 = sphi 0, %s192
        %p189 = scmp.ge.s32.totalorder %s188, 1
        %s193 = sphi %s174, %s174
        %s194 = sphi %s175, %s175
      $region110: #{tpu_custom_call.1} parent=106 // loop_header_branch
        %191 = sbr.rel (%p189) target = $region114
      $region111: #{tpu_custom_call.1} parent=106 // loop_body
        %v195 = vld [vmem:[%s193] sm:%s186]
        %196 = vst [vmem:[%s194] sm:%s186] %v195
      $region112: #{tpu_custom_call.1} parent=106 // loop_footer
        %s192 = sadd.s32 1, %s188
      $region113: #{tpu_custom_call.1} parent=106 // loop_footer_branch
        %187 = sbr.rel target = $region109
      $region114: #{tpu_custom_call.1} parent=106 // loop_exit
        _
    $region107: #{tpu_custom_call.1} parent=1 // pred_fallthru
      _
    // Predicated region
    $region126: #{tpu_custom_call.1} parent=1 // pred_check
      _
    $region127: #{tpu_custom_call.1} parent=1 // pred_check_branch
      %221 = sbr.rel (0) target = $region129
    $region128: #{tpu_custom_call.1} parent=1 // pred_region
      %222 = vsyncadd %s176, 16
    $region129: #{tpu_custom_call.1} parent=1 // pred_fallthru
      _
    %s223 = sadd.s32 %s21, 4
    %s224 = sld [smem:[#allocation5 + %s223]]
    %s225 = scalar_lea.vmem %s1, %s224
    %s226 = scalar_lea.vmem [#allocation2], 4
    %s227 = scalar_lea.sflag [#allocation3], 4
    %p229 = scmp.lt.u32.totalorder 1, 8
    %p230 = pneg %p229
    // Predicated region
    $region130: #{tpu_custom_call.1} parent=1 // pred_check
      _
    $region131: #{tpu_custom_call.1} parent=1 // pred_check_branch
      %232 = sbr.rel (%p229) target = $region133
    $region132: #{tpu_custom_call.1} parent=1 // pred_region
      %s248 = sand.u32 1, 7
      %p249 = scmp.eq.s32.totalorder %s248, 0
      %p250 = pneg %p249
      // Predicated region
      $region145: #{tpu_custom_call.1} parent=132 // pred_check
        _
      $region146: #{tpu_custom_call.1} parent=132 // pred_check_branch
        %252 = sbr.rel (%p249) target = $region148
      $region147: #{tpu_custom_call.1} parent=132 // pred_region
        %s253 = sand.u32 1, 7
        %s254 = ssub.s32 1, %s253
        %s255 = scalar_lea.vmem %s225, %s254
        %s256 = ssub.s32 1, %s253
        %s257 = scalar_lea.vmem %s226, %s256 [#allocation2]
        %s258 = sshll.u32 1, %s253
        %s259 = ssub.s32 %s258, 1
        loop: start=0, step=1, limit=1
        $region149: #{tpu_custom_call.1} parent=147 // loop_pre_header
          _
        $region150: #{tpu_custom_call.1} parent=147 // loop_header
          %s261 = sphi 0, %s265
          %p262 = scmp.ge.s32.totalorder %s261, 1
          %s266 = sphi %s255, %s255
          %s267 = sphi %s257, %s257
        $region151: #{tpu_custom_call.1} parent=147 // loop_header_branch
          %264 = sbr.rel (%p262) target = $region155
        $region152: #{tpu_custom_call.1} parent=147 // loop_body
          %v268 = vld [vmem:[%s266] sm:%s259]
          %269 = vst [vmem:[%s267] sm:%s259] %v268
        $region153: #{tpu_custom_call.1} parent=147 // loop_footer
          %s265 = sadd.s32 1, %s261
        $region154: #{tpu_custom_call.1} parent=147 // loop_footer_branch
          %260 = sbr.rel target = $region150
        $region155: #{tpu_custom_call.1} parent=147 // loop_exit
          _
      $region148: #{tpu_custom_call.1} parent=132 // pred_fallthru
        _
    $region133: #{tpu_custom_call.1} parent=1 // pred_fallthru
      _
    // Predicated region
    $region134: #{tpu_custom_call.1} parent=1 // pred_check
      %p233 = pneg %p229
    $region135: #{tpu_custom_call.1} parent=1 // pred_check_branch
      %235 = sbr.rel (%p233) target = $region137
    $region136: #{tpu_custom_call.1} parent=1 // pred_region
      %s236 = sshll.u32 1, 1
      %s237 = ssub.s32 %s236, 1
      loop: start=0, step=1, limit=1
      $region138: #{tpu_custom_call.1} parent=136 // loop_pre_header
        _
      $region139: #{tpu_custom_call.1} parent=136 // loop_header
        %s239 = sphi 0, %s243
        %p240 = scmp.ge.s32.totalorder %s239, 1
        %s244 = sphi %s225, %s225
        %s245 = sphi %s226, %s226
      $region140: #{tpu_custom_call.1} parent=136 // loop_header_branch
        %242 = sbr.rel (%p240) target = $region144
      $region141: #{tpu_custom_call.1} parent=136 // loop_body
        %v246 = vld [vmem:[%s244] sm:%s237]
        %247 = vst [vmem:[%s245] sm:%s237] %v246
      $region142: #{tpu_custom_call.1} parent=136 // loop_footer
        %s243 = sadd.s32 1, %s239
      $region143: #{tpu_custom_call.1} parent=136 // loop_footer_branch
        %238 = sbr.rel target = $region139
      $region144: #{tpu_custom_call.1} parent=136 // loop_exit
        _
    $region137: #{tpu_custom_call.1} parent=1 // pred_fallthru
      _
    // Predicated region
    $region156: #{tpu_custom_call.1} parent=1 // pred_check
      _
    $region157: #{tpu_custom_call.1} parent=1 // pred_check_branch
      %272 = sbr.rel (0) target = $region159
    $region158: #{tpu_custom_call.1} parent=1 // pred_region
      %273 = vsyncadd %s227, 16
    $region159: #{tpu_custom_call.1} parent=1 // pred_fallthru
      _
    %s274 = sadd.s32 %s21, 5
    %s275 = sld [smem:[#allocation5 + %s274]]
    %s276 = scalar_lea.vmem %s1, %s275
    %s277 = scalar_lea.vmem [#allocation2], 5
    %s278 = scalar_lea.sflag [#allocation3], 5
    %p280 = scmp.lt.u32.totalorder 1, 8
    %p281 = pneg %p280
    // Predicated region
    $region160: #{tpu_custom_call.1} parent=1 // pred_check
      _
    $region161: #{tpu_custom_call.1} parent=1 // pred_check_branch
      %283 = sbr.rel (%p280) target = $region163
    $region162: #{tpu_custom_call.1} parent=1 // pred_region
      %s299 = sand.u32 1, 7
      %p300 = scmp.eq.s32.totalorder %s299, 0
      %p301 = pneg %p300
      // Predicated region
      $region175: #{tpu_custom_call.1} parent=162 // pred_check
        _
      $region176: #{tpu_custom_call.1} parent=162 // pred_check_branch
        %303 = sbr.rel (%p300) target = $region178
      $region177: #{tpu_custom_call.1} parent=162 // pred_region
        %s304 = sand.u32 1, 7
        %s305 = ssub.s32 1, %s304
        %s306 = scalar_lea.vmem %s276, %s305
        %s307 = ssub.s32 1, %s304
        %s308 = scalar_lea.vmem %s277, %s307 [#allocation2]
        %s309 = sshll.u32 1, %s304
        %s310 = ssub.s32 %s309, 1
        loop: start=0, step=1, limit=1
        $region179: #{tpu_custom_call.1} parent=177 // loop_pre_header
          _
        $region180: #{tpu_custom_call.1} parent=177 // loop_header
          %s312 = sphi 0, %s316
          %p313 = scmp.ge.s32.totalorder %s312, 1
          %s317 = sphi %s306, %s306
          %s318 = sphi %s308, %s308
        $region181: #{tpu_custom_call.1} parent=177 // loop_header_branch
          %315 = sbr.rel (%p313) target = $region185
        $region182: #{tpu_custom_call.1} parent=177 // loop_body
          %v319 = vld [vmem:[%s317] sm:%s310]
          %320 = vst [vmem:[%s318] sm:%s310] %v319
        $region183: #{tpu_custom_call.1} parent=177 // loop_footer
          %s316 = sadd.s32 1, %s312
        $region184: #{tpu_custom_call.1} parent=177 // loop_footer_branch
          %311 = sbr.rel target = $region180
        $region185: #{tpu_custom_call.1} parent=177 // loop_exit
          _
      $region178: #{tpu_custom_call.1} parent=162 // pred_fallthru
        _
    $region163: #{tpu_custom_call.1} parent=1 // pred_fallthru
      _
    // Predicated region
    $region164: #{tpu_custom_call.1} parent=1 // pred_check
      %p284 = pneg %p280
    $region165: #{tpu_custom_call.1} parent=1 // pred_check_branch
      %286 = sbr.rel (%p284) target = $region167
    $region166: #{tpu_custom_call.1} parent=1 // pred_region
      %s287 = sshll.u32 1, 1
      %s288 = ssub.s32 %s287, 1
      loop: start=0, step=1, limit=1
      $region168: #{tpu_custom_call.1} parent=166 // loop_pre_header
        _
      $region169: #{tpu_custom_call.1} parent=166 // loop_header
        %s290 = sphi 0, %s294
        %p291 = scmp.ge.s32.totalorder %s290, 1
        %s295 = sphi %s276, %s276
        %s296 = sphi %s277, %s277
      $region170: #{tpu_custom_call.1} parent=166 // loop_header_branch
        %293 = sbr.rel (%p291) target = $region174
      $region171: #{tpu_custom_call.1} parent=166 // loop_body
        %v297 = vld [vmem:[%s295] sm:%s288]
        %298 = vst [vmem:[%s296] sm:%s288] %v297
      $region172: #{tpu_custom_call.1} parent=166 // loop_footer
        %s294 = sadd.s32 1, %s290
      $region173: #{tpu_custom_call.1} parent=166 // loop_footer_branch
        %289 = sbr.rel target = $region169
      $region174: #{tpu_custom_call.1} parent=166 // loop_exit
        _
    $region167: #{tpu_custom_call.1} parent=1 // pred_fallthru
      _
    // Predicated region
    $region186: #{tpu_custom_call.1} parent=1 // pred_check
      _
    $region187: #{tpu_custom_call.1} parent=1 // pred_check_branch
      %323 = sbr.rel (0) target = $region189
    $region188: #{tpu_custom_call.1} parent=1 // pred_region
      %324 = vsyncadd %s278, 16
    $region189: #{tpu_custom_call.1} parent=1 // pred_fallthru
      _
    %s325 = sadd.s32 %s21, 6
    %s326 = sld [smem:[#allocation5 + %s325]]
    %s327 = scalar_lea.vmem %s1, %s326
    %s328 = scalar_lea.vmem [#allocation2], 6
    %s329 = scalar_lea.sflag [#allocation3], 6
    %p331 = scmp.lt.u32.totalorder 1, 8
    %p332 = pneg %p331
    // Predicated region
    $region190: #{tpu_custom_call.1} parent=1 // pred_check
      _
    $region191: #{tpu_custom_call.1} parent=1 // pred_check_branch
      %334 = sbr.rel (%p331) target = $region193
    $region192: #{tpu_custom_call.1} parent=1 // pred_region
      %s350 = sand.u32 1, 7
      %p351 = scmp.eq.s32.totalorder %s350, 0
      %p352 = pneg %p351
      // Predicated region
      $region205: #{tpu_custom_call.1} parent=192 // pred_check
        _
      $region206: #{tpu_custom_call.1} parent=192 // pred_check_branch
        %354 = sbr.rel (%p351) target = $region208
      $region207: #{tpu_custom_call.1} parent=192 // pred_region
        %s355 = sand.u32 1, 7
        %s356 = ssub.s32 1, %s355
        %s357 = scalar_lea.vmem %s327, %s356
        %s358 = ssub.s32 1, %s355
        %s359 = scalar_lea.vmem %s328, %s358 [#allocation2]
        %s360 = sshll.u32 1, %s355
        %s361 = ssub.s32 %s360, 1
        loop: start=0, step=1, limit=1
        $region209: #{tpu_custom_call.1} parent=207 // loop_pre_header
          _
        $region210: #{tpu_custom_call.1} parent=207 // loop_header
          %s363 = sphi 0, %s367
          %p364 = scmp.ge.s32.totalorder %s363, 1
          %s368 = sphi %s357, %s357
          %s369 = sphi %s359, %s359
        $region211: #{tpu_custom_call.1} parent=207 // loop_header_branch
          %366 = sbr.rel (%p364) target = $region215
        $region212: #{tpu_custom_call.1} parent=207 // loop_body
          %v370 = vld [vmem:[%s368] sm:%s361]
          %371 = vst [vmem:[%s369] sm:%s361] %v370
        $region213: #{tpu_custom_call.1} parent=207 // loop_footer
          %s367 = sadd.s32 1, %s363
        $region214: #{tpu_custom_call.1} parent=207 // loop_footer_branch
          %362 = sbr.rel target = $region210
        $region215: #{tpu_custom_call.1} parent=207 // loop_exit
          _
      $region208: #{tpu_custom_call.1} parent=192 // pred_fallthru
        _
    $region193: #{tpu_custom_call.1} parent=1 // pred_fallthru
      _
    // Predicated region
    $region194: #{tpu_custom_call.1} parent=1 // pred_check
      %p335 = pneg %p331
    $region195: #{tpu_custom_call.1} parent=1 // pred_check_branch
      %337 = sbr.rel (%p335) target = $region197
    $region196: #{tpu_custom_call.1} parent=1 // pred_region
      %s338 = sshll.u32 1, 1
      %s339 = ssub.s32 %s338, 1
      loop: start=0, step=1, limit=1
      $region198: #{tpu_custom_call.1} parent=196 // loop_pre_header
        _
      $region199: #{tpu_custom_call.1} parent=196 // loop_header
        %s341 = sphi 0, %s345
        %p342 = scmp.ge.s32.totalorder %s341, 1
        %s346 = sphi %s327, %s327
        %s347 = sphi %s328, %s328
      $region200: #{tpu_custom_call.1} parent=196 // loop_header_branch
        %344 = sbr.rel (%p342) target = $region204
      $region201: #{tpu_custom_call.1} parent=196 // loop_body
        %v348 = vld [vmem:[%s346] sm:%s339]
        %349 = vst [vmem:[%s347] sm:%s339] %v348
      $region202: #{tpu_custom_call.1} parent=196 // loop_footer
        %s345 = sadd.s32 1, %s341
      $region203: #{tpu_custom_call.1} parent=196 // loop_footer_branch
        %340 = sbr.rel target = $region199
      $region204: #{tpu_custom_call.1} parent=196 // loop_exit
        _
    $region197: #{tpu_custom_call.1} parent=1 // pred_fallthru
      _
    // Predicated region
    $region216: #{tpu_custom_call.1} parent=1 // pred_check
      _
    $region217: #{tpu_custom_call.1} parent=1 // pred_check_branch
      %374 = sbr.rel (0) target = $region219
    $region218: #{tpu_custom_call.1} parent=1 // pred_region
      %375 = vsyncadd %s329, 16
    $region219: #{tpu_custom_call.1} parent=1 // pred_fallthru
      _
    %s376 = sadd.s32 %s21, 7
    %s377 = sld [smem:[#allocation5 + %s376]]
    %s378 = scalar_lea.vmem %s1, %s377
    %s379 = scalar_lea.vmem [#allocation2], 7
    %s380 = scalar_lea.sflag [#allocation3], 7
    %p382 = scmp.lt.u32.totalorder 1, 8
    %p383 = pneg %p382
    // Predicated region
    $region220: #{tpu_custom_call.1} parent=1 // pred_check
      _
    $region221: #{tpu_custom_call.1} parent=1 // pred_check_branch
      %385 = sbr.rel (%p382) target = $region223
    $region222: #{tpu_custom_call.1} parent=1 // pred_region
      %s401 = sand.u32 1, 7
      %p402 = scmp.eq.s32.totalorder %s401, 0
      %p403 = pneg %p402
      // Predicated region
      $region235: #{tpu_custom_call.1} parent=222 // pred_check
        _
      $region236: #{tpu_custom_call.1} parent=222 // pred_check_branch
        %405 = sbr.rel (%p402) target = $region238
      $region237: #{tpu_custom_call.1} parent=222 // pred_region
        %s406 = sand.u32 1, 7
        %s407 = ssub.s32 1, %s406
        %s408 = scalar_lea.vmem %s378, %s407
        %s409 = ssub.s32 1, %s406
        %s410 = scalar_lea.vmem %s379, %s409 [#allocation2]
        %s411 = sshll.u32 1, %s406
        %s412 = ssub.s32 %s411, 1
        loop: start=0, step=1, limit=1
        $region239: #{tpu_custom_call.1} parent=237 // loop_pre_header
          _
        $region240: #{tpu_custom_call.1} parent=237 // loop_header
          %s414 = sphi 0, %s418
          %p415 = scmp.ge.s32.totalorder %s414, 1
          %s419 = sphi %s408, %s408
          %s420 = sphi %s410, %s410
        $region241: #{tpu_custom_call.1} parent=237 // loop_header_branch
          %417 = sbr.rel (%p415) target = $region245
        $region242: #{tpu_custom_call.1} parent=237 // loop_body
          %v421 = vld [vmem:[%s419] sm:%s412]
          %422 = vst [vmem:[%s420] sm:%s412] %v421
        $region243: #{tpu_custom_call.1} parent=237 // loop_footer
          %s418 = sadd.s32 1, %s414
        $region244: #{tpu_custom_call.1} parent=237 // loop_footer_branch
          %413 = sbr.rel target = $region240
        $region245: #{tpu_custom_call.1} parent=237 // loop_exit
          _
      $region238: #{tpu_custom_call.1} parent=222 // pred_fallthru
        _
    $region223: #{tpu_custom_call.1} parent=1 // pred_fallthru
      _
    // Predicated region
    $region224: #{tpu_custom_call.1} parent=1 // pred_check
      %p386 = pneg %p382
    $region225: #{tpu_custom_call.1} parent=1 // pred_check_branch
      %388 = sbr.rel (%p386) target = $region227
    $region226: #{tpu_custom_call.1} parent=1 // pred_region
      %s389 = sshll.u32 1, 1
      %s390 = ssub.s32 %s389, 1
      loop: start=0, step=1, limit=1
      $region228: #{tpu_custom_call.1} parent=226 // loop_pre_header
        _
      $region229: #{tpu_custom_call.1} parent=226 // loop_header
        %s392 = sphi 0, %s396
        %p393 = scmp.ge.s32.totalorder %s392, 1
        %s397 = sphi %s378, %s378
        %s398 = sphi %s379, %s379
      $region230: #{tpu_custom_call.1} parent=226 // loop_header_branch
        %395 = sbr.rel (%p393) target = $region234
      $region231: #{tpu_custom_call.1} parent=226 // loop_body
        %v399 = vld [vmem:[%s397] sm:%s390]
        %400 = vst [vmem:[%s398] sm:%s390] %v399
      $region232: #{tpu_custom_call.1} parent=226 // loop_footer
        %s396 = sadd.s32 1, %s392
      $region233: #{tpu_custom_call.1} parent=226 // loop_footer_branch
        %391 = sbr.rel target = $region229
      $region234: #{tpu_custom_call.1} parent=226 // loop_exit
        _
    $region227: #{tpu_custom_call.1} parent=1 // pred_fallthru
      _
    // Predicated region
    $region246: #{tpu_custom_call.1} parent=1 // pred_check
      _
    $region247: #{tpu_custom_call.1} parent=1 // pred_check_branch
      %425 = sbr.rel (0) target = $region249
    $region248: #{tpu_custom_call.1} parent=1 // pred_region
      %426 = vsyncadd %s380, 16
    $region249: #{tpu_custom_call.1} parent=1 // pred_fallthru
      _
    %s427 = sadd.s32 %s21, 8
    %s428 = sld [smem:[#allocation5 + %s427]]
    %s429 = scalar_lea.vmem %s1, %s428
    %s430 = scalar_lea.vmem [#allocation2], 8
    %s431 = scalar_lea.sflag [#allocation3], 8
    %p433 = scmp.lt.u32.totalorder 1, 8
    %p434 = pneg %p433
    // Predicated region
    $region250: #{tpu_custom_call.1} parent=1 // pred_check
      _
    $region251: #{tpu_custom_call.1} parent=1 // pred_check_branch
      %436 = sbr.rel (%p433) target = $region253
    $region252: #{tpu_custom_call.1} parent=1 // pred_region
      %s452 = sand.u32 1, 7
      %p453 = scmp.eq.s32.totalorder %s452, 0
      %p454 = pneg %p453
      // Predicated region
      $region265: #{tpu_custom_call.1} parent=252 // pred_check
        _
      $region266: #{tpu_custom_call.1} parent=252 // pred_check_branch
        %456 = sbr.rel (%p453) target = $region268
      $region267: #{tpu_custom_call.1} parent=252 // pred_region
        %s457 = sand.u32 1, 7
        %s458 = ssub.s32 1, %s457
        %s459 = scalar_lea.vmem %s429, %s458
        %s460 = ssub.s32 1, %s457
        %s461 = scalar_lea.vmem %s430, %s460 [#allocation2]
        %s462 = sshll.u32 1, %s457
        %s463 = ssub.s32 %s462, 1
        loop: start=0, step=1, limit=1
        $region269: #{tpu_custom_call.1} parent=267 // loop_pre_header
          _
        $region270: #{tpu_custom_call.1} parent=267 // loop_header
          %s465 = sphi 0, %s469
          %p466 = scmp.ge.s32.totalorder %s465, 1
          %s470 = sphi %s459, %s459
          %s471 = sphi %s461, %s461
        $region271: #{tpu_custom_call.1} parent=267 // loop_header_branch
          %468 = sbr.rel (%p466) target = $region275
        $region272: #{tpu_custom_call.1} parent=267 // loop_body
          %v472 = vld [vmem:[%s470] sm:%s463]
          %473 = vst [vmem:[%s471] sm:%s463] %v472
        $region273: #{tpu_custom_call.1} parent=267 // loop_footer
          %s469 = sadd.s32 1, %s465
        $region274: #{tpu_custom_call.1} parent=267 // loop_footer_branch
          %464 = sbr.rel target = $region270
        $region275: #{tpu_custom_call.1} parent=267 // loop_exit
          _
      $region268: #{tpu_custom_call.1} parent=252 // pred_fallthru
        _
    $region253: #{tpu_custom_call.1} parent=1 // pred_fallthru
      _
    // Predicated region
    $region254: #{tpu_custom_call.1} parent=1 // pred_check
      %p437 = pneg %p433
    $region255: #{tpu_custom_call.1} parent=1 // pred_check_branch
      %439 = sbr.rel (%p437) target = $region257
    $region256: #{tpu_custom_call.1} parent=1 // pred_region
      %s440 = sshll.u32 1, 1
      %s441 = ssub.s32 %s440, 1
      loop: start=0, step=1, limit=1
      $region258: #{tpu_custom_call.1} parent=256 // loop_pre_header
        _
      $region259: #{tpu_custom_call.1} parent=256 // loop_header
        %s443 = sphi 0, %s447
        %p444 = scmp.ge.s32.totalorder %s443, 1
        %s448 = sphi %s429, %s429
        %s449 = sphi %s430, %s430
      $region260: #{tpu_custom_call.1} parent=256 // loop_header_branch
        %446 = sbr.rel (%p444) target = $region264
      $region261: #{tpu_custom_call.1} parent=256 // loop_body
        %v450 = vld [vmem:[%s448] sm:%s441]
        %451 = vst [vmem:[%s449] sm:%s441] %v450
      $region262: #{tpu_custom_call.1} parent=256 // loop_footer
        %s447 = sadd.s32 1, %s443
      $region263: #{tpu_custom_call.1} parent=256 // loop_footer_branch
        %442 = sbr.rel target = $region259
      $region264: #{tpu_custom_call.1} parent=256 // loop_exit
        _
    $region257: #{tpu_custom_call.1} parent=1 // pred_fallthru
      _
    // Predicated region
    $region276: #{tpu_custom_call.1} parent=1 // pred_check
      _
    $region277: #{tpu_custom_call.1} parent=1 // pred_check_branch
      %476 = sbr.rel (0) target = $region279
    $region278: #{tpu_custom_call.1} parent=1 // pred_region
      %477 = vsyncadd %s431, 16
    $region279: #{tpu_custom_call.1} parent=1 // pred_fallthru
      _
    %s478 = sadd.s32 %s21, 9
    %s479 = sld [smem:[#allocation5 + %s478]]
    %s480 = scalar_lea.vmem %s1, %s479
    %s481 = scalar_lea.vmem [#allocation2], 9
    %s482 = scalar_lea.sflag [#allocation3], 9
    %p484 = scmp.lt.u32.totalorder 1, 8
    %p485 = pneg %p484
    // Predicated region
    $region280: #{tpu_custom_call.1} parent=1 // pred_check
      _
    $region281: #{tpu_custom_call.1} parent=1 // pred_check_branch
      %487 = sbr.rel (%p484) target = $region283
    $region282: #{tpu_custom_call.1} parent=1 // pred_region
      %s503 = sand.u32 1, 7
      %p504 = scmp.eq.s32.totalorder %s503, 0
      %p505 = pneg %p504
      // Predicated region
      $region295: #{tpu_custom_call.1} parent=282 // pred_check
        _
      $region296: #{tpu_custom_call.1} parent=282 // pred_check_branch
        %507 = sbr.rel (%p504) target = $region298
      $region297: #{tpu_custom_call.1} parent=282 // pred_region
        %s508 = sand.u32 1, 7
        %s509 = ssub.s32 1, %s508
        %s510 = scalar_lea.vmem %s480, %s509
        %s511 = ssub.s32 1, %s508
        %s512 = scalar_lea.vmem %s481, %s511 [#allocation2]
        %s513 = sshll.u32 1, %s508
        %s514 = ssub.s32 %s513, 1
        loop: start=0, step=1, limit=1
        $region299: #{tpu_custom_call.1} parent=297 // loop_pre_header
          _
        $region300: #{tpu_custom_call.1} parent=297 // loop_header
          %s516 = sphi 0, %s520
          %p517 = scmp.ge.s32.totalorder %s516, 1
          %s521 = sphi %s510, %s510
          %s522 = sphi %s512, %s512
        $region301: #{tpu_custom_call.1} parent=297 // loop_header_branch
          %519 = sbr.rel (%p517) target = $region305
        $region302: #{tpu_custom_call.1} parent=297 // loop_body
          %v523 = vld [vmem:[%s521] sm:%s514]
          %524 = vst [vmem:[%s522] sm:%s514] %v523
        $region303: #{tpu_custom_call.1} parent=297 // loop_footer
          %s520 = sadd.s32 1, %s516
        $region304: #{tpu_custom_call.1} parent=297 // loop_footer_branch
          %515 = sbr.rel target = $region300
        $region305: #{tpu_custom_call.1} parent=297 // loop_exit
          _
      $region298: #{tpu_custom_call.1} parent=282 // pred_fallthru
        _
    $region283: #{tpu_custom_call.1} parent=1 // pred_fallthru
      _
    // Predicated region
    $region284: #{tpu_custom_call.1} parent=1 // pred_check
      %p488 = pneg %p484
    $region285: #{tpu_custom_call.1} parent=1 // pred_check_branch
      %490 = sbr.rel (%p488) target = $region287
    $region286: #{tpu_custom_call.1} parent=1 // pred_region
      %s491 = sshll.u32 1, 1
      %s492 = ssub.s32 %s491, 1
      loop: start=0, step=1, limit=1
      $region288: #{tpu_custom_call.1} parent=286 // loop_pre_header
        _
      $region289: #{tpu_custom_call.1} parent=286 // loop_header
        %s494 = sphi 0, %s498
        %p495 = scmp.ge.s32.totalorder %s494, 1
        %s499 = sphi %s480, %s480
        %s500 = sphi %s481, %s481
      $region290: #{tpu_custom_call.1} parent=286 // loop_header_branch
        %497 = sbr.rel (%p495) target = $region294
      $region291: #{tpu_custom_call.1} parent=286 // loop_body
        %v501 = vld [vmem:[%s499] sm:%s492]
        %502 = vst [vmem:[%s500] sm:%s492] %v501
      $region292: #{tpu_custom_call.1} parent=286 // loop_footer
        %s498 = sadd.s32 1, %s494
      $region293: #{tpu_custom_call.1} parent=286 // loop_footer_branch
        %493 = sbr.rel target = $region289
      $region294: #{tpu_custom_call.1} parent=286 // loop_exit
        _
    $region287: #{tpu_custom_call.1} parent=1 // pred_fallthru
      _
    // Predicated region
    $region306: #{tpu_custom_call.1} parent=1 // pred_check
      _
    $region307: #{tpu_custom_call.1} parent=1 // pred_check_branch
      %527 = sbr.rel (0) target = $region309
    $region308: #{tpu_custom_call.1} parent=1 // pred_region
      %528 = vsyncadd %s482, 16
    $region309: #{tpu_custom_call.1} parent=1 // pred_fallthru
      _
    %s529 = sadd.s32 %s21, 10
    %s530 = sld [smem:[#allocation5 + %s529]]
    %s531 = scalar_lea.vmem %s1, %s530
    %s532 = scalar_lea.vmem [#allocation2], 10
    %s533 = scalar_lea.sflag [#allocation3], 10
    %p535 = scmp.lt.u32.totalorder 1, 8
    %p536 = pneg %p535
    // Predicated region
    $region310: #{tpu_custom_call.1} parent=1 // pred_check
      _
    $region311: #{tpu_custom_call.1} parent=1 // pred_check_branch
      %538 = sbr.rel (%p535) target = $region313
    $region312: #{tpu_custom_call.1} parent=1 // pred_region
      %s554 = sand.u32 1, 7
      %p555 = scmp.eq.s32.totalorder %s554, 0
      %p556 = pneg %p555
      // Predicated region
      $region325: #{tpu_custom_call.1} parent=312 // pred_check
        _
      $region326: #{tpu_custom_call.1} parent=312 // pred_check_branch
        %558 = sbr.rel (%p555) target = $region328
      $region327: #{tpu_custom_call.1} parent=312 // pred_region
        %s559 = sand.u32 1, 7
        %s560 = ssub.s32 1, %s559
        %s561 = scalar_lea.vmem %s531, %s560
        %s562 = ssub.s32 1, %s559
        %s563 = scalar_lea.vmem %s532, %s562 [#allocation2]
        %s564 = sshll.u32 1, %s559
        %s565 = ssub.s32 %s564, 1
        loop: start=0, step=1, limit=1
        $region329: #{tpu_custom_call.1} parent=327 // loop_pre_header
          _
        $region330: #{tpu_custom_call.1} parent=327 // loop_header
          %s567 = sphi 0, %s571
          %p568 = scmp.ge.s32.totalorder %s567, 1
          %s572 = sphi %s561, %s561
          %s573 = sphi %s563, %s563
        $region331: #{tpu_custom_call.1} parent=327 // loop_header_branch
          %570 = sbr.rel (%p568) target = $region335
        $region332: #{tpu_custom_call.1} parent=327 // loop_body
          %v574 = vld [vmem:[%s572] sm:%s565]
          %575 = vst [vmem:[%s573] sm:%s565] %v574
        $region333: #{tpu_custom_call.1} parent=327 // loop_footer
          %s571 = sadd.s32 1, %s567
        $region334: #{tpu_custom_call.1} parent=327 // loop_footer_branch
          %566 = sbr.rel target = $region330
        $region335: #{tpu_custom_call.1} parent=327 // loop_exit
          _
      $region328: #{tpu_custom_call.1} parent=312 // pred_fallthru
        _
    $region313: #{tpu_custom_call.1} parent=1 // pred_fallthru
      _
    // Predicated region
    $region314: #{tpu_custom_call.1} parent=1 // pred_check
      %p539 = pneg %p535
    $region315: #{tpu_custom_call.1} parent=1 // pred_check_branch
      %541 = sbr.rel (%p539) target = $region317
    $region316: #{tpu_custom_call.1} parent=1 // pred_region
      %s542 = sshll.u32 1, 1
      %s543 = ssub.s32 %s542, 1
      loop: start=0, step=1, limit=1
      $region318: #{tpu_custom_call.1} parent=316 // loop_pre_header
        _
      $region319: #{tpu_custom_call.1} parent=316 // loop_header
        %s545 = sphi 0, %s549
        %p546 = scmp.ge.s32.totalorder %s545, 1
        %s550 = sphi %s531, %s531
        %s551 = sphi %s532, %s532
      $region320: #{tpu_custom_call.1} parent=316 // loop_header_branch
        %548 = sbr.rel (%p546) target = $region324
      $region321: #{tpu_custom_call.1} parent=316 // loop_body
        %v552 = vld [vmem:[%s550] sm:%s543]
        %553 = vst [vmem:[%s551] sm:%s543] %v552
      $region322: #{tpu_custom_call.1} parent=316 // loop_footer
        %s549 = sadd.s32 1, %s545
      $region323: #{tpu_custom_call.1} parent=316 // loop_footer_branch
        %544 = sbr.rel target = $region319
      $region324: #{tpu_custom_call.1} parent=316 // loop_exit
        _
    $region317: #{tpu_custom_call.1} parent=1 // pred_fallthru
      _
    // Predicated region
    $region336: #{tpu_custom_call.1} parent=1 // pred_check
      _
    $region337: #{tpu_custom_call.1} parent=1 // pred_check_branch
      %578 = sbr.rel (0) target = $region339
    $region338: #{tpu_custom_call.1} parent=1 // pred_region
      %579 = vsyncadd %s533, 16
    $region339: #{tpu_custom_call.1} parent=1 // pred_fallthru
      _
    %s580 = sadd.s32 %s21, 11
    %s581 = sld [smem:[#allocation5 + %s580]]
    %s582 = scalar_lea.vmem %s1, %s581
    %s583 = scalar_lea.vmem [#allocation2], 11
    %s584 = scalar_lea.sflag [#allocation3], 11
    %p586 = scmp.lt.u32.totalorder 1, 8
    %p587 = pneg %p586
    // Predicated region
    $region340: #{tpu_custom_call.1} parent=1 // pred_check
      _
    $region341: #{tpu_custom_call.1} parent=1 // pred_check_branch
      %589 = sbr.rel (%p586) target = $region343
    $region342: #{tpu_custom_call.1} parent=1 // pred_region
      %s605 = sand.u32 1, 7
      %p606 = scmp.eq.s32.totalorder %s605, 0
      %p607 = pneg %p606
      // Predicated region
      $region355: #{tpu_custom_call.1} parent=342 // pred_check
        _
      $region356: #{tpu_custom_call.1} parent=342 // pred_check_branch
        %609 = sbr.rel (%p606) target = $region358
      $region357: #{tpu_custom_call.1} parent=342 // pred_region
        %s610 = sand.u32 1, 7
        %s611 = ssub.s32 1, %s610
        %s612 = scalar_lea.vmem %s582, %s611
        %s613 = ssub.s32 1, %s610
        %s614 = scalar_lea.vmem %s583, %s613 [#allocation2]
        %s615 = sshll.u32 1, %s610
        %s616 = ssub.s32 %s615, 1
        loop: start=0, step=1, limit=1
        $region359: #{tpu_custom_call.1} parent=357 // loop_pre_header
          _
        $region360: #{tpu_custom_call.1} parent=357 // loop_header
          %s618 = sphi 0, %s622
          %p619 = scmp.ge.s32.totalorder %s618, 1
          %s623 = sphi %s612, %s612
          %s624 = sphi %s614, %s614
        $region361: #{tpu_custom_call.1} parent=357 // loop_header_branch
          %621 = sbr.rel (%p619) target = $region365
        $region362: #{tpu_custom_call.1} parent=357 // loop_body
          %v625 = vld [vmem:[%s623] sm:%s616]
          %626 = vst [vmem:[%s624] sm:%s616] %v625
        $region363: #{tpu_custom_call.1} parent=357 // loop_footer
          %s622 = sadd.s32 1, %s618
        $region364: #{tpu_custom_call.1} parent=357 // loop_footer_branch
          %617 = sbr.rel target = $region360
        $region365: #{tpu_custom_call.1} parent=357 // loop_exit
          _
      $region358: #{tpu_custom_call.1} parent=342 // pred_fallthru
        _
    $region343: #{tpu_custom_call.1} parent=1 // pred_fallthru
      _
    // Predicated region
    $region344: #{tpu_custom_call.1} parent=1 // pred_check
      %p590 = pneg %p586
    $region345: #{tpu_custom_call.1} parent=1 // pred_check_branch
      %592 = sbr.rel (%p590) target = $region347
    $region346: #{tpu_custom_call.1} parent=1 // pred_region
      %s593 = sshll.u32 1, 1
      %s594 = ssub.s32 %s593, 1
      loop: start=0, step=1, limit=1
      $region348: #{tpu_custom_call.1} parent=346 // loop_pre_header
        _
      $region349: #{tpu_custom_call.1} parent=346 // loop_header
        %s596 = sphi 0, %s600
        %p597 = scmp.ge.s32.totalorder %s596, 1
        %s601 = sphi %s582, %s582
        %s602 = sphi %s583, %s583
      $region350: #{tpu_custom_call.1} parent=346 // loop_header_branch
        %599 = sbr.rel (%p597) target = $region354
      $region351: #{tpu_custom_call.1} parent=346 // loop_body
        %v603 = vld [vmem:[%s601] sm:%s594]
        %604 = vst [vmem:[%s602] sm:%s594] %v603
      $region352: #{tpu_custom_call.1} parent=346 // loop_footer
        %s600 = sadd.s32 1, %s596
      $region353: #{tpu_custom_call.1} parent=346 // loop_footer_branch
        %595 = sbr.rel target = $region349
      $region354: #{tpu_custom_call.1} parent=346 // loop_exit
        _
    $region347: #{tpu_custom_call.1} parent=1 // pred_fallthru
      _
    // Predicated region
    $region366: #{tpu_custom_call.1} parent=1 // pred_check
      _
    $region367: #{tpu_custom_call.1} parent=1 // pred_check_branch
      %629 = sbr.rel (0) target = $region369
    $region368: #{tpu_custom_call.1} parent=1 // pred_region
      %630 = vsyncadd %s584, 16
    $region369: #{tpu_custom_call.1} parent=1 // pred_fallthru
      _
    %s631 = sadd.s32 %s21, 12
    %s632 = sld [smem:[#allocation5 + %s631]]
    %s633 = scalar_lea.vmem %s1, %s632
    %s634 = scalar_lea.vmem [#allocation2], 12
    %s635 = scalar_lea.sflag [#allocation3], 12
    %p637 = scmp.lt.u32.totalorder 1, 8
    %p638 = pneg %p637
    // Predicated region
    $region370: #{tpu_custom_call.1} parent=1 // pred_check
      _
    $region371: #{tpu_custom_call.1} parent=1 // pred_check_branch
      %640 = sbr.rel (%p637) target = $region373
    $region372: #{tpu_custom_call.1} parent=1 // pred_region
      %s656 = sand.u32 1, 7
      %p657 = scmp.eq.s32.totalorder %s656, 0
      %p658 = pneg %p657
      // Predicated region
      $region385: #{tpu_custom_call.1} parent=372 // pred_check
        _
      $region386: #{tpu_custom_call.1} parent=372 // pred_check_branch
        %660 = sbr.rel (%p657) target = $region388
      $region387: #{tpu_custom_call.1} parent=372 // pred_region
        %s661 = sand.u32 1, 7
        %s662 = ssub.s32 1, %s661
        %s663 = scalar_lea.vmem %s633, %s662
        %s664 = ssub.s32 1, %s661
        %s665 = scalar_lea.vmem %s634, %s664 [#allocation2]
        %s666 = sshll.u32 1, %s661
        %s667 = ssub.s32 %s666, 1
        loop: start=0, step=1, limit=1
        $region389: #{tpu_custom_call.1} parent=387 // loop_pre_header
          _
        $region390: #{tpu_custom_call.1} parent=387 // loop_header
          %s669 = sphi 0, %s673
          %p670 = scmp.ge.s32.totalorder %s669, 1
          %s674 = sphi %s663, %s663
          %s675 = sphi %s665, %s665
        $region391: #{tpu_custom_call.1} parent=387 // loop_header_branch
          %672 = sbr.rel (%p670) target = $region395
        $region392: #{tpu_custom_call.1} parent=387 // loop_body
          %v676 = vld [vmem:[%s674] sm:%s667]
          %677 = vst [vmem:[%s675] sm:%s667] %v676
        $region393: #{tpu_custom_call.1} parent=387 // loop_footer
          %s673 = sadd.s32 1, %s669
        $region394: #{tpu_custom_call.1} parent=387 // loop_footer_branch
          %668 = sbr.rel target = $region390
        $region395: #{tpu_custom_call.1} parent=387 // loop_exit
          _
      $region388: #{tpu_custom_call.1} parent=372 // pred_fallthru
        _
    $region373: #{tpu_custom_call.1} parent=1 // pred_fallthru
      _
    // Predicated region
    $region374: #{tpu_custom_call.1} parent=1 // pred_check
      %p641 = pneg %p637
    $region375: #{tpu_custom_call.1} parent=1 // pred_check_branch
      %643 = sbr.rel (%p641) target = $region377
    $region376: #{tpu_custom_call.1} parent=1 // pred_region
      %s644 = sshll.u32 1, 1
      %s645 = ssub.s32 %s644, 1
      loop: start=0, step=1, limit=1
      $region378: #{tpu_custom_call.1} parent=376 // loop_pre_header
        _
      $region379: #{tpu_custom_call.1} parent=376 // loop_header
        %s647 = sphi 0, %s651
        %p648 = scmp.ge.s32.totalorder %s647, 1
        %s652 = sphi %s633, %s633
        %s653 = sphi %s634, %s634
      $region380: #{tpu_custom_call.1} parent=376 // loop_header_branch
        %650 = sbr.rel (%p648) target = $region384
      $region381: #{tpu_custom_call.1} parent=376 // loop_body
        %v654 = vld [vmem:[%s652] sm:%s645]
        %655 = vst [vmem:[%s653] sm:%s645] %v654
      $region382: #{tpu_custom_call.1} parent=376 // loop_footer
        %s651 = sadd.s32 1, %s647
      $region383: #{tpu_custom_call.1} parent=376 // loop_footer_branch
        %646 = sbr.rel target = $region379
      $region384: #{tpu_custom_call.1} parent=376 // loop_exit
        _
    $region377: #{tpu_custom_call.1} parent=1 // pred_fallthru
      _
    // Predicated region
    $region396: #{tpu_custom_call.1} parent=1 // pred_check
      _
    $region397: #{tpu_custom_call.1} parent=1 // pred_check_branch
      %680 = sbr.rel (0) target = $region399
    $region398: #{tpu_custom_call.1} parent=1 // pred_region
      %681 = vsyncadd %s635, 16
    $region399: #{tpu_custom_call.1} parent=1 // pred_fallthru
      _
    %s682 = sadd.s32 %s21, 13
    %s683 = sld [smem:[#allocation5 + %s682]]
    %s684 = scalar_lea.vmem %s1, %s683
    %s685 = scalar_lea.vmem [#allocation2], 13
    %s686 = scalar_lea.sflag [#allocation3], 13
    %p688 = scmp.lt.u32.totalorder 1, 8
    %p689 = pneg %p688
    // Predicated region
    $region400: #{tpu_custom_call.1} parent=1 // pred_check
      _
    $region401: #{tpu_custom_call.1} parent=1 // pred_check_branch
      %691 = sbr.rel (%p688) target = $region403
    $region402: #{tpu_custom_call.1} parent=1 // pred_region
      %s707 = sand.u32 1, 7
      %p708 = scmp.eq.s32.totalorder %s707, 0
      %p709 = pneg %p708
      // Predicated region
      $region415: #{tpu_custom_call.1} parent=402 // pred_check
        _
      $region416: #{tpu_custom_call.1} parent=402 // pred_check_branch
        %711 = sbr.rel (%p708) target = $region418
      $region417: #{tpu_custom_call.1} parent=402 // pred_region
        %s712 = sand.u32 1, 7
        %s713 = ssub.s32 1, %s712
        %s714 = scalar_lea.vmem %s684, %s713
        %s715 = ssub.s32 1, %s712
        %s716 = scalar_lea.vmem %s685, %s715 [#allocation2]
        %s717 = sshll.u32 1, %s712
        %s718 = ssub.s32 %s717, 1
        loop: start=0, step=1, limit=1
        $region419: #{tpu_custom_call.1} parent=417 // loop_pre_header
          _
        $region420: #{tpu_custom_call.1} parent=417 // loop_header
          %s720 = sphi 0, %s724
          %p721 = scmp.ge.s32.totalorder %s720, 1
          %s725 = sphi %s714, %s714
          %s726 = sphi %s716, %s716
        $region421: #{tpu_custom_call.1} parent=417 // loop_header_branch
          %723 = sbr.rel (%p721) target = $region425
        $region422: #{tpu_custom_call.1} parent=417 // loop_body
          %v727 = vld [vmem:[%s725] sm:%s718]
          %728 = vst [vmem:[%s726] sm:%s718] %v727
        $region423: #{tpu_custom_call.1} parent=417 // loop_footer
          %s724 = sadd.s32 1, %s720
        $region424: #{tpu_custom_call.1} parent=417 // loop_footer_branch
          %719 = sbr.rel target = $region420
        $region425: #{tpu_custom_call.1} parent=417 // loop_exit
          _
      $region418: #{tpu_custom_call.1} parent=402 // pred_fallthru
        _
    $region403: #{tpu_custom_call.1} parent=1 // pred_fallthru
      _
    // Predicated region
    $region404: #{tpu_custom_call.1} parent=1 // pred_check
      %p692 = pneg %p688
    $region405: #{tpu_custom_call.1} parent=1 // pred_check_branch
      %694 = sbr.rel (%p692) target = $region407
    $region406: #{tpu_custom_call.1} parent=1 // pred_region
      %s695 = sshll.u32 1, 1
      %s696 = ssub.s32 %s695, 1
      loop: start=0, step=1, limit=1
      $region408: #{tpu_custom_call.1} parent=406 // loop_pre_header
        _
      $region409: #{tpu_custom_call.1} parent=406 // loop_header
        %s698 = sphi 0, %s702
        %p699 = scmp.ge.s32.totalorder %s698, 1
        %s703 = sphi %s684, %s684
        %s704 = sphi %s685, %s685
      $region410: #{tpu_custom_call.1} parent=406 // loop_header_branch
        %701 = sbr.rel (%p699) target = $region414
      $region411: #{tpu_custom_call.1} parent=406 // loop_body
        %v705 = vld [vmem:[%s703] sm:%s696]
        %706 = vst [vmem:[%s704] sm:%s696] %v705
      $region412: #{tpu_custom_call.1} parent=406 // loop_footer
        %s702 = sadd.s32 1, %s698
      $region413: #{tpu_custom_call.1} parent=406 // loop_footer_branch
        %697 = sbr.rel target = $region409
      $region414: #{tpu_custom_call.1} parent=406 // loop_exit
        _
    $region407: #{tpu_custom_call.1} parent=1 // pred_fallthru
      _
    // Predicated region
    $region426: #{tpu_custom_call.1} parent=1 // pred_check
      _
    $region427: #{tpu_custom_call.1} parent=1 // pred_check_branch
      %731 = sbr.rel (0) target = $region429
    $region428: #{tpu_custom_call.1} parent=1 // pred_region
      %732 = vsyncadd %s686, 16
    $region429: #{tpu_custom_call.1} parent=1 // pred_fallthru
      _
    %s733 = sadd.s32 %s21, 14
    %s734 = sld [smem:[#allocation5 + %s733]]
    %s735 = scalar_lea.vmem %s1, %s734
    %s736 = scalar_lea.vmem [#allocation2], 14
    %s737 = scalar_lea.sflag [#allocation3], 14
    %p739 = scmp.lt.u32.totalorder 1, 8
    %p740 = pneg %p739
    // Predicated region
    $region430: #{tpu_custom_call.1} parent=1 // pred_check
      _
    $region431: #{tpu_custom_call.1} parent=1 // pred_check_branch
      %742 = sbr.rel (%p739) target = $region433
    $region432: #{tpu_custom_call.1} parent=1 // pred_region
      %s758 = sand.u32 1, 7
      %p759 = scmp.eq.s32.totalorder %s758, 0
      %p760 = pneg %p759
      // Predicated region
      $region445: #{tpu_custom_call.1} parent=432 // pred_check
        _
      $region446: #{tpu_custom_call.1} parent=432 // pred_check_branch
        %762 = sbr.rel (%p759) target = $region448
      $region447: #{tpu_custom_call.1} parent=432 // pred_region
        %s763 = sand.u32 1, 7
        %s764 = ssub.s32 1, %s763
        %s765 = scalar_lea.vmem %s735, %s764
        %s766 = ssub.s32 1, %s763
        %s767 = scalar_lea.vmem %s736, %s766 [#allocation2]
        %s768 = sshll.u32 1, %s763
        %s769 = ssub.s32 %s768, 1
        loop: start=0, step=1, limit=1
        $region449: #{tpu_custom_call.1} parent=447 // loop_pre_header
          _
        $region450: #{tpu_custom_call.1} parent=447 // loop_header
          %s771 = sphi 0, %s775
          %p772 = scmp.ge.s32.totalorder %s771, 1
          %s776 = sphi %s765, %s765
          %s777 = sphi %s767, %s767
        $region451: #{tpu_custom_call.1} parent=447 // loop_header_branch
          %774 = sbr.rel (%p772) target = $region455
        $region452: #{tpu_custom_call.1} parent=447 // loop_body
          %v778 = vld [vmem:[%s776] sm:%s769]
          %779 = vst [vmem:[%s777] sm:%s769] %v778
        $region453: #{tpu_custom_call.1} parent=447 // loop_footer
          %s775 = sadd.s32 1, %s771
        $region454: #{tpu_custom_call.1} parent=447 // loop_footer_branch
          %770 = sbr.rel target = $region450
        $region455: #{tpu_custom_call.1} parent=447 // loop_exit
          _
      $region448: #{tpu_custom_call.1} parent=432 // pred_fallthru
        _
    $region433: #{tpu_custom_call.1} parent=1 // pred_fallthru
      _
    // Predicated region
    $region434: #{tpu_custom_call.1} parent=1 // pred_check
      %p743 = pneg %p739
    $region435: #{tpu_custom_call.1} parent=1 // pred_check_branch
      %745 = sbr.rel (%p743) target = $region437
    $region436: #{tpu_custom_call.1} parent=1 // pred_region
      %s746 = sshll.u32 1, 1
      %s747 = ssub.s32 %s746, 1
      loop: start=0, step=1, limit=1
      $region438: #{tpu_custom_call.1} parent=436 // loop_pre_header
        _
      $region439: #{tpu_custom_call.1} parent=436 // loop_header
        %s749 = sphi 0, %s753
        %p750 = scmp.ge.s32.totalorder %s749, 1
        %s754 = sphi %s735, %s735
        %s755 = sphi %s736, %s736
      $region440: #{tpu_custom_call.1} parent=436 // loop_header_branch
        %752 = sbr.rel (%p750) target = $region444
      $region441: #{tpu_custom_call.1} parent=436 // loop_body
        %v756 = vld [vmem:[%s754] sm:%s747]
        %757 = vst [vmem:[%s755] sm:%s747] %v756
      $region442: #{tpu_custom_call.1} parent=436 // loop_footer
        %s753 = sadd.s32 1, %s749
      $region443: #{tpu_custom_call.1} parent=436 // loop_footer_branch
        %748 = sbr.rel target = $region439
      $region444: #{tpu_custom_call.1} parent=436 // loop_exit
        _
    $region437: #{tpu_custom_call.1} parent=1 // pred_fallthru
      _
    // Predicated region
    $region456: #{tpu_custom_call.1} parent=1 // pred_check
      _
    $region457: #{tpu_custom_call.1} parent=1 // pred_check_branch
      %782 = sbr.rel (0) target = $region459
    $region458: #{tpu_custom_call.1} parent=1 // pred_region
      %783 = vsyncadd %s737, 16
    $region459: #{tpu_custom_call.1} parent=1 // pred_fallthru
      _
    %s784 = sadd.s32 %s21, 15
    %s785 = sld [smem:[#allocation5 + %s784]]
    %s786 = scalar_lea.vmem %s1, %s785
    %s787 = scalar_lea.vmem [#allocation2], 15
    %s788 = scalar_lea.sflag [#allocation3], 15
    %p790 = scmp.lt.u32.totalorder 1, 8
    %p791 = pneg %p790
    // Predicated region
    $region460: #{tpu_custom_call.1} parent=1 // pred_check
      _
    $region461: #{tpu_custom_call.1} parent=1 // pred_check_branch
      %793 = sbr.rel (%p790) target = $region463
    $region462: #{tpu_custom_call.1} parent=1 // pred_region
      %s809 = sand.u32 1, 7
      %p810 = scmp.eq.s32.totalorder %s809, 0
      %p811 = pneg %p810
      // Predicated region
      $region475: #{tpu_custom_call.1} parent=462 // pred_check
        _
      $region476: #{tpu_custom_call.1} parent=462 // pred_check_branch
        %813 = sbr.rel (%p810) target = $region478
      $region477: #{tpu_custom_call.1} parent=462 // pred_region
        %s814 = sand.u32 1, 7
        %s815 = ssub.s32 1, %s814
        %s816 = scalar_lea.vmem %s786, %s815
        %s817 = ssub.s32 1, %s814
        %s818 = scalar_lea.vmem %s787, %s817 [#allocation2]
        %s819 = sshll.u32 1, %s814
        %s820 = ssub.s32 %s819, 1
        loop: start=0, step=1, limit=1
        $region479: #{tpu_custom_call.1} parent=477 // loop_pre_header
          _
        $region480: #{tpu_custom_call.1} parent=477 // loop_header
          %s822 = sphi 0, %s826
          %p823 = scmp.ge.s32.totalorder %s822, 1
          %s827 = sphi %s816, %s816
          %s828 = sphi %s818, %s818
        $region481: #{tpu_custom_call.1} parent=477 // loop_header_branch
          %825 = sbr.rel (%p823) target = $region485
        $region482: #{tpu_custom_call.1} parent=477 // loop_body
          %v829 = vld [vmem:[%s827] sm:%s820]
          %830 = vst [vmem:[%s828] sm:%s820] %v829
        $region483: #{tpu_custom_call.1} parent=477 // loop_footer
          %s826 = sadd.s32 1, %s822
        $region484: #{tpu_custom_call.1} parent=477 // loop_footer_branch
          %821 = sbr.rel target = $region480
        $region485: #{tpu_custom_call.1} parent=477 // loop_exit
          _
      $region478: #{tpu_custom_call.1} parent=462 // pred_fallthru
        _
    $region463: #{tpu_custom_call.1} parent=1 // pred_fallthru
      _
    // Predicated region
    $region464: #{tpu_custom_call.1} parent=1 // pred_check
      %p794 = pneg %p790
    $region465: #{tpu_custom_call.1} parent=1 // pred_check_branch
      %796 = sbr.rel (%p794) target = $region467
    $region466: #{tpu_custom_call.1} parent=1 // pred_region
      %s797 = sshll.u32 1, 1
      %s798 = ssub.s32 %s797, 1
      loop: start=0, step=1, limit=1
      $region468: #{tpu_custom_call.1} parent=466 // loop_pre_header
        _
      $region469: #{tpu_custom_call.1} parent=466 // loop_header
        %s800 = sphi 0, %s804
        %p801 = scmp.ge.s32.totalorder %s800, 1
        %s805 = sphi %s786, %s786
        %s806 = sphi %s787, %s787
      $region470: #{tpu_custom_call.1} parent=466 // loop_header_branch
        %803 = sbr.rel (%p801) target = $region474
      $region471: #{tpu_custom_call.1} parent=466 // loop_body
        %v807 = vld [vmem:[%s805] sm:%s798]
        %808 = vst [vmem:[%s806] sm:%s798] %v807
      $region472: #{tpu_custom_call.1} parent=466 // loop_footer
        %s804 = sadd.s32 1, %s800
      $region473: #{tpu_custom_call.1} parent=466 // loop_footer_branch
        %799 = sbr.rel target = $region469
      $region474: #{tpu_custom_call.1} parent=466 // loop_exit
        _
    $region467: #{tpu_custom_call.1} parent=1 // pred_fallthru
      _
    // Predicated region
    $region486: #{tpu_custom_call.1} parent=1 // pred_check
      _
    $region487: #{tpu_custom_call.1} parent=1 // pred_check_branch
      %833 = sbr.rel (0) target = $region489
    $region488: #{tpu_custom_call.1} parent=1 // pred_region
      %834 = vsyncadd %s788, 16
    $region489: #{tpu_custom_call.1} parent=1 // pred_fallthru
      _
    %s835 = sadd.s32 %s21, 16
    %s836 = sld [smem:[#allocation5 + %s835]]
    %s837 = scalar_lea.vmem %s1, %s836
    %s838 = scalar_lea.vmem [#allocation2], 16
    %s839 = scalar_lea.sflag [#allocation3], 16
    %p841 = scmp.lt.u32.totalorder 1, 8
    %p842 = pneg %p841
    // Predicated region
    $region490: #{tpu_custom_call.1} parent=1 // pred_check
      _
    $region491: #{tpu_custom_call.1} parent=1 // pred_check_branch
      %844 = sbr.rel (%p841) target = $region493
    $region492: #{tpu_custom_call.1} parent=1 // pred_region
      %s860 = sand.u32 1, 7
      %p861 = scmp.eq.s32.totalorder %s860, 0
      %p862 = pneg %p861
      // Predicated region
      $region505: #{tpu_custom_call.1} parent=492 // pred_check
        _
      $region506: #{tpu_custom_call.1} parent=492 // pred_check_branch
        %864 = sbr.rel (%p861) target = $region508
      $region507: #{tpu_custom_call.1} parent=492 // pred_region
        %s865 = sand.u32 1, 7
        %s866 = ssub.s32 1, %s865
        %s867 = scalar_lea.vmem %s837, %s866
        %s868 = ssub.s32 1, %s865
        %s869 = scalar_lea.vmem %s838, %s868 [#allocation2]
        %s870 = sshll.u32 1, %s865
        %s871 = ssub.s32 %s870, 1
        loop: start=0, step=1, limit=1
        $region509: #{tpu_custom_call.1} parent=507 // loop_pre_header
          _
        $region510: #{tpu_custom_call.1} parent=507 // loop_header
          %s873 = sphi 0, %s877
          %p874 = scmp.ge.s32.totalorder %s873, 1
          %s878 = sphi %s867, %s867
          %s879 = sphi %s869, %s869
        $region511: #{tpu_custom_call.1} parent=507 // loop_header_branch
          %876 = sbr.rel (%p874) target = $region515
        $region512: #{tpu_custom_call.1} parent=507 // loop_body
          %v880 = vld [vmem:[%s878] sm:%s871]
          %881 = vst [vmem:[%s879] sm:%s871] %v880
        $region513: #{tpu_custom_call.1} parent=507 // loop_footer
          %s877 = sadd.s32 1, %s873
        $region514: #{tpu_custom_call.1} parent=507 // loop_footer_branch
          %872 = sbr.rel target = $region510
        $region515: #{tpu_custom_call.1} parent=507 // loop_exit
          _
      $region508: #{tpu_custom_call.1} parent=492 // pred_fallthru
        _
    $region493: #{tpu_custom_call.1} parent=1 // pred_fallthru
      _
    // Predicated region
    $region494: #{tpu_custom_call.1} parent=1 // pred_check
      %p845 = pneg %p841
    $region495: #{tpu_custom_call.1} parent=1 // pred_check_branch
      %847 = sbr.rel (%p845) target = $region497
    $region496: #{tpu_custom_call.1} parent=1 // pred_region
      %s848 = sshll.u32 1, 1
      %s849 = ssub.s32 %s848, 1
      loop: start=0, step=1, limit=1
      $region498: #{tpu_custom_call.1} parent=496 // loop_pre_header
        _
      $region499: #{tpu_custom_call.1} parent=496 // loop_header
        %s851 = sphi 0, %s855
        %p852 = scmp.ge.s32.totalorder %s851, 1
        %s856 = sphi %s837, %s837
        %s857 = sphi %s838, %s838
      $region500: #{tpu_custom_call.1} parent=496 // loop_header_branch
        %854 = sbr.rel (%p852) target = $region504
      $region501: #{tpu_custom_call.1} parent=496 // loop_body
        %v858 = vld [vmem:[%s856] sm:%s849]
        %859 = vst [vmem:[%s857] sm:%s849] %v858
      $region502: #{tpu_custom_call.1} parent=496 // loop_footer
        %s855 = sadd.s32 1, %s851
      $region503: #{tpu_custom_call.1} parent=496 // loop_footer_branch
        %850 = sbr.rel target = $region499
      $region504: #{tpu_custom_call.1} parent=496 // loop_exit
        _
    $region497: #{tpu_custom_call.1} parent=1 // pred_fallthru
      _
    // Predicated region
    $region516: #{tpu_custom_call.1} parent=1 // pred_check
      _
    $region517: #{tpu_custom_call.1} parent=1 // pred_check_branch
      %884 = sbr.rel (0) target = $region519
    $region518: #{tpu_custom_call.1} parent=1 // pred_region
      %885 = vsyncadd %s839, 16
    $region519: #{tpu_custom_call.1} parent=1 // pred_fallthru
      _
    %s886 = sadd.s32 %s21, 17
    %s887 = sld [smem:[#allocation5 + %s886]]
    %s888 = scalar_lea.vmem %s1, %s887
    %s889 = scalar_lea.vmem [#allocation2], 17
    %s890 = scalar_lea.sflag [#allocation3], 17
    %p892 = scmp.lt.u32.totalorder 1, 8
    %p893 = pneg %p892
    // Predicated region
    $region520: #{tpu_custom_call.1} parent=1 // pred_check
      _
    $region521: #{tpu_custom_call.1} parent=1 // pred_check_branch
      %895 = sbr.rel (%p892) target = $region523
    $region522: #{tpu_custom_call.1} parent=1 // pred_region
      %s911 = sand.u32 1, 7
      %p912 = scmp.eq.s32.totalorder %s911, 0
      %p913 = pneg %p912
      // Predicated region
      $region535: #{tpu_custom_call.1} parent=522 // pred_check
        _
      $region536: #{tpu_custom_call.1} parent=522 // pred_check_branch
        %915 = sbr.rel (%p912) target = $region538
      $region537: #{tpu_custom_call.1} parent=522 // pred_region
        %s916 = sand.u32 1, 7
        %s917 = ssub.s32 1, %s916
        %s918 = scalar_lea.vmem %s888, %s917
        %s919 = ssub.s32 1, %s916
        %s920 = scalar_lea.vmem %s889, %s919 [#allocation2]
        %s921 = sshll.u32 1, %s916
        %s922 = ssub.s32 %s921, 1
        loop: start=0, step=1, limit=1
        $region539: #{tpu_custom_call.1} parent=537 // loop_pre_header
          _
        $region540: #{tpu_custom_call.1} parent=537 // loop_header
          %s924 = sphi 0, %s928
          %p925 = scmp.ge.s32.totalorder %s924, 1
          %s929 = sphi %s918, %s918
          %s930 = sphi %s920, %s920
        $region541: #{tpu_custom_call.1} parent=537 // loop_header_branch
          %927 = sbr.rel (%p925) target = $region545
        $region542: #{tpu_custom_call.1} parent=537 // loop_body
          %v931 = vld [vmem:[%s929] sm:%s922]
          %932 = vst [vmem:[%s930] sm:%s922] %v931
        $region543: #{tpu_custom_call.1} parent=537 // loop_footer
          %s928 = sadd.s32 1, %s924
        $region544: #{tpu_custom_call.1} parent=537 // loop_footer_branch
          %923 = sbr.rel target = $region540
        $region545: #{tpu_custom_call.1} parent=537 // loop_exit
          _
      $region538: #{tpu_custom_call.1} parent=522 // pred_fallthru
        _
    $region523: #{tpu_custom_call.1} parent=1 // pred_fallthru
      _
    // Predicated region
    $region524: #{tpu_custom_call.1} parent=1 // pred_check
      %p896 = pneg %p892
    $region525: #{tpu_custom_call.1} parent=1 // pred_check_branch
      %898 = sbr.rel (%p896) target = $region527
    $region526: #{tpu_custom_call.1} parent=1 // pred_region
      %s899 = sshll.u32 1, 1
      %s900 = ssub.s32 %s899, 1
      loop: start=0, step=1, limit=1
      $region528: #{tpu_custom_call.1} parent=526 // loop_pre_header
        _
      $region529: #{tpu_custom_call.1} parent=526 // loop_header
        %s902 = sphi 0, %s906
        %p903 = scmp.ge.s32.totalorder %s902, 1
        %s907 = sphi %s888, %s888
        %s908 = sphi %s889, %s889
      $region530: #{tpu_custom_call.1} parent=526 // loop_header_branch
        %905 = sbr.rel (%p903) target = $region534
      $region531: #{tpu_custom_call.1} parent=526 // loop_body
        %v909 = vld [vmem:[%s907] sm:%s900]
        %910 = vst [vmem:[%s908] sm:%s900] %v909
      $region532: #{tpu_custom_call.1} parent=526 // loop_footer
        %s906 = sadd.s32 1, %s902
      $region533: #{tpu_custom_call.1} parent=526 // loop_footer_branch
        %901 = sbr.rel target = $region529
      $region534: #{tpu_custom_call.1} parent=526 // loop_exit
        _
    $region527: #{tpu_custom_call.1} parent=1 // pred_fallthru
      _
    // Predicated region
    $region546: #{tpu_custom_call.1} parent=1 // pred_check
      _
    $region547: #{tpu_custom_call.1} parent=1 // pred_check_branch
      %935 = sbr.rel (0) target = $region549
    $region548: #{tpu_custom_call.1} parent=1 // pred_region
      %936 = vsyncadd %s890, 16
    $region549: #{tpu_custom_call.1} parent=1 // pred_fallthru
      _
    %s937 = sadd.s32 %s21, 18
    %s938 = sld [smem:[#allocation5 + %s937]]
    %s939 = scalar_lea.vmem %s1, %s938
    %s940 = scalar_lea.vmem [#allocation2], 18
    %s941 = scalar_lea.sflag [#allocation3], 18
    %p943 = scmp.lt.u32.totalorder 1, 8
    %p944 = pneg %p943
    // Predicated region
    $region550: #{tpu_custom_call.1} parent=1 // pred_check
      _
    $region551: #{tpu_custom_call.1} parent=1 // pred_check_branch
      %946 = sbr.rel (%p943) target = $region553
    $region552: #{tpu_custom_call.1} parent=1 // pred_region
      %s962 = sand.u32 1, 7
      %p963 = scmp.eq.s32.totalorder %s962, 0
      %p964 = pneg %p963
      // Predicated region
      $region565: #{tpu_custom_call.1} parent=552 // pred_check
        _
      $region566: #{tpu_custom_call.1} parent=552 // pred_check_branch
        %966 = sbr.rel (%p963) target = $region568
      $region567: #{tpu_custom_call.1} parent=552 // pred_region
        %s967 = sand.u32 1, 7
        %s968 = ssub.s32 1, %s967
        %s969 = scalar_lea.vmem %s939, %s968
        %s970 = ssub.s32 1, %s967
        %s971 = scalar_lea.vmem %s940, %s970 [#allocation2]
        %s972 = sshll.u32 1, %s967
        %s973 = ssub.s32 %s972, 1
        loop: start=0, step=1, limit=1
        $region569: #{tpu_custom_call.1} parent=567 // loop_pre_header
          _
        $region570: #{tpu_custom_call.1} parent=567 // loop_header
          %s975 = sphi 0, %s979
          %p976 = scmp.ge.s32.totalorder %s975, 1
          %s980 = sphi %s969, %s969
          %s981 = sphi %s971, %s971
        $region571: #{tpu_custom_call.1} parent=567 // loop_header_branch
          %978 = sbr.rel (%p976) target = $region575
        $region572: #{tpu_custom_call.1} parent=567 // loop_body
          %v982 = vld [vmem:[%s980] sm:%s973]
          %983 = vst [vmem:[%s981] sm:%s973] %v982
        $region573: #{tpu_custom_call.1} parent=567 // loop_footer
          %s979 = sadd.s32 1, %s975
        $region574: #{tpu_custom_call.1} parent=567 // loop_footer_branch
          %974 = sbr.rel target = $region570
        $region575: #{tpu_custom_call.1} parent=567 // loop_exit
          _
      $region568: #{tpu_custom_call.1} parent=552 // pred_fallthru
        _
    $region553: #{tpu_custom_call.1} parent=1 // pred_fallthru
      _
    // Predicated region
    $region554: #{tpu_custom_call.1} parent=1 // pred_check
      %p947 = pneg %p943
    $region555: #{tpu_custom_call.1} parent=1 // pred_check_branch
      %949 = sbr.rel (%p947) target = $region557
    $region556: #{tpu_custom_call.1} parent=1 // pred_region
      %s950 = sshll.u32 1, 1
      %s951 = ssub.s32 %s950, 1
      loop: start=0, step=1, limit=1
      $region558: #{tpu_custom_call.1} parent=556 // loop_pre_header
        _
      $region559: #{tpu_custom_call.1} parent=556 // loop_header
        %s953 = sphi 0, %s957
        %p954 = scmp.ge.s32.totalorder %s953, 1
        %s958 = sphi %s939, %s939
        %s959 = sphi %s940, %s940
      $region560: #{tpu_custom_call.1} parent=556 // loop_header_branch
        %956 = sbr.rel (%p954) target = $region564
      $region561: #{tpu_custom_call.1} parent=556 // loop_body
        %v960 = vld [vmem:[%s958] sm:%s951]
        %961 = vst [vmem:[%s959] sm:%s951] %v960
      $region562: #{tpu_custom_call.1} parent=556 // loop_footer
        %s957 = sadd.s32 1, %s953
      $region563: #{tpu_custom_call.1} parent=556 // loop_footer_branch
        %952 = sbr.rel target = $region559
      $region564: #{tpu_custom_call.1} parent=556 // loop_exit
        _
    $region557: #{tpu_custom_call.1} parent=1 // pred_fallthru
      _
    // Predicated region
    $region576: #{tpu_custom_call.1} parent=1 // pred_check
      _
    $region577: #{tpu_custom_call.1} parent=1 // pred_check_branch
      %986 = sbr.rel (0) target = $region579
    $region578: #{tpu_custom_call.1} parent=1 // pred_region
      %987 = vsyncadd %s941, 16
    $region579: #{tpu_custom_call.1} parent=1 // pred_fallthru
      _
    %s988 = sadd.s32 %s21, 19
    %s989 = sld [smem:[#allocation5 + %s988]]
    %s990 = scalar_lea.vmem %s1, %s989
    %s991 = scalar_lea.vmem [#allocation2], 19
    %s992 = scalar_lea.sflag [#allocation3], 19
    %p994 = scmp.lt.u32.totalorder 1, 8
    %p995 = pneg %p994
    // Predicated region
    $region580: #{tpu_custom_call.1} parent=1 // pred_check
      _
    $region581: #{tpu_custom_call.1} parent=1 // pred_check_branch
      %997 = sbr.rel (%p994) target = $region583
    $region582: #{tpu_custom_call.1} parent=1 // pred_region
      %s1013 = sand.u32 1, 7
      %p1014 = scmp.eq.s32.totalorder %s1013, 0
      %p1015 = pneg %p1014
      // Predicated region
      $region595: #{tpu_custom_call.1} parent=582 // pred_check
        _
      $region596: #{tpu_custom_call.1} parent=582 // pred_check_branch
        %1017 = sbr.rel (%p1014) target = $region598
      $region597: #{tpu_custom_call.1} parent=582 // pred_region
        %s1018 = sand.u32 1, 7
        %s1019 = ssub.s32 1, %s1018
        %s1020 = scalar_lea.vmem %s990, %s1019
        %s1021 = ssub.s32 1, %s1018
        %s1022 = scalar_lea.vmem %s991, %s1021 [#allocation2]
        %s1023 = sshll.u32 1, %s1018
        %s1024 = ssub.s32 %s1023, 1
        loop: start=0, step=1, limit=1
        $region599: #{tpu_custom_call.1} parent=597 // loop_pre_header
          _
        $region600: #{tpu_custom_call.1} parent=597 // loop_header
          %s1026 = sphi 0, %s1030
          %p1027 = scmp.ge.s32.totalorder %s1026, 1
          %s1031 = sphi %s1020, %s1020
          %s1032 = sphi %s1022, %s1022
        $region601: #{tpu_custom_call.1} parent=597 // loop_header_branch
          %1029 = sbr.rel (%p1027) target = $region605
        $region602: #{tpu_custom_call.1} parent=597 // loop_body
          %v1033 = vld [vmem:[%s1031] sm:%s1024]
          %1034 = vst [vmem:[%s1032] sm:%s1024] %v1033
        $region603: #{tpu_custom_call.1} parent=597 // loop_footer
          %s1030 = sadd.s32 1, %s1026
        $region604: #{tpu_custom_call.1} parent=597 // loop_footer_branch
          %1025 = sbr.rel target = $region600
        $region605: #{tpu_custom_call.1} parent=597 // loop_exit
          _
      $region598: #{tpu_custom_call.1} parent=582 // pred_fallthru
        _
    $region583: #{tpu_custom_call.1} parent=1 // pred_fallthru
      _
    // Predicated region
    $region584: #{tpu_custom_call.1} parent=1 // pred_check
      %p998 = pneg %p994
    $region585: #{tpu_custom_call.1} parent=1 // pred_check_branch
      %1000 = sbr.rel (%p998) target = $region587
    $region586: #{tpu_custom_call.1} parent=1 // pred_region
      %s1001 = sshll.u32 1, 1
      %s1002 = ssub.s32 %s1001, 1
      loop: start=0, step=1, limit=1
      $region588: #{tpu_custom_call.1} parent=586 // loop_pre_header
        _
      $region589: #{tpu_custom_call.1} parent=586 // loop_header
        %s1004 = sphi 0, %s1008
        %p1005 = scmp.ge.s32.totalorder %s1004, 1
        %s1009 = sphi %s990, %s990
        %s1010 = sphi %s991, %s991
      $region590: #{tpu_custom_call.1} parent=586 // loop_header_branch
        %1007 = sbr.rel (%p1005) target = $region594
      $region591: #{tpu_custom_call.1} parent=586 // loop_body
        %v1011 = vld [vmem:[%s1009] sm:%s1002]
        %1012 = vst [vmem:[%s1010] sm:%s1002] %v1011
      $region592: #{tpu_custom_call.1} parent=586 // loop_footer
        %s1008 = sadd.s32 1, %s1004
      $region593: #{tpu_custom_call.1} parent=586 // loop_footer_branch
        %1003 = sbr.rel target = $region589
      $region594: #{tpu_custom_call.1} parent=586 // loop_exit
        _
    $region587: #{tpu_custom_call.1} parent=1 // pred_fallthru
      _
    // Predicated region
    $region606: #{tpu_custom_call.1} parent=1 // pred_check
      _
    $region607: #{tpu_custom_call.1} parent=1 // pred_check_branch
      %1037 = sbr.rel (0) target = $region609
    $region608: #{tpu_custom_call.1} parent=1 // pred_region
      %1038 = vsyncadd %s992, 16
    $region609: #{tpu_custom_call.1} parent=1 // pred_fallthru
      _
    %s1039 = sadd.s32 %s21, 20
    %s1040 = sld [smem:[#allocation5 + %s1039]]
    %s1041 = scalar_lea.vmem %s1, %s1040
    %s1042 = scalar_lea.vmem [#allocation2], 20
    %s1043 = scalar_lea.sflag [#allocation3], 20
    %p1045 = scmp.lt.u32.totalorder 1, 8
    %p1046 = pneg %p1045
    // Predicated region
    $region610: #{tpu_custom_call.1} parent=1 // pred_check
      _
    $region611: #{tpu_custom_call.1} parent=1 // pred_check_branch
      %1048 = sbr.rel (%p1045) target = $region613
    $region612: #{tpu_custom_call.1} parent=1 // pred_region
      %s1064 = sand.u32 1, 7
      %p1065 = scmp.eq.s32.totalorder %s1064, 0
      %p1066 = pneg %p1065
      // Predicated region
      $region625: #{tpu_custom_call.1} parent=612 // pred_check
        _
      $region626: #{tpu_custom_call.1} parent=612 // pred_check_branch
        %1068 = sbr.rel (%p1065) target = $region628
      $region627: #{tpu_custom_call.1} parent=612 // pred_region
        %s1069 = sand.u32 1, 7
        %s1070 = ssub.s32 1, %s1069
        %s1071 = scalar_lea.vmem %s1041, %s1070
        %s1072 = ssub.s32 1, %s1069
        %s1073 = scalar_lea.vmem %s1042, %s1072 [#allocation2]
        %s1074 = sshll.u32 1, %s1069
        %s1075 = ssub.s32 %s1074, 1
        loop: start=0, step=1, limit=1
        $region629: #{tpu_custom_call.1} parent=627 // loop_pre_header
          _
        $region630: #{tpu_custom_call.1} parent=627 // loop_header
          %s1077 = sphi 0, %s1081
          %p1078 = scmp.ge.s32.totalorder %s1077, 1
          %s1082 = sphi %s1071, %s1071
          %s1083 = sphi %s1073, %s1073
        $region631: #{tpu_custom_call.1} parent=627 // loop_header_branch
          %1080 = sbr.rel (%p1078) target = $region635
        $region632: #{tpu_custom_call.1} parent=627 // loop_body
          %v1084 = vld [vmem:[%s1082] sm:%s1075]
          %1085 = vst [vmem:[%s1083] sm:%s1075] %v1084
        $region633: #{tpu_custom_call.1} parent=627 // loop_footer
          %s1081 = sadd.s32 1, %s1077
        $region634: #{tpu_custom_call.1} parent=627 // loop_footer_branch
          %1076 = sbr.rel target = $region630
        $region635: #{tpu_custom_call.1} parent=627 // loop_exit
          _
      $region628: #{tpu_custom_call.1} parent=612 // pred_fallthru
        _
    $region613: #{tpu_custom_call.1} parent=1 // pred_fallthru
      _
    // Predicated region
    $region614: #{tpu_custom_call.1} parent=1 // pred_check
      %p1049 = pneg %p1045
    $region615: #{tpu_custom_call.1} parent=1 // pred_check_branch
      %1051 = sbr.rel (%p1049) target = $region617
    $region616: #{tpu_custom_call.1} parent=1 // pred_region
      %s1052 = sshll.u32 1, 1
      %s1053 = ssub.s32 %s1052, 1
      loop: start=0, step=1, limit=1
      $region618: #{tpu_custom_call.1} parent=616 // loop_pre_header
        _
      $region619: #{tpu_custom_call.1} parent=616 // loop_header
        %s1055 = sphi 0, %s1059
        %p1056 = scmp.ge.s32.totalorder %s1055, 1
        %s1060 = sphi %s1041, %s1041
        %s1061 = sphi %s1042, %s1042
      $region620: #{tpu_custom_call.1} parent=616 // loop_header_branch
        %1058 = sbr.rel (%p1056) target = $region624
      $region621: #{tpu_custom_call.1} parent=616 // loop_body
        %v1062 = vld [vmem:[%s1060] sm:%s1053]
        %1063 = vst [vmem:[%s1061] sm:%s1053] %v1062
      $region622: #{tpu_custom_call.1} parent=616 // loop_footer
        %s1059 = sadd.s32 1, %s1055
      $region623: #{tpu_custom_call.1} parent=616 // loop_footer_branch
        %1054 = sbr.rel target = $region619
      $region624: #{tpu_custom_call.1} parent=616 // loop_exit
        _
    $region617: #{tpu_custom_call.1} parent=1 // pred_fallthru
      _
    // Predicated region
    $region636: #{tpu_custom_call.1} parent=1 // pred_check
      _
    $region637: #{tpu_custom_call.1} parent=1 // pred_check_branch
      %1088 = sbr.rel (0) target = $region639
    $region638: #{tpu_custom_call.1} parent=1 // pred_region
      %1089 = vsyncadd %s1043, 16
    $region639: #{tpu_custom_call.1} parent=1 // pred_fallthru
      _
    %s1090 = sadd.s32 %s21, 21
    %s1091 = sld [smem:[#allocation5 + %s1090]]
    %s1092 = scalar_lea.vmem %s1, %s1091
    %s1093 = scalar_lea.vmem [#allocation2], 21
    %s1094 = scalar_lea.sflag [#allocation3], 21
    %p1096 = scmp.lt.u32.totalorder 1, 8
    %p1097 = pneg %p1096
    // Predicated region
    $region640: #{tpu_custom_call.1} parent=1 // pred_check
      _
    $region641: #{tpu_custom_call.1} parent=1 // pred_check_branch
      %1099 = sbr.rel (%p1096) target = $region643
    $region642: #{tpu_custom_call.1} parent=1 // pred_region
      %s1115 = sand.u32 1, 7
      %p1116 = scmp.eq.s32.totalorder %s1115, 0
      %p1117 = pneg %p1116
      // Predicated region
      $region655: #{tpu_custom_call.1} parent=642 // pred_check
        _
      $region656: #{tpu_custom_call.1} parent=642 // pred_check_branch
        %1119 = sbr.rel (%p1116) target = $region658
      $region657: #{tpu_custom_call.1} parent=642 // pred_region
        %s1120 = sand.u32 1, 7
        %s1121 = ssub.s32 1, %s1120
        %s1122 = scalar_lea.vmem %s1092, %s1121
        %s1123 = ssub.s32 1, %s1120
        %s1124 = scalar_lea.vmem %s1093, %s1123 [#allocation2]
        %s1125 = sshll.u32 1, %s1120
        %s1126 = ssub.s32 %s1125, 1
        loop: start=0, step=1, limit=1
        $region659: #{tpu_custom_call.1} parent=657 // loop_pre_header
          _
        $region660: #{tpu_custom_call.1} parent=657 // loop_header
          %s1128 = sphi 0, %s1132
          %p1129 = scmp.ge.s32.totalorder %s1128, 1
          %s1133 = sphi %s1122, %s1122
          %s1134 = sphi %s1124, %s1124
        $region661: #{tpu_custom_call.1} parent=657 // loop_header_branch
          %1131 = sbr.rel (%p1129) target = $region665
        $region662: #{tpu_custom_call.1} parent=657 // loop_body
          %v1135 = vld [vmem:[%s1133] sm:%s1126]
          %1136 = vst [vmem:[%s1134] sm:%s1126] %v1135
        $region663: #{tpu_custom_call.1} parent=657 // loop_footer
          %s1132 = sadd.s32 1, %s1128
        $region664: #{tpu_custom_call.1} parent=657 // loop_footer_branch
          %1127 = sbr.rel target = $region660
        $region665: #{tpu_custom_call.1} parent=657 // loop_exit
          _
      $region658: #{tpu_custom_call.1} parent=642 // pred_fallthru
        _
    $region643: #{tpu_custom_call.1} parent=1 // pred_fallthru
      _
    // Predicated region
    $region644: #{tpu_custom_call.1} parent=1 // pred_check
      %p1100 = pneg %p1096
    $region645: #{tpu_custom_call.1} parent=1 // pred_check_branch
      %1102 = sbr.rel (%p1100) target = $region647
    $region646: #{tpu_custom_call.1} parent=1 // pred_region
      %s1103 = sshll.u32 1, 1
      %s1104 = ssub.s32 %s1103, 1
      loop: start=0, step=1, limit=1
      $region648: #{tpu_custom_call.1} parent=646 // loop_pre_header
        _
      $region649: #{tpu_custom_call.1} parent=646 // loop_header
        %s1106 = sphi 0, %s1110
        %p1107 = scmp.ge.s32.totalorder %s1106, 1
        %s1111 = sphi %s1092, %s1092
        %s1112 = sphi %s1093, %s1093
      $region650: #{tpu_custom_call.1} parent=646 // loop_header_branch
        %1109 = sbr.rel (%p1107) target = $region654
      $region651: #{tpu_custom_call.1} parent=646 // loop_body
        %v1113 = vld [vmem:[%s1111] sm:%s1104]
        %1114 = vst [vmem:[%s1112] sm:%s1104] %v1113
      $region652: #{tpu_custom_call.1} parent=646 // loop_footer
        %s1110 = sadd.s32 1, %s1106
      $region653: #{tpu_custom_call.1} parent=646 // loop_footer_branch
        %1105 = sbr.rel target = $region649
      $region654: #{tpu_custom_call.1} parent=646 // loop_exit
        _
    $region647: #{tpu_custom_call.1} parent=1 // pred_fallthru
      _
    // Predicated region
    $region666: #{tpu_custom_call.1} parent=1 // pred_check
      _
    $region667: #{tpu_custom_call.1} parent=1 // pred_check_branch
      %1139 = sbr.rel (0) target = $region669
    $region668: #{tpu_custom_call.1} parent=1 // pred_region
      %1140 = vsyncadd %s1094, 16
    $region669: #{tpu_custom_call.1} parent=1 // pred_fallthru
      _
    %s1141 = sadd.s32 %s21, 22
    %s1142 = sld [smem:[#allocation5 + %s1141]]
    %s1143 = scalar_lea.vmem %s1, %s1142
    %s1144 = scalar_lea.vmem [#allocation2], 22
    %s1145 = scalar_lea.sflag [#allocation3], 22
    %p1147 = scmp.lt.u32.totalorder 1, 8
    %p1148 = pneg %p1147
    // Predicated region
    $region670: #{tpu_custom_call.1} parent=1 // pred_check
      _
    $region671: #{tpu_custom_call.1} parent=1 // pred_check_branch
      %1150 = sbr.rel (%p1147) target = $region673
    $region672: #{tpu_custom_call.1} parent=1 // pred_region
      %s1166 = sand.u32 1, 7
      %p1167 = scmp.eq.s32.totalorder %s1166, 0
      %p1168 = pneg %p1167
      // Predicated region
      $region685: #{tpu_custom_call.1} parent=672 // pred_check
        _
      $region686: #{tpu_custom_call.1} parent=672 // pred_check_branch
        %1170 = sbr.rel (%p1167) target = $region688
      $region687: #{tpu_custom_call.1} parent=672 // pred_region
        %s1171 = sand.u32 1, 7
        %s1172 = ssub.s32 1, %s1171
        %s1173 = scalar_lea.vmem %s1143, %s1172
        %s1174 = ssub.s32 1, %s1171
        %s1175 = scalar_lea.vmem %s1144, %s1174 [#allocation2]
        %s1176 = sshll.u32 1, %s1171
        %s1177 = ssub.s32 %s1176, 1
        loop: start=0, step=1, limit=1
        $region689: #{tpu_custom_call.1} parent=687 // loop_pre_header
          _
        $region690: #{tpu_custom_call.1} parent=687 // loop_header
          %s1179 = sphi 0, %s1183
          %p1180 = scmp.ge.s32.totalorder %s1179, 1
          %s1184 = sphi %s1173, %s1173
          %s1185 = sphi %s1175, %s1175
        $region691: #{tpu_custom_call.1} parent=687 // loop_header_branch
          %1182 = sbr.rel (%p1180) target = $region695
        $region692: #{tpu_custom_call.1} parent=687 // loop_body
          %v1186 = vld [vmem:[%s1184] sm:%s1177]
          %1187 = vst [vmem:[%s1185] sm:%s1177] %v1186
        $region693: #{tpu_custom_call.1} parent=687 // loop_footer
          %s1183 = sadd.s32 1, %s1179
        $region694: #{tpu_custom_call.1} parent=687 // loop_footer_branch
          %1178 = sbr.rel target = $region690
        $region695: #{tpu_custom_call.1} parent=687 // loop_exit
          _
      $region688: #{tpu_custom_call.1} parent=672 // pred_fallthru
        _
    $region673: #{tpu_custom_call.1} parent=1 // pred_fallthru
      _
    // Predicated region
    $region674: #{tpu_custom_call.1} parent=1 // pred_check
      %p1151 = pneg %p1147
    $region675: #{tpu_custom_call.1} parent=1 // pred_check_branch
      %1153 = sbr.rel (%p1151) target = $region677
    $region676: #{tpu_custom_call.1} parent=1 // pred_region
      %s1154 = sshll.u32 1, 1
      %s1155 = ssub.s32 %s1154, 1
      loop: start=0, step=1, limit=1
      $region678: #{tpu_custom_call.1} parent=676 // loop_pre_header
        _
      $region679: #{tpu_custom_call.1} parent=676 // loop_header
        %s1157 = sphi 0, %s1161
        %p1158 = scmp.ge.s32.totalorder %s1157, 1
        %s1162 = sphi %s1143, %s1143
        %s1163 = sphi %s1144, %s1144
      $region680: #{tpu_custom_call.1} parent=676 // loop_header_branch
        %1160 = sbr.rel (%p1158) target = $region684
      $region681: #{tpu_custom_call.1} parent=676 // loop_body
        %v1164 = vld [vmem:[%s1162] sm:%s1155]
        %1165 = vst [vmem:[%s1163] sm:%s1155] %v1164
      $region682: #{tpu_custom_call.1} parent=676 // loop_footer
        %s1161 = sadd.s32 1, %s1157
      $region683: #{tpu_custom_call.1} parent=676 // loop_footer_branch
        %1156 = sbr.rel target = $region679
      $region684: #{tpu_custom_call.1} parent=676 // loop_exit
        _
    $region677: #{tpu_custom_call.1} parent=1 // pred_fallthru
      _
    // Predicated region
    $region696: #{tpu_custom_call.1} parent=1 // pred_check
      _
    $region697: #{tpu_custom_call.1} parent=1 // pred_check_branch
      %1190 = sbr.rel (0) target = $region699
    $region698: #{tpu_custom_call.1} parent=1 // pred_region
      %1191 = vsyncadd %s1145, 16
    $region699: #{tpu_custom_call.1} parent=1 // pred_fallthru
      _
    %s1192 = sadd.s32 %s21, 23
    %s1193 = sld [smem:[#allocation5 + %s1192]]
    %s1194 = scalar_lea.vmem %s1, %s1193
    %s1195 = scalar_lea.vmem [#allocation2], 23
    %s1196 = scalar_lea.sflag [#allocation3], 23
    %p1198 = scmp.lt.u32.totalorder 1, 8
    %p1199 = pneg %p1198
    // Predicated region
    $region700: #{tpu_custom_call.1} parent=1 // pred_check
      _
    $region701: #{tpu_custom_call.1} parent=1 // pred_check_branch
      %1201 = sbr.rel (%p1198) target = $region703
    $region702: #{tpu_custom_call.1} parent=1 // pred_region
      %s1217 = sand.u32 1, 7
      %p1218 = scmp.eq.s32.totalorder %s1217, 0
      %p1219 = pneg %p1218
      // Predicated region
      $region715: #{tpu_custom_call.1} parent=702 // pred_check
        _
      $region716: #{tpu_custom_call.1} parent=702 // pred_check_branch
        %1221 = sbr.rel (%p1218) target = $region718
      $region717: #{tpu_custom_call.1} parent=702 // pred_region
        %s1222 = sand.u32 1, 7
        %s1223 = ssub.s32 1, %s1222
        %s1224 = scalar_lea.vmem %s1194, %s1223
        %s1225 = ssub.s32 1, %s1222
        %s1226 = scalar_lea.vmem %s1195, %s1225 [#allocation2]
        %s1227 = sshll.u32 1, %s1222
        %s1228 = ssub.s32 %s1227, 1
        loop: start=0, step=1, limit=1
        $region719: #{tpu_custom_call.1} parent=717 // loop_pre_header
          _
        $region720: #{tpu_custom_call.1} parent=717 // loop_header
          %s1230 = sphi 0, %s1234
          %p1231 = scmp.ge.s32.totalorder %s1230, 1
          %s1235 = sphi %s1224, %s1224
          %s1236 = sphi %s1226, %s1226
        $region721: #{tpu_custom_call.1} parent=717 // loop_header_branch
          %1233 = sbr.rel (%p1231) target = $region725
        $region722: #{tpu_custom_call.1} parent=717 // loop_body
          %v1237 = vld [vmem:[%s1235] sm:%s1228]
          %1238 = vst [vmem:[%s1236] sm:%s1228] %v1237
        $region723: #{tpu_custom_call.1} parent=717 // loop_footer
          %s1234 = sadd.s32 1, %s1230
        $region724: #{tpu_custom_call.1} parent=717 // loop_footer_branch
          %1229 = sbr.rel target = $region720
        $region725: #{tpu_custom_call.1} parent=717 // loop_exit
          _
      $region718: #{tpu_custom_call.1} parent=702 // pred_fallthru
        _
    $region703: #{tpu_custom_call.1} parent=1 // pred_fallthru
      _
    // Predicated region
    $region704: #{tpu_custom_call.1} parent=1 // pred_check
      %p1202 = pneg %p1198
    $region705: #{tpu_custom_call.1} parent=1 // pred_check_branch
      %1204 = sbr.rel (%p1202) target = $region707
    $region706: #{tpu_custom_call.1} parent=1 // pred_region
      %s1205 = sshll.u32 1, 1
      %s1206 = ssub.s32 %s1205, 1
      loop: start=0, step=1, limit=1
      $region708: #{tpu_custom_call.1} parent=706 // loop_pre_header
        _
      $region709: #{tpu_custom_call.1} parent=706 // loop_header
        %s1208 = sphi 0, %s1212
        %p1209 = scmp.ge.s32.totalorder %s1208, 1
        %s1213 = sphi %s1194, %s1194
        %s1214 = sphi %s1195, %s1195
      $region710: #{tpu_custom_call.1} parent=706 // loop_header_branch
        %1211 = sbr.rel (%p1209) target = $region714
      $region711: #{tpu_custom_call.1} parent=706 // loop_body
        %v1215 = vld [vmem:[%s1213] sm:%s1206]
        %1216 = vst [vmem:[%s1214] sm:%s1206] %v1215
      $region712: #{tpu_custom_call.1} parent=706 // loop_footer
        %s1212 = sadd.s32 1, %s1208
      $region713: #{tpu_custom_call.1} parent=706 // loop_footer_branch
        %1207 = sbr.rel target = $region709
      $region714: #{tpu_custom_call.1} parent=706 // loop_exit
        _
    $region707: #{tpu_custom_call.1} parent=1 // pred_fallthru
      _
    // Predicated region
    $region726: #{tpu_custom_call.1} parent=1 // pred_check
      _
    $region727: #{tpu_custom_call.1} parent=1 // pred_check_branch
      %1241 = sbr.rel (0) target = $region729
    $region728: #{tpu_custom_call.1} parent=1 // pred_region
      %1242 = vsyncadd %s1196, 16
    $region729: #{tpu_custom_call.1} parent=1 // pred_fallthru
      _
    %s1243 = sadd.s32 %s21, 24
    %s1244 = sld [smem:[#allocation5 + %s1243]]
    %s1245 = scalar_lea.vmem %s1, %s1244
    %s1246 = scalar_lea.vmem [#allocation2], 24
    %s1247 = scalar_lea.sflag [#allocation3], 24
    %p1249 = scmp.lt.u32.totalorder 1, 8
    %p1250 = pneg %p1249
    // Predicated region
    $region730: #{tpu_custom_call.1} parent=1 // pred_check
      _
    $region731: #{tpu_custom_call.1} parent=1 // pred_check_branch
      %1252 = sbr.rel (%p1249) target = $region733
    $region732: #{tpu_custom_call.1} parent=1 // pred_region
      %s1268 = sand.u32 1, 7
      %p1269 = scmp.eq.s32.totalorder %s1268, 0
      %p1270 = pneg %p1269
      // Predicated region
      $region745: #{tpu_custom_call.1} parent=732 // pred_check
        _
      $region746: #{tpu_custom_call.1} parent=732 // pred_check_branch
        %1272 = sbr.rel (%p1269) target = $region748
      $region747: #{tpu_custom_call.1} parent=732 // pred_region
        %s1273 = sand.u32 1, 7
        %s1274 = ssub.s32 1, %s1273
        %s1275 = scalar_lea.vmem %s1245, %s1274
        %s1276 = ssub.s32 1, %s1273
        %s1277 = scalar_lea.vmem %s1246, %s1276 [#allocation2]
        %s1278 = sshll.u32 1, %s1273
        %s1279 = ssub.s32 %s1278, 1
        loop: start=0, step=1, limit=1
        $region749: #{tpu_custom_call.1} parent=747 // loop_pre_header
          _
        $region750: #{tpu_custom_call.1} parent=747 // loop_header
          %s1281 = sphi 0, %s1285
          %p1282 = scmp.ge.s32.totalorder %s1281, 1
          %s1286 = sphi %s1275, %s1275
          %s1287 = sphi %s1277, %s1277
        $region751: #{tpu_custom_call.1} parent=747 // loop_header_branch
          %1284 = sbr.rel (%p1282) target = $region755
        $region752: #{tpu_custom_call.1} parent=747 // loop_body
          %v1288 = vld [vmem:[%s1286] sm:%s1279]
          %1289 = vst [vmem:[%s1287] sm:%s1279] %v1288
        $region753: #{tpu_custom_call.1} parent=747 // loop_footer
          %s1285 = sadd.s32 1, %s1281
        $region754: #{tpu_custom_call.1} parent=747 // loop_footer_branch
          %1280 = sbr.rel target = $region750
        $region755: #{tpu_custom_call.1} parent=747 // loop_exit
          _
      $region748: #{tpu_custom_call.1} parent=732 // pred_fallthru
        _
    $region733: #{tpu_custom_call.1} parent=1 // pred_fallthru
      _
    // Predicated region
    $region734: #{tpu_custom_call.1} parent=1 // pred_check
      %p1253 = pneg %p1249
    $region735: #{tpu_custom_call.1} parent=1 // pred_check_branch
      %1255 = sbr.rel (%p1253) target = $region737
    $region736: #{tpu_custom_call.1} parent=1 // pred_region
      %s1256 = sshll.u32 1, 1
      %s1257 = ssub.s32 %s1256, 1
      loop: start=0, step=1, limit=1
      $region738: #{tpu_custom_call.1} parent=736 // loop_pre_header
        _
      $region739: #{tpu_custom_call.1} parent=736 // loop_header
        %s1259 = sphi 0, %s1263
        %p1260 = scmp.ge.s32.totalorder %s1259, 1
        %s1264 = sphi %s1245, %s1245
        %s1265 = sphi %s1246, %s1246
      $region740: #{tpu_custom_call.1} parent=736 // loop_header_branch
        %1262 = sbr.rel (%p1260) target = $region744
      $region741: #{tpu_custom_call.1} parent=736 // loop_body
        %v1266 = vld [vmem:[%s1264] sm:%s1257]
        %1267 = vst [vmem:[%s1265] sm:%s1257] %v1266
      $region742: #{tpu_custom_call.1} parent=736 // loop_footer
        %s1263 = sadd.s32 1, %s1259
      $region743: #{tpu_custom_call.1} parent=736 // loop_footer_branch
        %1258 = sbr.rel target = $region739
      $region744: #{tpu_custom_call.1} parent=736 // loop_exit
        _
    $region737: #{tpu_custom_call.1} parent=1 // pred_fallthru
      _
    // Predicated region
    $region756: #{tpu_custom_call.1} parent=1 // pred_check
      _
    $region757: #{tpu_custom_call.1} parent=1 // pred_check_branch
      %1292 = sbr.rel (0) target = $region759
    $region758: #{tpu_custom_call.1} parent=1 // pred_region
      %1293 = vsyncadd %s1247, 16
    $region759: #{tpu_custom_call.1} parent=1 // pred_fallthru
      _
    %s1294 = sadd.s32 %s21, 25
    %s1295 = sld [smem:[#allocation5 + %s1294]]
    %s1296 = scalar_lea.vmem %s1, %s1295
    %s1297 = scalar_lea.vmem [#allocation2], 25
    %s1298 = scalar_lea.sflag [#allocation3], 25
    %p1300 = scmp.lt.u32.totalorder 1, 8
    %p1301 = pneg %p1300
    // Predicated region
    $region760: #{tpu_custom_call.1} parent=1 // pred_check
      _
    $region761: #{tpu_custom_call.1} parent=1 // pred_check_branch
      %1303 = sbr.rel (%p1300) target = $region763
    $region762: #{tpu_custom_call.1} parent=1 // pred_region
      %s1319 = sand.u32 1, 7
      %p1320 = scmp.eq.s32.totalorder %s1319, 0
      %p1321 = pneg %p1320
      // Predicated region
      $region775: #{tpu_custom_call.1} parent=762 // pred_check
        _
      $region776: #{tpu_custom_call.1} parent=762 // pred_check_branch
        %1323 = sbr.rel (%p1320) target = $region778
      $region777: #{tpu_custom_call.1} parent=762 // pred_region
        %s1324 = sand.u32 1, 7
        %s1325 = ssub.s32 1, %s1324
        %s1326 = scalar_lea.vmem %s1296, %s1325
        %s1327 = ssub.s32 1, %s1324
        %s1328 = scalar_lea.vmem %s1297, %s1327 [#allocation2]
        %s1329 = sshll.u32 1, %s1324
        %s1330 = ssub.s32 %s1329, 1
        loop: start=0, step=1, limit=1
        $region779: #{tpu_custom_call.1} parent=777 // loop_pre_header
          _
        $region780: #{tpu_custom_call.1} parent=777 // loop_header
          %s1332 = sphi 0, %s1336
          %p1333 = scmp.ge.s32.totalorder %s1332, 1
          %s1337 = sphi %s1326, %s1326
          %s1338 = sphi %s1328, %s1328
        $region781: #{tpu_custom_call.1} parent=777 // loop_header_branch
          %1335 = sbr.rel (%p1333) target = $region785
        $region782: #{tpu_custom_call.1} parent=777 // loop_body
          %v1339 = vld [vmem:[%s1337] sm:%s1330]
          %1340 = vst [vmem:[%s1338] sm:%s1330] %v1339
        $region783: #{tpu_custom_call.1} parent=777 // loop_footer
          %s1336 = sadd.s32 1, %s1332
        $region784: #{tpu_custom_call.1} parent=777 // loop_footer_branch
          %1331 = sbr.rel target = $region780
        $region785: #{tpu_custom_call.1} parent=777 // loop_exit
          _
      $region778: #{tpu_custom_call.1} parent=762 // pred_fallthru
        _
    $region763: #{tpu_custom_call.1} parent=1 // pred_fallthru
      _
    // Predicated region
    $region764: #{tpu_custom_call.1} parent=1 // pred_check
      %p1304 = pneg %p1300
    $region765: #{tpu_custom_call.1} parent=1 // pred_check_branch
      %1306 = sbr.rel (%p1304) target = $region767
    $region766: #{tpu_custom_call.1} parent=1 // pred_region
      %s1307 = sshll.u32 1, 1
      %s1308 = ssub.s32 %s1307, 1
      loop: start=0, step=1, limit=1
      $region768: #{tpu_custom_call.1} parent=766 // loop_pre_header
        _
      $region769: #{tpu_custom_call.1} parent=766 // loop_header
        %s1310 = sphi 0, %s1314
        %p1311 = scmp.ge.s32.totalorder %s1310, 1
        %s1315 = sphi %s1296, %s1296
        %s1316 = sphi %s1297, %s1297
      $region770: #{tpu_custom_call.1} parent=766 // loop_header_branch
        %1313 = sbr.rel (%p1311) target = $region774
      $region771: #{tpu_custom_call.1} parent=766 // loop_body
        %v1317 = vld [vmem:[%s1315] sm:%s1308]
        %1318 = vst [vmem:[%s1316] sm:%s1308] %v1317
      $region772: #{tpu_custom_call.1} parent=766 // loop_footer
        %s1314 = sadd.s32 1, %s1310
      $region773: #{tpu_custom_call.1} parent=766 // loop_footer_branch
        %1309 = sbr.rel target = $region769
      $region774: #{tpu_custom_call.1} parent=766 // loop_exit
        _
    $region767: #{tpu_custom_call.1} parent=1 // pred_fallthru
      _
    // Predicated region
    $region786: #{tpu_custom_call.1} parent=1 // pred_check
      _
    $region787: #{tpu_custom_call.1} parent=1 // pred_check_branch
      %1343 = sbr.rel (0) target = $region789
    $region788: #{tpu_custom_call.1} parent=1 // pred_region
      %1344 = vsyncadd %s1298, 16
    $region789: #{tpu_custom_call.1} parent=1 // pred_fallthru
      _
    %s1345 = sadd.s32 %s21, 26
    %s1346 = sld [smem:[#allocation5 + %s1345]]
    %s1347 = scalar_lea.vmem %s1, %s1346
    %s1348 = scalar_lea.vmem [#allocation2], 26
    %s1349 = scalar_lea.sflag [#allocation3], 26
    %p1351 = scmp.lt.u32.totalorder 1, 8
    %p1352 = pneg %p1351
    // Predicated region
    $region790: #{tpu_custom_call.1} parent=1 // pred_check
      _
    $region791: #{tpu_custom_call.1} parent=1 // pred_check_branch
      %1354 = sbr.rel (%p1351) target = $region793
    $region792: #{tpu_custom_call.1} parent=1 // pred_region
      %s1370 = sand.u32 1, 7
      %p1371 = scmp.eq.s32.totalorder %s1370, 0
      %p1372 = pneg %p1371
      // Predicated region
      $region805: #{tpu_custom_call.1} parent=792 // pred_check
        _
      $region806: #{tpu_custom_call.1} parent=792 // pred_check_branch
        %1374 = sbr.rel (%p1371) target = $region808
      $region807: #{tpu_custom_call.1} parent=792 // pred_region
        %s1375 = sand.u32 1, 7
        %s1376 = ssub.s32 1, %s1375
        %s1377 = scalar_lea.vmem %s1347, %s1376
        %s1378 = ssub.s32 1, %s1375
        %s1379 = scalar_lea.vmem %s1348, %s1378 [#allocation2]
        %s1380 = sshll.u32 1, %s1375
        %s1381 = ssub.s32 %s1380, 1
        loop: start=0, step=1, limit=1
        $region809: #{tpu_custom_call.1} parent=807 // loop_pre_header
          _
        $region810: #{tpu_custom_call.1} parent=807 // loop_header
          %s1383 = sphi 0, %s1387
          %p1384 = scmp.ge.s32.totalorder %s1383, 1
          %s1388 = sphi %s1377, %s1377
          %s1389 = sphi %s1379, %s1379
        $region811: #{tpu_custom_call.1} parent=807 // loop_header_branch
          %1386 = sbr.rel (%p1384) target = $region815
        $region812: #{tpu_custom_call.1} parent=807 // loop_body
          %v1390 = vld [vmem:[%s1388] sm:%s1381]
          %1391 = vst [vmem:[%s1389] sm:%s1381] %v1390
        $region813: #{tpu_custom_call.1} parent=807 // loop_footer
          %s1387 = sadd.s32 1, %s1383
        $region814: #{tpu_custom_call.1} parent=807 // loop_footer_branch
          %1382 = sbr.rel target = $region810
        $region815: #{tpu_custom_call.1} parent=807 // loop_exit
          _
      $region808: #{tpu_custom_call.1} parent=792 // pred_fallthru
        _
    $region793: #{tpu_custom_call.1} parent=1 // pred_fallthru
      _
    // Predicated region
    $region794: #{tpu_custom_call.1} parent=1 // pred_check
      %p1355 = pneg %p1351
    $region795: #{tpu_custom_call.1} parent=1 // pred_check_branch
      %1357 = sbr.rel (%p1355) target = $region797
    $region796: #{tpu_custom_call.1} parent=1 // pred_region
      %s1358 = sshll.u32 1, 1
      %s1359 = ssub.s32 %s1358, 1
      loop: start=0, step=1, limit=1
      $region798: #{tpu_custom_call.1} parent=796 // loop_pre_header
        _
      $region799: #{tpu_custom_call.1} parent=796 // loop_header
        %s1361 = sphi 0, %s1365
        %p1362 = scmp.ge.s32.totalorder %s1361, 1
        %s1366 = sphi %s1347, %s1347
        %s1367 = sphi %s1348, %s1348
      $region800: #{tpu_custom_call.1} parent=796 // loop_header_branch
        %1364 = sbr.rel (%p1362) target = $region804
      $region801: #{tpu_custom_call.1} parent=796 // loop_body
        %v1368 = vld [vmem:[%s1366] sm:%s1359]
        %1369 = vst [vmem:[%s1367] sm:%s1359] %v1368
      $region802: #{tpu_custom_call.1} parent=796 // loop_footer
        %s1365 = sadd.s32 1, %s1361
      $region803: #{tpu_custom_call.1} parent=796 // loop_footer_branch
        %1360 = sbr.rel target = $region799
      $region804: #{tpu_custom_call.1} parent=796 // loop_exit
        _
    $region797: #{tpu_custom_call.1} parent=1 // pred_fallthru
      _
    // Predicated region
    $region816: #{tpu_custom_call.1} parent=1 // pred_check
      _
    $region817: #{tpu_custom_call.1} parent=1 // pred_check_branch
      %1394 = sbr.rel (0) target = $region819
    $region818: #{tpu_custom_call.1} parent=1 // pred_region
      %1395 = vsyncadd %s1349, 16
    $region819: #{tpu_custom_call.1} parent=1 // pred_fallthru
      _
    %s1396 = sadd.s32 %s21, 27
    %s1397 = sld [smem:[#allocation5 + %s1396]]
    %s1398 = scalar_lea.vmem %s1, %s1397
    %s1399 = scalar_lea.vmem [#allocation2], 27
    %s1400 = scalar_lea.sflag [#allocation3], 27
    %p1402 = scmp.lt.u32.totalorder 1, 8
    %p1403 = pneg %p1402
    // Predicated region
    $region820: #{tpu_custom_call.1} parent=1 // pred_check
      _
    $region821: #{tpu_custom_call.1} parent=1 // pred_check_branch
      %1405 = sbr.rel (%p1402) target = $region823
    $region822: #{tpu_custom_call.1} parent=1 // pred_region
      %s1421 = sand.u32 1, 7
      %p1422 = scmp.eq.s32.totalorder %s1421, 0
      %p1423 = pneg %p1422
      // Predicated region
      $region835: #{tpu_custom_call.1} parent=822 // pred_check
        _
      $region836: #{tpu_custom_call.1} parent=822 // pred_check_branch
        %1425 = sbr.rel (%p1422) target = $region838
      $region837: #{tpu_custom_call.1} parent=822 // pred_region
        %s1426 = sand.u32 1, 7
        %s1427 = ssub.s32 1, %s1426
        %s1428 = scalar_lea.vmem %s1398, %s1427
        %s1429 = ssub.s32 1, %s1426
        %s1430 = scalar_lea.vmem %s1399, %s1429 [#allocation2]
        %s1431 = sshll.u32 1, %s1426
        %s1432 = ssub.s32 %s1431, 1
        loop: start=0, step=1, limit=1
        $region839: #{tpu_custom_call.1} parent=837 // loop_pre_header
          _
        $region840: #{tpu_custom_call.1} parent=837 // loop_header
          %s1434 = sphi 0, %s1438
          %p1435 = scmp.ge.s32.totalorder %s1434, 1
          %s1439 = sphi %s1428, %s1428
          %s1440 = sphi %s1430, %s1430
        $region841: #{tpu_custom_call.1} parent=837 // loop_header_branch
          %1437 = sbr.rel (%p1435) target = $region845
        $region842: #{tpu_custom_call.1} parent=837 // loop_body
          %v1441 = vld [vmem:[%s1439] sm:%s1432]
          %1442 = vst [vmem:[%s1440] sm:%s1432] %v1441
        $region843: #{tpu_custom_call.1} parent=837 // loop_footer
          %s1438 = sadd.s32 1, %s1434
        $region844: #{tpu_custom_call.1} parent=837 // loop_footer_branch
          %1433 = sbr.rel target = $region840
        $region845: #{tpu_custom_call.1} parent=837 // loop_exit
          _
      $region838: #{tpu_custom_call.1} parent=822 // pred_fallthru
        _
    $region823: #{tpu_custom_call.1} parent=1 // pred_fallthru
      _
    // Predicated region
    $region824: #{tpu_custom_call.1} parent=1 // pred_check
      %p1406 = pneg %p1402
    $region825: #{tpu_custom_call.1} parent=1 // pred_check_branch
      %1408 = sbr.rel (%p1406) target = $region827
    $region826: #{tpu_custom_call.1} parent=1 // pred_region
      %s1409 = sshll.u32 1, 1
      %s1410 = ssub.s32 %s1409, 1
      loop: start=0, step=1, limit=1
      $region828: #{tpu_custom_call.1} parent=826 // loop_pre_header
        _
      $region829: #{tpu_custom_call.1} parent=826 // loop_header
        %s1412 = sphi 0, %s1416
        %p1413 = scmp.ge.s32.totalorder %s1412, 1
        %s1417 = sphi %s1398, %s1398
        %s1418 = sphi %s1399, %s1399
      $region830: #{tpu_custom_call.1} parent=826 // loop_header_branch
        %1415 = sbr.rel (%p1413) target = $region834
      $region831: #{tpu_custom_call.1} parent=826 // loop_body
        %v1419 = vld [vmem:[%s1417] sm:%s1410]
        %1420 = vst [vmem:[%s1418] sm:%s1410] %v1419
      $region832: #{tpu_custom_call.1} parent=826 // loop_footer
        %s1416 = sadd.s32 1, %s1412
      $region833: #{tpu_custom_call.1} parent=826 // loop_footer_branch
        %1411 = sbr.rel target = $region829
      $region834: #{tpu_custom_call.1} parent=826 // loop_exit
        _
    $region827: #{tpu_custom_call.1} parent=1 // pred_fallthru
      _
    // Predicated region
    $region846: #{tpu_custom_call.1} parent=1 // pred_check
      _
    $region847: #{tpu_custom_call.1} parent=1 // pred_check_branch
      %1445 = sbr.rel (0) target = $region849
    $region848: #{tpu_custom_call.1} parent=1 // pred_region
      %1446 = vsyncadd %s1400, 16
    $region849: #{tpu_custom_call.1} parent=1 // pred_fallthru
      _
    %s1447 = sadd.s32 %s21, 28
    %s1448 = sld [smem:[#allocation5 + %s1447]]
    %s1449 = scalar_lea.vmem %s1, %s1448
    %s1450 = scalar_lea.vmem [#allocation2], 28
    %s1451 = scalar_lea.sflag [#allocation3], 28
    %p1453 = scmp.lt.u32.totalorder 1, 8
    %p1454 = pneg %p1453
    // Predicated region
    $region850: #{tpu_custom_call.1} parent=1 // pred_check
      _
    $region851: #{tpu_custom_call.1} parent=1 // pred_check_branch
      %1456 = sbr.rel (%p1453) target = $region853
    $region852: #{tpu_custom_call.1} parent=1 // pred_region
      %s1472 = sand.u32 1, 7
      %p1473 = scmp.eq.s32.totalorder %s1472, 0
      %p1474 = pneg %p1473
      // Predicated region
      $region865: #{tpu_custom_call.1} parent=852 // pred_check
        _
      $region866: #{tpu_custom_call.1} parent=852 // pred_check_branch
        %1476 = sbr.rel (%p1473) target = $region868
      $region867: #{tpu_custom_call.1} parent=852 // pred_region
        %s1477 = sand.u32 1, 7
        %s1478 = ssub.s32 1, %s1477
        %s1479 = scalar_lea.vmem %s1449, %s1478
        %s1480 = ssub.s32 1, %s1477
        %s1481 = scalar_lea.vmem %s1450, %s1480 [#allocation2]
        %s1482 = sshll.u32 1, %s1477
        %s1483 = ssub.s32 %s1482, 1
        loop: start=0, step=1, limit=1
        $region869: #{tpu_custom_call.1} parent=867 // loop_pre_header
          _
        $region870: #{tpu_custom_call.1} parent=867 // loop_header
          %s1485 = sphi 0, %s1489
          %p1486 = scmp.ge.s32.totalorder %s1485, 1
          %s1490 = sphi %s1479, %s1479
          %s1491 = sphi %s1481, %s1481
        $region871: #{tpu_custom_call.1} parent=867 // loop_header_branch
          %1488 = sbr.rel (%p1486) target = $region875
        $region872: #{tpu_custom_call.1} parent=867 // loop_body
          %v1492 = vld [vmem:[%s1490] sm:%s1483]
          %1493 = vst [vmem:[%s1491] sm:%s1483] %v1492
        $region873: #{tpu_custom_call.1} parent=867 // loop_footer
          %s1489 = sadd.s32 1, %s1485
        $region874: #{tpu_custom_call.1} parent=867 // loop_footer_branch
          %1484 = sbr.rel target = $region870
        $region875: #{tpu_custom_call.1} parent=867 // loop_exit
          _
      $region868: #{tpu_custom_call.1} parent=852 // pred_fallthru
        _
    $region853: #{tpu_custom_call.1} parent=1 // pred_fallthru
      _
    // Predicated region
    $region854: #{tpu_custom_call.1} parent=1 // pred_check
      %p1457 = pneg %p1453
    $region855: #{tpu_custom_call.1} parent=1 // pred_check_branch
      %1459 = sbr.rel (%p1457) target = $region857
    $region856: #{tpu_custom_call.1} parent=1 // pred_region
      %s1460 = sshll.u32 1, 1
      %s1461 = ssub.s32 %s1460, 1
      loop: start=0, step=1, limit=1
      $region858: #{tpu_custom_call.1} parent=856 // loop_pre_header
        _
      $region859: #{tpu_custom_call.1} parent=856 // loop_header
        %s1463 = sphi 0, %s1467
        %p1464 = scmp.ge.s32.totalorder %s1463, 1
        %s1468 = sphi %s1449, %s1449
        %s1469 = sphi %s1450, %s1450
      $region860: #{tpu_custom_call.1} parent=856 // loop_header_branch
        %1466 = sbr.rel (%p1464) target = $region864
      $region861: #{tpu_custom_call.1} parent=856 // loop_body
        %v1470 = vld [vmem:[%s1468] sm:%s1461]
        %1471 = vst [vmem:[%s1469] sm:%s1461] %v1470
      $region862: #{tpu_custom_call.1} parent=856 // loop_footer
        %s1467 = sadd.s32 1, %s1463
      $region863: #{tpu_custom_call.1} parent=856 // loop_footer_branch
        %1462 = sbr.rel target = $region859
      $region864: #{tpu_custom_call.1} parent=856 // loop_exit
        _
    $region857: #{tpu_custom_call.1} parent=1 // pred_fallthru
      _
    // Predicated region
    $region876: #{tpu_custom_call.1} parent=1 // pred_check
      _
    $region877: #{tpu_custom_call.1} parent=1 // pred_check_branch
      %1496 = sbr.rel (0) target = $region879
    $region878: #{tpu_custom_call.1} parent=1 // pred_region
      %1497 = vsyncadd %s1451, 16
    $region879: #{tpu_custom_call.1} parent=1 // pred_fallthru
      _
    %s1498 = sadd.s32 %s21, 29
    %s1499 = sld [smem:[#allocation5 + %s1498]]
    %s1500 = scalar_lea.vmem %s1, %s1499
    %s1501 = scalar_lea.vmem [#allocation2], 29
    %s1502 = scalar_lea.sflag [#allocation3], 29
    %p1504 = scmp.lt.u32.totalorder 1, 8
    %p1505 = pneg %p1504
    // Predicated region
    $region880: #{tpu_custom_call.1} parent=1 // pred_check
      _
    $region881: #{tpu_custom_call.1} parent=1 // pred_check_branch
      %1507 = sbr.rel (%p1504) target = $region883
    $region882: #{tpu_custom_call.1} parent=1 // pred_region
      %s1523 = sand.u32 1, 7
      %p1524 = scmp.eq.s32.totalorder %s1523, 0
      %p1525 = pneg %p1524
      // Predicated region
      $region895: #{tpu_custom_call.1} parent=882 // pred_check
        _
      $region896: #{tpu_custom_call.1} parent=882 // pred_check_branch
        %1527 = sbr.rel (%p1524) target = $region898
      $region897: #{tpu_custom_call.1} parent=882 // pred_region
        %s1528 = sand.u32 1, 7
        %s1529 = ssub.s32 1, %s1528
        %s1530 = scalar_lea.vmem %s1500, %s1529
        %s1531 = ssub.s32 1, %s1528
        %s1532 = scalar_lea.vmem %s1501, %s1531 [#allocation2]
        %s1533 = sshll.u32 1, %s1528
        %s1534 = ssub.s32 %s1533, 1
        loop: start=0, step=1, limit=1
        $region899: #{tpu_custom_call.1} parent=897 // loop_pre_header
          _
        $region900: #{tpu_custom_call.1} parent=897 // loop_header
          %s1536 = sphi 0, %s1540
          %p1537 = scmp.ge.s32.totalorder %s1536, 1
          %s1541 = sphi %s1530, %s1530
          %s1542 = sphi %s1532, %s1532
        $region901: #{tpu_custom_call.1} parent=897 // loop_header_branch
          %1539 = sbr.rel (%p1537) target = $region905
        $region902: #{tpu_custom_call.1} parent=897 // loop_body
          %v1543 = vld [vmem:[%s1541] sm:%s1534]
          %1544 = vst [vmem:[%s1542] sm:%s1534] %v1543
        $region903: #{tpu_custom_call.1} parent=897 // loop_footer
          %s1540 = sadd.s32 1, %s1536
        $region904: #{tpu_custom_call.1} parent=897 // loop_footer_branch
          %1535 = sbr.rel target = $region900
        $region905: #{tpu_custom_call.1} parent=897 // loop_exit
          _
      $region898: #{tpu_custom_call.1} parent=882 // pred_fallthru
        _
    $region883: #{tpu_custom_call.1} parent=1 // pred_fallthru
      _
    // Predicated region
    $region884: #{tpu_custom_call.1} parent=1 // pred_check
      %p1508 = pneg %p1504
    $region885: #{tpu_custom_call.1} parent=1 // pred_check_branch
      %1510 = sbr.rel (%p1508) target = $region887
    $region886: #{tpu_custom_call.1} parent=1 // pred_region
      %s1511 = sshll.u32 1, 1
      %s1512 = ssub.s32 %s1511, 1
      loop: start=0, step=1, limit=1
      $region888: #{tpu_custom_call.1} parent=886 // loop_pre_header
        _
      $region889: #{tpu_custom_call.1} parent=886 // loop_header
        %s1514 = sphi 0, %s1518
        %p1515 = scmp.ge.s32.totalorder %s1514, 1
        %s1519 = sphi %s1500, %s1500
        %s1520 = sphi %s1501, %s1501
      $region890: #{tpu_custom_call.1} parent=886 // loop_header_branch
        %1517 = sbr.rel (%p1515) target = $region894
      $region891: #{tpu_custom_call.1} parent=886 // loop_body
        %v1521 = vld [vmem:[%s1519] sm:%s1512]
        %1522 = vst [vmem:[%s1520] sm:%s1512] %v1521
      $region892: #{tpu_custom_call.1} parent=886 // loop_footer
        %s1518 = sadd.s32 1, %s1514
      $region893: #{tpu_custom_call.1} parent=886 // loop_footer_branch
        %1513 = sbr.rel target = $region889
      $region894: #{tpu_custom_call.1} parent=886 // loop_exit
        _
    $region887: #{tpu_custom_call.1} parent=1 // pred_fallthru
      _
    // Predicated region
    $region906: #{tpu_custom_call.1} parent=1 // pred_check
      _
    $region907: #{tpu_custom_call.1} parent=1 // pred_check_branch
      %1547 = sbr.rel (0) target = $region909
    $region908: #{tpu_custom_call.1} parent=1 // pred_region
      %1548 = vsyncadd %s1502, 16
    $region909: #{tpu_custom_call.1} parent=1 // pred_fallthru
      _
    %s1549 = sadd.s32 %s21, 30
    %s1550 = sld [smem:[#allocation5 + %s1549]]
    %s1551 = scalar_lea.vmem %s1, %s1550
    %s1552 = scalar_lea.vmem [#allocation2], 30
    %s1553 = scalar_lea.sflag [#allocation3], 30
    %p1555 = scmp.lt.u32.totalorder 1, 8
    %p1556 = pneg %p1555
    // Predicated region
    $region910: #{tpu_custom_call.1} parent=1 // pred_check
      _
    $region911: #{tpu_custom_call.1} parent=1 // pred_check_branch
      %1558 = sbr.rel (%p1555) target = $region913
    $region912: #{tpu_custom_call.1} parent=1 // pred_region
      %s1574 = sand.u32 1, 7
      %p1575 = scmp.eq.s32.totalorder %s1574, 0
      %p1576 = pneg %p1575
      // Predicated region
      $region925: #{tpu_custom_call.1} parent=912 // pred_check
        _
      $region926: #{tpu_custom_call.1} parent=912 // pred_check_branch
        %1578 = sbr.rel (%p1575) target = $region928
      $region927: #{tpu_custom_call.1} parent=912 // pred_region
        %s1579 = sand.u32 1, 7
        %s1580 = ssub.s32 1, %s1579
        %s1581 = scalar_lea.vmem %s1551, %s1580
        %s1582 = ssub.s32 1, %s1579
        %s1583 = scalar_lea.vmem %s1552, %s1582 [#allocation2]
        %s1584 = sshll.u32 1, %s1579
        %s1585 = ssub.s32 %s1584, 1
        loop: start=0, step=1, limit=1
        $region929: #{tpu_custom_call.1} parent=927 // loop_pre_header
          _
        $region930: #{tpu_custom_call.1} parent=927 // loop_header
          %s1587 = sphi 0, %s1591
          %p1588 = scmp.ge.s32.totalorder %s1587, 1
          %s1592 = sphi %s1581, %s1581
          %s1593 = sphi %s1583, %s1583
        $region931: #{tpu_custom_call.1} parent=927 // loop_header_branch
          %1590 = sbr.rel (%p1588) target = $region935
        $region932: #{tpu_custom_call.1} parent=927 // loop_body
          %v1594 = vld [vmem:[%s1592] sm:%s1585]
          %1595 = vst [vmem:[%s1593] sm:%s1585] %v1594
        $region933: #{tpu_custom_call.1} parent=927 // loop_footer
          %s1591 = sadd.s32 1, %s1587
        $region934: #{tpu_custom_call.1} parent=927 // loop_footer_branch
          %1586 = sbr.rel target = $region930
        $region935: #{tpu_custom_call.1} parent=927 // loop_exit
          _
      $region928: #{tpu_custom_call.1} parent=912 // pred_fallthru
        _
    $region913: #{tpu_custom_call.1} parent=1 // pred_fallthru
      _
    // Predicated region
    $region914: #{tpu_custom_call.1} parent=1 // pred_check
      %p1559 = pneg %p1555
    $region915: #{tpu_custom_call.1} parent=1 // pred_check_branch
      %1561 = sbr.rel (%p1559) target = $region917
    $region916: #{tpu_custom_call.1} parent=1 // pred_region
      %s1562 = sshll.u32 1, 1
      %s1563 = ssub.s32 %s1562, 1
      loop: start=0, step=1, limit=1
      $region918: #{tpu_custom_call.1} parent=916 // loop_pre_header
        _
      $region919: #{tpu_custom_call.1} parent=916 // loop_header
        %s1565 = sphi 0, %s1569
        %p1566 = scmp.ge.s32.totalorder %s1565, 1
        %s1570 = sphi %s1551, %s1551
        %s1571 = sphi %s1552, %s1552
      $region920: #{tpu_custom_call.1} parent=916 // loop_header_branch
        %1568 = sbr.rel (%p1566) target = $region924
      $region921: #{tpu_custom_call.1} parent=916 // loop_body
        %v1572 = vld [vmem:[%s1570] sm:%s1563]
        %1573 = vst [vmem:[%s1571] sm:%s1563] %v1572
      $region922: #{tpu_custom_call.1} parent=916 // loop_footer
        %s1569 = sadd.s32 1, %s1565
      $region923: #{tpu_custom_call.1} parent=916 // loop_footer_branch
        %1564 = sbr.rel target = $region919
      $region924: #{tpu_custom_call.1} parent=916 // loop_exit
        _
    $region917: #{tpu_custom_call.1} parent=1 // pred_fallthru
      _
    // Predicated region
    $region936: #{tpu_custom_call.1} parent=1 // pred_check
      _
    $region937: #{tpu_custom_call.1} parent=1 // pred_check_branch
      %1598 = sbr.rel (0) target = $region939
    $region938: #{tpu_custom_call.1} parent=1 // pred_region
      %1599 = vsyncadd %s1553, 16
    $region939: #{tpu_custom_call.1} parent=1 // pred_fallthru
      _
    %s1600 = sadd.s32 %s21, 31
    %s1601 = sld [smem:[#allocation5 + %s1600]]
    %s1602 = scalar_lea.vmem %s1, %s1601
    %s1603 = scalar_lea.vmem [#allocation2], 31
    %s1604 = scalar_lea.sflag [#allocation3], 31
    %p1606 = scmp.lt.u32.totalorder 1, 8
    %p1607 = pneg %p1606
    // Predicated region
    $region940: #{tpu_custom_call.1} parent=1 // pred_check
      _
    $region941: #{tpu_custom_call.1} parent=1 // pred_check_branch
      %1609 = sbr.rel (%p1606) target = $region943
    $region942: #{tpu_custom_call.1} parent=1 // pred_region
      %s1625 = sand.u32 1, 7
      %p1626 = scmp.eq.s32.totalorder %s1625, 0
      %p1627 = pneg %p1626
      // Predicated region
      $region955: #{tpu_custom_call.1} parent=942 // pred_check
        _
      $region956: #{tpu_custom_call.1} parent=942 // pred_check_branch
        %1629 = sbr.rel (%p1626) target = $region958
      $region957: #{tpu_custom_call.1} parent=942 // pred_region
        %s1630 = sand.u32 1, 7
        %s1631 = ssub.s32 1, %s1630
        %s1632 = scalar_lea.vmem %s1602, %s1631
        %s1633 = ssub.s32 1, %s1630
        %s1634 = scalar_lea.vmem %s1603, %s1633 [#allocation2]
        %s1635 = sshll.u32 1, %s1630
        %s1636 = ssub.s32 %s1635, 1
        loop: start=0, step=1, limit=1
        $region959: #{tpu_custom_call.1} parent=957 // loop_pre_header
          _
        $region960: #{tpu_custom_call.1} parent=957 // loop_header
          %s1638 = sphi 0, %s1642
          %p1639 = scmp.ge.s32.totalorder %s1638, 1
          %s1643 = sphi %s1632, %s1632
          %s1644 = sphi %s1634, %s1634
        $region961: #{tpu_custom_call.1} parent=957 // loop_header_branch
          %1641 = sbr.rel (%p1639) target = $region965
        $region962: #{tpu_custom_call.1} parent=957 // loop_body
          %v1645 = vld [vmem:[%s1643] sm:%s1636]
          %1646 = vst [vmem:[%s1644] sm:%s1636] %v1645
        $region963: #{tpu_custom_call.1} parent=957 // loop_footer
          %s1642 = sadd.s32 1, %s1638
        $region964: #{tpu_custom_call.1} parent=957 // loop_footer_branch
          %1637 = sbr.rel target = $region960
        $region965: #{tpu_custom_call.1} parent=957 // loop_exit
          _
      $region958: #{tpu_custom_call.1} parent=942 // pred_fallthru
        _
    $region943: #{tpu_custom_call.1} parent=1 // pred_fallthru
      _
    // Predicated region
    $region944: #{tpu_custom_call.1} parent=1 // pred_check
      %p1610 = pneg %p1606
    $region945: #{tpu_custom_call.1} parent=1 // pred_check_branch
      %1612 = sbr.rel (%p1610) target = $region947
    $region946: #{tpu_custom_call.1} parent=1 // pred_region
      %s1613 = sshll.u32 1, 1
      %s1614 = ssub.s32 %s1613, 1
      loop: start=0, step=1, limit=1
      $region948: #{tpu_custom_call.1} parent=946 // loop_pre_header
        _
      $region949: #{tpu_custom_call.1} parent=946 // loop_header
        %s1616 = sphi 0, %s1620
        %p1617 = scmp.ge.s32.totalorder %s1616, 1
        %s1621 = sphi %s1602, %s1602
        %s1622 = sphi %s1603, %s1603
      $region950: #{tpu_custom_call.1} parent=946 // loop_header_branch
        %1619 = sbr.rel (%p1617) target = $region954
      $region951: #{tpu_custom_call.1} parent=946 // loop_body
        %v1623 = vld [vmem:[%s1621] sm:%s1614]
        %1624 = vst [vmem:[%s1622] sm:%s1614] %v1623
      $region952: #{tpu_custom_call.1} parent=946 // loop_footer
        %s1620 = sadd.s32 1, %s1616
      $region953: #{tpu_custom_call.1} parent=946 // loop_footer_branch
        %1615 = sbr.rel target = $region949
      $region954: #{tpu_custom_call.1} parent=946 // loop_exit
        _
    $region947: #{tpu_custom_call.1} parent=1 // pred_fallthru
      _
    // Predicated region
    $region966: #{tpu_custom_call.1} parent=1 // pred_check
      _
    $region967: #{tpu_custom_call.1} parent=1 // pred_check_branch
      %1649 = sbr.rel (0) target = $region969
    $region968: #{tpu_custom_call.1} parent=1 // pred_region
      %1650 = vsyncadd %s1604, 16
    $region969: #{tpu_custom_call.1} parent=1 // pred_fallthru
      _
    %s1651 = smul.u32 1, 1
    %s1652 = sshll.u32 %s1651, 4
    %1653 = dma.done [#allocation3], %s1652
    %s1654 = sshll.u32 %s1651, 4
    %1655 = dma.done %s74, %s1654
    %s1656 = sshll.u32 %s1651, 4
    %1657 = dma.done %s125, %s1656
    %s1658 = sshll.u32 %s1651, 4
    %1659 = dma.done %s176, %s1658
    %s1660 = sshll.u32 %s1651, 4
    %1661 = dma.done %s227, %s1660
    %s1662 = sshll.u32 %s1651, 4
    %1663 = dma.done %s278, %s1662
    %s1664 = sshll.u32 %s1651, 4
    %1665 = dma.done %s329, %s1664
    %s1666 = sshll.u32 %s1651, 4
    %1667 = dma.done %s380, %s1666
    %s1668 = sshll.u32 %s1651, 4
    %1669 = dma.done %s431, %s1668
    %s1670 = sshll.u32 %s1651, 4
    %1671 = dma.done %s482, %s1670
    %s1672 = sshll.u32 %s1651, 4
    %1673 = dma.done %s533, %s1672
    %s1674 = sshll.u32 %s1651, 4
    %1675 = dma.done %s584, %s1674
    %s1676 = sshll.u32 %s1651, 4
    %1677 = dma.done %s635, %s1676
    %s1678 = sshll.u32 %s1651, 4
    %1679 = dma.done %s686, %s1678
    %s1680 = sshll.u32 %s1651, 4
    %1681 = dma.done %s737, %s1680
    %s1682 = sshll.u32 %s1651, 4
    %1683 = dma.done %s788, %s1682
    %s1684 = sshll.u32 %s1651, 4
    %1685 = dma.done %s839, %s1684
    %s1686 = sshll.u32 %s1651, 4
    %1687 = dma.done %s890, %s1686
    %s1688 = sshll.u32 %s1651, 4
    %1689 = dma.done %s941, %s1688
    %s1690 = sshll.u32 %s1651, 4
    %1691 = dma.done %s992, %s1690
    %s1692 = sshll.u32 %s1651, 4
    %1693 = dma.done %s1043, %s1692
    %s1694 = sshll.u32 %s1651, 4
    %1695 = dma.done %s1094, %s1694
    %s1696 = sshll.u32 %s1651, 4
    %1697 = dma.done %s1145, %s1696
    %s1698 = sshll.u32 %s1651, 4
    %1699 = dma.done %s1196, %s1698
    %s1700 = sshll.u32 %s1651, 4
    %1701 = dma.done %s1247, %s1700
    %s1702 = sshll.u32 %s1651, 4
    %1703 = dma.done %s1298, %s1702
    %s1704 = sshll.u32 %s1651, 4
    %1705 = dma.done %s1349, %s1704
    %s1706 = sshll.u32 %s1651, 4
    %1707 = dma.done %s1400, %s1706
    %s1708 = sshll.u32 %s1651, 4
    %1709 = dma.done %s1451, %s1708
    %s1710 = sshll.u32 %s1651, 4
    %1711 = dma.done %s1502, %s1710
    %s1712 = sshll.u32 %s1651, 4
    %1713 = dma.done %s1553, %s1712
    %s1714 = sshll.u32 %s1651, 4
    %1715 = dma.done %s1604, %s1714
    %v1716 = vld [vmem:[#allocation2] sm:$0xff]
    %v1717 = vld [vmem:[#allocation2 + $0x8] sm:$0xff]
    %v1718 = vld [vmem:[#allocation2 + $0x10] sm:$0xff]
    %v1719 = vld [vmem:[#allocation2 + $0x18] sm:$0xff]
    %v1720 = vpack.c.bf16 %v1717, %v1716
    %v1721 = vpack.c.bf16 %v1719, %v1718
    %v1722 = vld [vmem:[%s2] sm:$0xf]
    %v1723 = vld [vmem:[%s2 + $0x4] sm:$0xf]
    %v1724 = vld [vmem:[%s2 + $0x8] sm:$0xf]
    %v1725 = vld [vmem:[%s2 + $0xc] sm:$0xf]
    %v1726 = vld [vmem:[%s3] sm:$0x1]
    %v1728 = vlaneseq
    %v1729 = vshrl.u32 %v1728, 7
    %v1730 = vsub.s32 0, %v1729
    %v1731 = vrot.slane %v1726, %v1730
    %v1737 = vunpack.c.l.b16 %v1722
    %v1738 = vunpack.c.l.b16 %v1723
    %v1739 = vunpack.c.l.b16 %v1724
    %v1740 = vunpack.c.l.b16 %v1725
    %v1741 = vpack.c.b16 %v1738, %v1737
    %v1742 = vpack.c.b16 %v1740, %v1739
    %vm1745 = vcmask 261120
    %v1747 = vsel %vm1745, %v1720, 0
    %v1750 = vsel %vm1745, %v1721, 0
    %1752 = vmatprep.subr.bf16.mxu0 0
    %1753 = vmatpush1.bf16.msra.mxu0 0
    %1754 = vmatprep.subr.bf16.mxu0 0
    %1755 = vmatpush1.bf16.msra.mxu0 0
    %1756 = vmatprep.subr.bf16.mxu0 0
    %1757 = vmatpush1.bf16.msra.mxu0 0
    %1758 = vmatprep.subr.bf16.mxu0 0
    %1759 = vmatpush1.bf16.msra.mxu0 0
    %1760 = vmatprep.subr.bf16.mxu0 0
    %1761 = vmatpush1.bf16.msra.mxu0 0
    %1762 = vmatprep.subr.bf16.mxu0 0
    %1763 = vmatpush1.bf16.msra.mxu0 0
    %1764 = vmatprep.subr.bf16.mxu0 0
    %1765 = vmatpush1.bf16.msra.mxu0 %v1742
    %1766 = vmatprep.subr.bf16.mxu0 0
    %1767 = vmatpush1.bf16.msra.mxu0 %v1741
    %1768 = vmatprep.subr.bf16.mxu0 0
    %1769 = vmatpush2.bf16.msra.mxu0 0
    %1770 = vmatprep.subr.bf16.mxu0 0
    %1771 = vmatpush2.bf16.msra.mxu0 0
    %1772 = vmatprep.subr.bf16.mxu0 0
    %1773 = vmatpush2.bf16.msra.mxu0 0
    %1774 = vmatprep.subr.bf16.mxu0 0
    %1775 = vmatpush2.bf16.msra.mxu0 0
    %1776 = vmatprep.subr.bf16.mxu0 0
    %1777 = vmatpush2.bf16.msra.mxu0 0
    %1778 = vmatprep.subr.bf16.mxu0 0
    %1779 = vmatpush2.bf16.msra.mxu0 0
    %1780 = vmatprep.subr.bf16.mxu0 0
    %1781 = vmatpush2.bf16.msra.mxu0 0
    %1782 = vmatprep.subr.bf16.mxu0 0
    %1783 = vmatpush2.bf16.msra.mxu0 0
    %1784 = vmatprep.mubr.bf16.mxu0 0
    %1785 = vmatmul.mubr.bf16.gmra.mxu0 %v1747
    %v1786 = vpop.f32.mrf.mxu0
    %v1787 = vadd.f32 %v1731, %v1786
    %v1788 = vpop.f32.mrf.mxu0
    %v1789 = vpop.f32.mrf.mxu0
    %v1790 = vadd.f32 %v1731, %v1789
    %v1791 = vpop.f32.mrf.mxu0
    %1792 = vmatprep.mubr.bf16.mxu0 0
    %1793 = vmatmul.mubr.bf16.gmra.mxu0 %v1750
    %v1794 = vpop.f32.mrf.mxu0
    %v1795 = vadd.f32 %v1731, %v1794
    %v1796 = vpop.f32.mrf.mxu0
    %v1797 = vpop.f32.mrf.mxu0
    %v1798 = vadd.f32 %v1731, %v1797
    %v1799 = vpop.f32.mrf.mxu0
    %1800 = vdwg.mxu0
    %v1801 = vpack.c.bf16 %v1790, %v1787
    %v1802 = vpack.c.bf16 %v1798, %v1795
    %v1805 = vunpack.c.l.b16 %v1801
    %v1806 = vunpack.c.h.b16 %v1801
    %v1807 = vunpack.c.l.b16 %v1802
    %v1808 = vunpack.c.h.b16 %v1802
    %v1809 = vpack.c.b16 %v1805, %v1805
    %v1810 = vpack.c.b16 %v1806, %v1806
    %v1811 = vpack.c.b16 %v1807, %v1807
    %v1812 = vpack.c.b16 %v1808, %v1808
    %1817 = vst [vmem:[#allocation6] sm:$0xf] %v1809
    %1818 = vst [vmem:[#allocation6 + $0x4] sm:$0xf] %v1810
    %1819 = vst [vmem:[#allocation6 + $0x8] sm:$0xf] %v1811
    %1820 = vst [vmem:[#allocation6 + $0xc] sm:$0xf] %v1812
    // Predicated region
    $region970: #{tpu_custom_call.1} parent=1 // pred_check
      _
    $region971: #{tpu_custom_call.1} parent=1 // pred_check_branch
      %1822 = sbr.rel (0) target = $region973
    $region972: #{tpu_custom_call.1} parent=1 // pred_region
      %s1824 = ssub.s32 256, 256
      %1825 = vsyncadd [#allocation7], %s1824
      %s1826 = sshll.u32 [#allocation6], 4
      %s1827 = int_to_ptr.vmem [resolvable:$true] %s1826
      %1832 = dma.vmem_to_hbm [thread:$0]  %s1827, 256, %s4, [#allocation7], 64, 64, 4
    $region973: #{tpu_custom_call.1} parent=1 // pred_fallthru
      _
    // Predicated region
    $region974: #{tpu_custom_call.1} parent=1 // pred_check
      _
    $region975: #{tpu_custom_call.1} parent=1 // pred_check_branch
      %1834 = sbr.rel (0) target = $region977
    $region976: #{tpu_custom_call.1} parent=1 // pred_region
      %1835 = dma.done [#allocation7], 256
    $region977: #{tpu_custom_call.1} parent=1 // pred_fallthru
      _
    %1836 = vsyncpa [#allocation7], 1
  %1837 = vsyncmov [#allocation3]
  %s1838 = vpop.sfrf %1837
  %p1839 = scmp.eq.s32.totalorder %s1838, 0
  %p1840 = pneg %p1839
  %1842 = shalt.err (%p1840)
  %s1843 = scalar_lea.sflag [#allocation3], 1
  %1844 = vsyncmov %s1843
  %s1845 = vpop.sfrf %1844
  %p1846 = scmp.eq.s32.totalorder %s1845, 0
  %p1847 = pneg %p1846
  %1849 = shalt.err (%p1847)
  %s1850 = scalar_lea.sflag [#allocation3], 2
  %1851 = vsyncmov %s1850
  %s1852 = vpop.sfrf %1851
  %p1853 = scmp.eq.s32.totalorder %s1852, 0
  %p1854 = pneg %p1853
  %1856 = shalt.err (%p1854)
  %s1857 = scalar_lea.sflag [#allocation3], 3
  %1858 = vsyncmov %s1857
  %s1859 = vpop.sfrf %1858
  %p1860 = scmp.eq.s32.totalorder %s1859, 0
  %p1861 = pneg %p1860
  %1863 = shalt.err (%p1861)
  %s1864 = scalar_lea.sflag [#allocation3], 4
  %1865 = vsyncmov %s1864
  %s1866 = vpop.sfrf %1865
  %p1867 = scmp.eq.s32.totalorder %s1866, 0
  %p1868 = pneg %p1867
  %1870 = shalt.err (%p1868)
  %s1871 = scalar_lea.sflag [#allocation3], 5
  %1872 = vsyncmov %s1871
  %s1873 = vpop.sfrf %1872
  %p1874 = scmp.eq.s32.totalorder %s1873, 0
  %p1875 = pneg %p1874
  %1877 = shalt.err (%p1875)
  %s1878 = scalar_lea.sflag [#allocation3], 6
  %1879 = vsyncmov %s1878
  %s1880 = vpop.sfrf %1879
  %p1881 = scmp.eq.s32.totalorder %s1880, 0
  %p1882 = pneg %p1881
  %1884 = shalt.err (%p1882)
  %s1885 = scalar_lea.sflag [#allocation3], 7
  %1886 = vsyncmov %s1885
  %s1887 = vpop.sfrf %1886
  %p1888 = scmp.eq.s32.totalorder %s1887, 0
  %p1889 = pneg %p1888
  %1891 = shalt.err (%p1889)
  %s1892 = scalar_lea.sflag [#allocation3], 8
  %1893 = vsyncmov %s1892
  %s1894 = vpop.sfrf %1893
  %p1895 = scmp.eq.s32.totalorder %s1894, 0
  %p1896 = pneg %p1895
  %1898 = shalt.err (%p1896)
  %s1899 = scalar_lea.sflag [#allocation3], 9
  %1900 = vsyncmov %s1899
  %s1901 = vpop.sfrf %1900
  %p1902 = scmp.eq.s32.totalorder %s1901, 0
  %p1903 = pneg %p1902
  %1905 = shalt.err (%p1903)
  %s1906 = scalar_lea.sflag [#allocation3], 10
  %1907 = vsyncmov %s1906
  %s1908 = vpop.sfrf %1907
  %p1909 = scmp.eq.s32.totalorder %s1908, 0
  %p1910 = pneg %p1909
  %1912 = shalt.err (%p1910)
  %s1913 = scalar_lea.sflag [#allocation3], 11
  %1914 = vsyncmov %s1913
  %s1915 = vpop.sfrf %1914
  %p1916 = scmp.eq.s32.totalorder %s1915, 0
  %p1917 = pneg %p1916
  %1919 = shalt.err (%p1917)
  %s1920 = scalar_lea.sflag [#allocation3], 12
  %1921 = vsyncmov %s1920
  %s1922 = vpop.sfrf %1921
  %p1923 = scmp.eq.s32.totalorder %s1922, 0
  %p1924 = pneg %p1923
  %1926 = shalt.err (%p1924)
  %s1927 = scalar_lea.sflag [#allocation3], 13
  %1928 = vsyncmov %s1927
  %s1929 = vpop.sfrf %1928
  %p1930 = scmp.eq.s32.totalorder %s1929, 0
  %p1931 = pneg %p1930
  %1933 = shalt.err (%p1931)
  %s1934 = scalar_lea.sflag [#allocation3], 14
  %1935 = vsyncmov %s1934
  %s1936 = vpop.sfrf %1935
  %p1937 = scmp.eq.s32.totalorder %s1936, 0
  %p1938 = pneg %p1937
  %1940 = shalt.err (%p1938)
  %s1941 = scalar_lea.sflag [#allocation3], 15
  %1942 = vsyncmov %s1941
  %s1943 = vpop.sfrf %1942
  %p1944 = scmp.eq.s32.totalorder %s1943, 0
  %p1945 = pneg %p1944
  %1947 = shalt.err (%p1945)
  %s1948 = scalar_lea.sflag [#allocation3], 16
  %1949 = vsyncmov %s1948
  %s1950 = vpop.sfrf %1949
  %p1951 = scmp.eq.s32.totalorder %s1950, 0
  %p1952 = pneg %p1951
  %1954 = shalt.err (%p1952)
  %s1955 = scalar_lea.sflag [#allocation3], 17
  %1956 = vsyncmov %s1955
  %s1957 = vpop.sfrf %1956
  %p1958 = scmp.eq.s32.totalorder %s1957, 0
  %p1959 = pneg %p1958
  %1961 = shalt.err (%p1959)
  %s1962 = scalar_lea.sflag [#allocation3], 18
  %1963 = vsyncmov %s1962
  %s1964 = vpop.sfrf %1963
  %p1965 = scmp.eq.s32.totalorder %s1964, 0
  %p1966 = pneg %p1965
  %1968 = shalt.err (%p1966)
  %s1969 = scalar_lea.sflag [#allocation3], 19
  %1970 = vsyncmov %s1969
  %s1971 = vpop.sfrf %1970
  %p1972 = scmp.eq.s32.totalorder %s1971, 0
  %p1973 = pneg %p1972
  %1975 = shalt.err (%p1973)
  %s1976 = scalar_lea.sflag [#allocation3], 20
  %1977 = vsyncmov %s1976
  %s1978 = vpop.sfrf %1977
  %p1979 = scmp.eq.s32.totalorder %s1978, 0
  %p1980 = pneg %p1979
  %1982 = shalt.err (%p1980)
  %s1983 = scalar_lea.sflag [#allocation3], 21
  %1984 = vsyncmov %s1983
  %s1985 = vpop.sfrf %1984
  %p1986 = scmp.eq.s32.totalorder %s1985, 0
  %p1987 = pneg %p1986
  %1989 = shalt.err (%p1987)
  %s1990 = scalar_lea.sflag [#allocation3], 22
  %1991 = vsyncmov %s1990
  %s1992 = vpop.sfrf %1991
  %p1993 = scmp.eq.s32.totalorder %s1992, 0
  %p1994 = pneg %p1993
  %1996 = shalt.err (%p1994)
  %s1997 = scalar_lea.sflag [#allocation3], 23
  %1998 = vsyncmov %s1997
  %s1999 = vpop.sfrf %1998
  %p2000 = scmp.eq.s32.totalorder %s1999, 0
  %p2001 = pneg %p2000
  %2003 = shalt.err (%p2001)
  %s2004 = scalar_lea.sflag [#allocation3], 24
  %2005 = vsyncmov %s2004
  %s2006 = vpop.sfrf %2005
  %p2007 = scmp.eq.s32.totalorder %s2006, 0
  %p2008 = pneg %p2007
  %2010 = shalt.err (%p2008)
  %s2011 = scalar_lea.sflag [#allocation3], 25
  %2012 = vsyncmov %s2011
  %s2013 = vpop.sfrf %2012
  %p2014 = scmp.eq.s32.totalorder %s2013, 0
  %p2015 = pneg %p2014
  %2017 = shalt.err (%p2015)
  %s2018 = scalar_lea.sflag [#allocation3], 26
  %2019 = vsyncmov %s2018
  %s2020 = vpop.sfrf %2019
  %p2021 = scmp.eq.s32.totalorder %s2020, 0
  %p2022 = pneg %p2021
  %2024 = shalt.err (%p2022)
  %s2025 = scalar_lea.sflag [#allocation3], 27
  %2026 = vsyncmov %s2025
  %s2027 = vpop.sfrf %2026
  %p2028 = scmp.eq.s32.totalorder %s2027, 0
  %p2029 = pneg %p2028
  %2031 = shalt.err (%p2029)
  %s2032 = scalar_lea.sflag [#allocation3], 28
  %2033 = vsyncmov %s2032
  %s2034 = vpop.sfrf %2033
  %p2035 = scmp.eq.s32.totalorder %s2034, 0
  %p2036 = pneg %p2035
  %2038 = shalt.err (%p2036)
  %s2039 = scalar_lea.sflag [#allocation3], 29
  %2040 = vsyncmov %s2039
  %s2041 = vpop.sfrf %2040
  %p2042 = scmp.eq.s32.totalorder %s2041, 0
  %p2043 = pneg %p2042
  %2045 = shalt.err (%p2043)
  %s2046 = scalar_lea.sflag [#allocation3], 30
  %2047 = vsyncmov %s2046
  %s2048 = vpop.sfrf %2047
  %p2049 = scmp.eq.s32.totalorder %s2048, 0
  %p2050 = pneg %p2049
  %2052 = shalt.err (%p2050)
  %s2053 = scalar_lea.sflag [#allocation3], 31
  %2054 = vsyncmov %s2053
  %s2055 = vpop.sfrf %2054
  %p2056 = scmp.eq.s32.totalorder %s2055, 0
  %p2057 = pneg %p2056
  %2059 = shalt.err (%p2057)

</llo_original>
